<compile_context>
chip_gen: v7x
topology: tpu7x:2x2x1
jax: 0.10.0
libtpu: 0.0.40
codegen_flags: <defaults>
</compile_context>

<pallas_src>
import math

import jax
import jax.numpy as jnp
from jax import lax
from jax.experimental import pallas as pl
from jax.experimental.pallas import tpu as pltpu

# ------------------------------- config -------------------------------------
B, T_IN, D_IN = 2, 16, 16           # (N, T, D) audio features
STRIDE = 2                          # time_reduction_stride
DM = 32                             # conformer_input_dim
FFN = 64                            # conformer_ffn_dim
NUM_LAYERS = 2                      # conformer_num_layers
NUM_HEADS = 4                       # conformer_num_heads
KSIZE = 7                           # conformer_depthwise_conv_kernel_size (odd)
D_OUT = 24                          # output_dim
LN_EPS = 1e-5
BN_EPS = 1e-5

DR = D_IN * STRIDE                  # features after time reduction
TR = T_IN // STRIDE                 # frames after time reduction
DH = DM // NUM_HEADS                # per-head dim
PAD = (KSIZE - 1) // 2
D_OUT_PAD = 32                      # lane-padded output width (wrapper slices back)
GV_W = max(DM, D_OUT_PAD)           # width of the packed global-vector slab
NEG_INF = -1e30

# Row indices of the packed per-layer (N_LVEC_DM, DM) vector slab.
(R_FFN1_LN_G, R_FFN1_LN_B, R_FFN1_B2,
 R_ATTN_LN_G, R_ATTN_LN_B, R_BQ, R_BK, R_BV, R_OUT_PROJ_B,
 R_CONV_LN_G, R_CONV_LN_B, R_PW1_BA, R_PW1_BG, R_DW_B,
 R_BN_SCALE, R_BN_SHIFT, R_PW2_B,
 R_FFN2_LN_G, R_FFN2_LN_B, R_FFN2_B2,
 R_FINAL_LN_G, R_FINAL_LN_B, R_DW_W0) = range(23)
N_LVEC_DM = R_DW_W0 + KSIZE         # 22 bias/LN rows + KSIZE depthwise-tap rows
# Rows of the packed per-layer (2, FFN) slab.
R_FFN1_B1, R_FFN2_B1 = 0, 1


# ------------------------------ BlockSpec helpers ----------------------------
def _const_spec(shape):
    nd = len(shape)
    # Whole array, constant across the (batch, layer) grid.
    return pl.BlockSpec(shape, lambda b, l, lens, _n=nd: (0,) * _n)


def _layer_spec(shape):
    rest = tuple(shape[1:])
    nz = (0,) * len(rest)
    # Leading (layer) dim squeezed out; only layer l's weights are VMEM-resident.
    return pl.BlockSpec((None,) + rest, lambda b, l, lens, _z=nz: (l,) + _z)


# --------------------------- fused encoder kernel ----------------------------
def _encoder_kernel(len_ref, x_ref, in_w_ref, out_w_ref, gvec_ref,
                    wq_ref, wk_ref, wv_ref, wo_ref,
                    f1w1_ref, f1w2_ref, f2w1_ref, f2w2_ref,
                    pw1a_ref, pw1g_ref, pw2_ref,
                    lvd_ref, lvf_ref,
                    o_ref, h_ref):
    f32 = jnp.float32
    bf16 = jnp.bfloat16
    b = pl.program_id(0)          # batch (parallel)
    l = pl.program_id(1)          # conformer layer (arbitrary / sequential)
    tr = h_ref.shape[0]

    def mxu(a, w):
        # bf16 MXU matmul with f32 accumulation.
        return jnp.dot(a.astype(bf16), w.astype(bf16), preferred_element_type=f32)

    def layer_norm(x, g, beta):
        mu = jnp.mean(x, axis=-1, keepdims=True)
        xc = x - mu
        var = jnp.mean(xc * xc, axis=-1, keepdims=True)
        return xc * lax.rsqrt(var + LN_EPS) * g + beta

    def silu(x):
        return x * jax.nn.sigmoid(x)

    lvd = lvd_ref[...]            # (N_LVEC_DM, DM) per-layer vectors, f32
    lvf = lvf_ref[...]            # (2, FFN) per-layer FFN biases, f32
    gv = gvec_ref[...]            # (4, GV_W) global vectors, f32

    def lv(i):
        return lvd[i:i + 1, :]

    def lf(i):
        return lvf[i:i + 1, :]

    # ---------- input Linear only on the first layer step of this batch -----
    @pl.when(l == 0)
    def _():
        h_ref[...] = mxu(x_ref[...], in_w_ref[...]) + gv[0:1, :DM]

    h = h_ref[...]                # (tr, DM) f32, resident across layer steps

    # Key-padding additive bias for this batch, built from the SMEM length.
    kidx = lax.broadcasted_iota(jnp.int32, (1, tr), 1)
    key_bias = jnp.where(kidx < len_ref[b], 0.0, NEG_INF).astype(f32)

    # ------------------------------- FFN1 (half-step) -----------------------
    y = layer_norm(h, lv(R_FFN1_LN_G), lv(R_FFN1_LN_B))
    y = silu(mxu(y, f1w1_ref[...]) + lf(R_FFN1_B1))
    y = mxu(y, f1w2_ref[...]) + lv(R_FFN1_B2)
    h = h + 0.5 * y

    # ------------------------ multi-head self-attention ---------------------
    y = layer_norm(h, lv(R_ATTN_LN_G), lv(R_ATTN_LN_B))
    bq, bk, bv = lv(R_BQ), lv(R_BK), lv(R_BV)
    att = jnp.zeros((tr, DM), f32)
    for hh in range(NUM_HEADS):
        cols = slice(hh * DH, (hh + 1) * DH)
        qh = mxu(y, wq_ref[hh]) + bq[:, cols]      # 1/sqrt(DH) folded into wq/bq
        kh = mxu(y, wk_ref[hh]) + bk[:, cols]
        vh = mxu(y, wv_ref[hh]) + bv[:, cols]
        s = lax.dot_general(qh.astype(bf16), kh.astype(bf16),
                            (((1,), (1,)), ((), ())),
                            preferred_element_type=f32) + key_bias
        s = s - jnp.max(s, axis=-1, keepdims=True)
        e = jnp.exp(s)
        pr = e * pl.reciprocal(jnp.sum(e, axis=-1, keepdims=True), approx=True)
        ho = mxu(pr, vh)                           # (tr, DH)
        att = att + mxu(ho, wo_ref[hh])            # accumulate through per-head out-proj
    h = h + att + lv(R_OUT_PROJ_B)

    # -------- convolution module: pointwise(GLU) -> depthwise -> BN -> SiLU --
    y = layer_norm(h, lv(R_CONV_LN_G), lv(R_CONV_LN_B))
    a = mxu(y, pw1a_ref[...]) + lv(R_PW1_BA)
    gate = mxu(y, pw1g_ref[...]) + lv(R_PW1_BG)
    y = a * jax.nn.sigmoid(gate)                   # GLU
    row = lax.broadcasted_iota(jnp.int32, (tr, 1), 0)
    acc = jnp.zeros((tr, DM), f32)
    for kk in range(KSIZE):                        # depthwise conv via sublane rolls
        off = kk - PAD
        shifted = y if off == 0 else pltpu.roll(y, shift=(-off) % tr, axis=0)
        tap_valid = ((row + off >= 0) & (row + off < tr)).astype(f32)
        acc = acc + shifted * tap_valid * lv(R_DW_W0 + kk)
    y = acc + lv(R_DW_B)
    y = y * lv(R_BN_SCALE) + lv(R_BN_SHIFT)        # eval-mode BatchNorm1d (folded)
    y = silu(y)
    y = mxu(y, pw2_ref[...]) + lv(R_PW2_B)
    h = h + y

    # ----------------------- FFN2 (half-step) + final LN --------------------
    y = layer_norm(h, lv(R_FFN2_LN_G), lv(R_FFN2_LN_B))
    y = silu(mxu(y, f2w1_ref[...]) + lf(R_FFN2_B1))
    y = mxu(y, f2w2_ref[...]) + lv(R_FFN2_B2)
    h = h + 0.5 * y
    h = layer_norm(h, lv(R_FINAL_LN_G), lv(R_FINAL_LN_B))

    h_ref[...] = h

    # -------- output Linear + LayerNorm only on the last layer step ---------
    @pl.when(l == NUM_LAYERS - 1)
    def _():
        out = mxu(h, out_w_ref[...]) + gv[1:2, :D_OUT_PAD]   # cols >= D_OUT are 0
        cidx = lax.broadcasted_iota(jnp.int32, (1, D_OUT_PAD), 1)
        col_valid = (cidx < D_OUT).astype(f32)
        mu = jnp.sum(out, axis=-1, keepdims=True) / D_OUT
        xc = (out - mu) * col_valid
        var = jnp.sum(xc * xc, axis=-1, keepdims=True) / D_OUT
        res = xc * lax.rsqrt(var + LN_EPS) * gv[2:3, :D_OUT_PAD] + gv[3:4, :D_OUT_PAD]
        o_ref[...] = res.astype(o_ref.dtype)


# ------------------------------- wrapper -------------------------------------
def conformer_encoder_forward(params, x, lengths):
    bn, t, d = x.shape
    num_frames = t - (t % STRIDE)
    tr = num_frames // STRIDE
    dr = d * STRIDE
    # _TimeReduction: drop trailing frames, fold the stride into the feature dim.
    x_tr = x[:, :num_frames, :].reshape(bn, tr, dr).astype(jnp.bfloat16)
    red_lengths = (lengths // STRIDE).astype(jnp.int32)

    bf16, f32 = jnp.bfloat16, jnp.float32
    scale = 1.0 / math.sqrt(DH)
    layers = params["layers"]

    def gv_row(v):
        return jnp.pad(v, ((0, 0), (0, GV_W - v.shape[1])))

    # Globals: matmul weights -> bf16; tiny vectors packed into one f32 slab.
    in_w = params["in_w"].astype(bf16)
    out_w = jnp.pad(params["out_w"],
                    ((0, 0), (0, D_OUT_PAD - D_OUT))).astype(bf16)
    gvec = jnp.concatenate([gv_row(params["in_b"]), gv_row(params["out_b"]),
                            gv_row(params["lnf_g"]), gv_row(params["lnf_b"])],
                           axis=0).astype(f32)

    def heads_in(w):      # (DM, DM) -> (H, DM, DH): per-head projection columns
        return w.reshape(DM, NUM_HEADS, DH).transpose(1, 0, 2)

    wq3 = jnp.stack([heads_in(lp["wq"] * scale) for lp in layers]).astype(bf16)
    wk3 = jnp.stack([heads_in(lp["wk"]) for lp in layers]).astype(bf16)
    wv3 = jnp.stack([heads_in(lp["wv"]) for lp in layers]).astype(bf16)
    wo3 = jnp.stack([lp["out_proj_w"].reshape(NUM_HEADS, DH, DM)
                     for lp in layers]).astype(bf16)

    def stack_bf16(name):
        return jnp.stack([lp[name] for lp in layers]).astype(bf16)

    f1w1, f1w2 = stack_bf16("ffn1_w1"), stack_bf16("ffn1_w2")
    f2w1, f2w2 = stack_bf16("ffn2_w1"), stack_bf16("ffn2_w2")
    pw1a, pw1g, pw2 = stack_bf16("pw1_wa"), stack_bf16("pw1_wg"), stack_bf16("pw2_w")

    lvec_dm = jnp.stack([jnp.concatenate([
        lp["ffn1_ln_g"], lp["ffn1_ln_b"], lp["ffn1_b2"],
        lp["attn_ln_g"], lp["attn_ln_b"],
        lp["bq"] * scale, lp["bk"], lp["bv"], lp["out_proj_b"],
        lp["conv_ln_g"], lp["conv_ln_b"], lp["pw1_ba"], lp["pw1_bg"], lp["dw_b"],
        lp["bn_scale"], lp["bn_shift"], lp["pw2_b"],
        lp["ffn2_ln_g"], lp["ffn2_ln_b"], lp["ffn2_b2"],
        lp["final_ln_g"], lp["final_ln_b"],
        lp["dw_w"],
    ], axis=0) for lp in layers]).astype(f32)
    lvec_ffn = jnp.stack([jnp.concatenate([lp["ffn1_b1"], lp["ffn2_b1"]], axis=0)
                          for lp in layers]).astype(f32)

    inputs = [x_tr, in_w, out_w, gvec, wq3, wk3, wv3, wo3,
              f1w1, f1w2, f2w1, f2w2, pw1a, pw1g, pw2, lvec_dm, lvec_ffn]

    x_spec = pl.BlockSpec((None, tr, dr), lambda b, l, lens: (b, 0, 0))
    in_specs = ([x_spec, _const_spec(in_w.shape), _const_spec(out_w.shape),
                 _const_spec(gvec.shape)]
                + [_layer_spec(a.shape) for a in
                   (wq3, wk3, wv3, wo3, f1w1, f1w2, f2w1, f2w2,
                    pw1a, pw1g, pw2, lvec_dm, lvec_ffn)])
    out_spec = pl.BlockSpec((None, tr, D_OUT_PAD), lambda b, l, lens: (b, 0, 0))

    out = pl.pallas_call(
        _encoder_kernel,
        out_shape=jax.ShapeDtypeStruct((bn, tr, D_OUT_PAD), jnp.float32),
        grid_spec=pltpu.PrefetchScalarGridSpec(
            num_scalar_prefetch=1,
            grid=(bn, NUM_LAYERS),
            in_specs=in_specs,
            out_specs=out_spec,
            scratch_shapes=[pltpu.VMEM((tr, DM), jnp.float32)],
        ),
        compiler_params=pltpu.CompilerParams(
            dimension_semantics=("parallel", "arbitrary")),
    )(red_lengths, *inputs)

    return out[:, :, :D_OUT], red_lengths


# ------------------------------ parameter init --------------------------------
def init_params(key):
    keys = iter(jax.random.split(key, 512))

    def nrm(shape, scale=0.1):
        return scale * jax.random.normal(next(keys), shape, jnp.float32)

    params = {
        "in_w": nrm((DR, DM)), "in_b": nrm((1, DM)),
        "out_w": nrm((DM, D_OUT)), "out_b": nrm((1, D_OUT)),
        "lnf_g": 1.0 + nrm((1, D_OUT)), "lnf_b": nrm((1, D_OUT)),
        "layers": [],
    }
    for _ in range(NUM_LAYERS):
        bn_gamma = 1.0 + nrm((1, DM))
        bn_beta = nrm((1, DM))
        bn_mean = jnp.zeros((1, DM), jnp.float32)     # eval-mode running stats
        bn_var = jnp.ones((1, DM), jnp.float32)
        bn_scale = bn_gamma / jnp.sqrt(bn_var + BN_EPS)
        bn_shift = bn_beta - bn_mean * bn_scale
        layer = {
            "ffn1_ln_g": 1.0 + nrm((1, DM)), "ffn1_ln_b": nrm((1, DM)),
            "ffn1_w1": nrm((DM, FFN)), "ffn1_b1": nrm((1, FFN)),
            "ffn1_w2": nrm((FFN, DM)), "ffn1_b2": nrm((1, DM)),
            "attn_ln_g": 1.0 + nrm((1, DM)), "attn_ln_b": nrm((1, DM)),
            # in_proj split into q/k/v; per-head split happens in the wrapper
            "wq": nrm((DM, DM)), "bq": nrm((1, DM)),
            "wk": nrm((DM, DM)), "bk": nrm((1, DM)),
            "wv": nrm((DM, DM)), "bv": nrm((1, DM)),
            "out_proj_w": nrm((DM, DM)), "out_proj_b": nrm((1, DM)),
            "conv_ln_g": 1.0 + nrm((1, DM)), "conv_ln_b": nrm((1, DM)),
            # pointwise-conv-1 split into GLU value/gate halves
            "pw1_wa": nrm((DM, DM)), "pw1_ba": nrm((1, DM)),
            "pw1_wg": nrm((DM, DM)), "pw1_bg": nrm((1, DM)),
            "dw_w": nrm((KSIZE, DM)), "dw_b": nrm((1, DM)),
            "bn_scale": bn_scale, "bn_shift": bn_shift,
            "pw2_w": nrm((DM, DM)), "pw2_b": nrm((1, DM)),
            "ffn2_ln_g": 1.0 + nrm((1, DM)), "ffn2_ln_b": nrm((1, DM)),
            "ffn2_w1": nrm((DM, FFN)), "ffn2_b1": nrm((1, FFN)),
            "ffn2_w2": nrm((FFN, DM)), "ffn2_b2": nrm((1, DM)),
            "final_ln_g": 1.0 + nrm((1, DM)), "final_ln_b": nrm((1, DM)),
        }
        params["layers"].append(layer)
    return params


# ----------------------------------- main --------------------------------------
if __name__ == "__main__":
    root = jax.random.PRNGKey(0)
    k_x, k_p = jax.random.split(root)

    x = jax.random.normal(k_x, (B, T_IN, D_IN), jnp.float32)
    lengths = jnp.array([16, 12], dtype=jnp.int32)
    params = init_params(k_p)

    fwd = jax.jit(conformer_encoder_forward)
    out, out_lengths = fwd(params, x, lengths)
    out = jax.block_until_ready(out)
    out_lengths = jax.block_until_ready(out_lengths)

    assert out.shape == (B, TR, D_OUT), out.shape
    assert out_lengths.shape == (B,), out_lengths.shape
    assert bool(jnp.all(jnp.isfinite(out)))
    print("KERNEL_OK")
</pallas_src>

<mosaic_0001>
module attributes {stable_mosaic.version = 11 : i64} {
  func.func @_encoder_kernel(%arg0: i32, %arg1: i32, %arg2: memref<2xi32, #tpu.memory_space<smem>>, %arg3: memref<1x8x32xbf16, #tpu.memory_space<vmem>>, %arg4: memref<32x32xbf16, #tpu.memory_space<vmem>>, %arg5: memref<32x32xbf16, #tpu.memory_space<vmem>>, %arg6: memref<4x32xf32, #tpu.memory_space<vmem>>, %arg7: memref<1x4x32x8xbf16, #tpu.memory_space<vmem>>, %arg8: memref<1x4x32x8xbf16, #tpu.memory_space<vmem>>, %arg9: memref<1x4x32x8xbf16, #tpu.memory_space<vmem>>, %arg10: memref<1x4x8x32xbf16, #tpu.memory_space<vmem>>, %arg11: memref<1x32x64xbf16, #tpu.memory_space<vmem>>, %arg12: memref<1x64x32xbf16, #tpu.memory_space<vmem>>, %arg13: memref<1x32x64xbf16, #tpu.memory_space<vmem>>, %arg14: memref<1x64x32xbf16, #tpu.memory_space<vmem>>, %arg15: memref<1x32x32xbf16, #tpu.memory_space<vmem>>, %arg16: memref<1x32x32xbf16, #tpu.memory_space<vmem>>, %arg17: memref<1x32x32xbf16, #tpu.memory_space<vmem>>, %arg18: memref<1x29x32xf32, #tpu.memory_space<vmem>>, %arg19: memref<1x2x64xf32, #tpu.memory_space<vmem>>, %arg20: memref<1x8x32xf32, #tpu.memory_space<vmem>>, %arg21: memref<8x32xf32, #tpu.memory_space<vmem>>) attributes {dimension_semantics = [#tpu.dimension_semantics<parallel>, #tpu.dimension_semantics<arbitrary>], iteration_bounds = array<i64: 2, 2>, scalar_prefetch = 1 : i64, scratch_operands = 1 : i64, tpu.core_type = #tpu.core_type<tc>, window_params = [{transform_indices = @transform_0, window_bounds = array<i64: 1, 8, 32>}, {pipeline_mode = #tpu.pipeline_mode<synchronous>, transform_indices = @transform_1, window_bounds = array<i64: 32, 32>}, {pipeline_mode = #tpu.pipeline_mode<synchronous>, transform_indices = @transform_2, window_bounds = array<i64: 32, 32>}, {pipeline_mode = #tpu.pipeline_mode<synchronous>, transform_indices = @transform_3, window_bounds = array<i64: 4, 32>}, {transform_indices = @transform_4, window_bounds = array<i64: 1, 4, 32, 8>}, {transform_indices = @transform_5, window_bounds = array<i64: 1, 4, 32, 8>}, {transform_indices = @transform_6, window_bounds = array<i64: 1, 4, 32, 8>}, {transform_indices = @transform_7, window_bounds = array<i64: 1, 4, 8, 32>}, {transform_indices = @transform_8, window_bounds = array<i64: 1, 32, 64>}, {transform_indices = @transform_9, window_bounds = array<i64: 1, 64, 32>}, {transform_indices = @transform_10, window_bounds = array<i64: 1, 32, 64>}, {transform_indices = @transform_11, window_bounds = array<i64: 1, 64, 32>}, {transform_indices = @transform_12, window_bounds = array<i64: 1, 32, 32>}, {transform_indices = @transform_13, window_bounds = array<i64: 1, 32, 32>}, {transform_indices = @transform_14, window_bounds = array<i64: 1, 32, 32>}, {transform_indices = @transform_15, window_bounds = array<i64: 1, 29, 32>}, {transform_indices = @transform_16, window_bounds = array<i64: 1, 2, 64>}, {transform_indices = @transform_17, window_bounds = array<i64: 1, 8, 32>}]} {
    %c0 = arith.constant 0 : index
    %c0_0 = arith.constant 0 : index
    %c0_1 = arith.constant 0 : index
    %0 = vector.load %arg18[%c0, %c0_0, %c0_1] : memref<1x29x32xf32, #tpu.memory_space<vmem>>, vector<1x29x32xf32>
    %1 = vector.shape_cast %0 : vector<1x29x32xf32> to vector<29x32xf32>
    %c0_2 = arith.constant 0 : index
    %c0_3 = arith.constant 0 : index
    %c0_4 = arith.constant 0 : index
    %2 = vector.load %arg19[%c0_2, %c0_3, %c0_4] : memref<1x2x64xf32, #tpu.memory_space<vmem>>, vector<1x2x64xf32>
    %3 = vector.shape_cast %2 : vector<1x2x64xf32> to vector<2x64xf32>
    %c0_5 = arith.constant 0 : index
    %c0_6 = arith.constant 0 : index
    %4 = vector.load %arg6[%c0_5, %c0_6] : memref<4x32xf32, #tpu.memory_space<vmem>>, vector<4x32xf32>
    %c0_i32 = arith.constant 0 : i32
    %5 = arith.cmpi eq, %arg1, %c0_i32 : i32
    %6 = arith.extui %5 : i1 to i32
    %c0_i32_7 = arith.constant 0 : i32
    %7 = arith.cmpi ne, %6, %c0_i32_7 : i32
    scf.if %7 {
      %c0_193 = arith.constant 0 : index
      %c0_194 = arith.constant 0 : index
      %c0_195 = arith.constant 0 : index
      %531 = vector.load %arg3[%c0_193, %c0_194, %c0_195] : memref<1x8x32xbf16, #tpu.memory_space<vmem>>, vector<1x8x32xbf16>
      %532 = vector.shape_cast %531 : vector<1x8x32xbf16> to vector<8x32xbf16>
      %c0_196 = arith.constant 0 : index
      %c0_197 = arith.constant 0 : index
      %533 = vector.load %arg4[%c0_196, %c0_197] : memref<32x32xbf16, #tpu.memory_space<vmem>>, vector<32x32xbf16>
      %cst_198 = arith.constant dense<0.000000e+00> : vector<8x32xf32>
      %534 = tpu.matmul %532, %533, %cst_198 {dimension_numbers = #tpu.dot_dimension_numbers<[1], [0], [0], [1], [0, 0, 1, 1], [], []>} : vector<8x32xbf16>, vector<32x32xbf16>, vector<8x32xf32> -> vector<8x32xf32>
      %535 = vector.extract_strided_slice %4 {offsets = [0, 0], sizes = [1, 32], strides = [1, 1]} : vector<4x32xf32> to vector<1x32xf32>
      %536 = vector.broadcast %535 : vector<1x32xf32> to vector<8x32xf32>
      %537 = arith.addf %534, %536 : vector<8x32xf32>
      %c0_199 = arith.constant 0 : index
      %c0_200 = arith.constant 0 : index
      %538 = vector.load %arg21[%c0_199, %c0_200] : memref<8x32xf32, #tpu.memory_space<vmem>>, vector<8x32xf32>
      tpu.vector_store %arg21[%c0_199, %c0_200], %537 {strides = array<i32>} : memref<8x32xf32, #tpu.memory_space<vmem>>, vector<8x32xf32>,
    } else {
    }
    %c0_8 = arith.constant 0 : index
    %c0_9 = arith.constant 0 : index
    %8 = vector.load %arg21[%c0_8, %c0_9] : memref<8x32xf32, #tpu.memory_space<vmem>>, vector<8x32xf32>
    %9 = tpu.iota {dimensions = array<i32: 1>} : vector<1x8xi32>
    %10 = arith.index_cast %arg0 : i32 to index
    %11 = memref.load %arg2[%10] : memref<2xi32, #tpu.memory_space<smem>>
    %12 = vector.broadcast %11 : i32 to vector<1x8xi32>
    %13 = arith.cmpi slt, %9, %12 : vector<1x8xi32>
    %cst = arith.constant 0.000000e+00 : f32
    %cst_10 = arith.constant -1.000000e+30 : f32
    %14 = vector.broadcast %cst : f32 to vector<1x8xf32>
    %15 = vector.broadcast %cst_10 : f32 to vector<1x8xf32>
    %16 = arith.select %13, %14, %15 : vector<1x8xi1>, vector<1x8xf32>
    %17 = vector.extract_strided_slice %1 {offsets = [0, 0], sizes = [1, 32], strides = [1, 1]} : vector<29x32xf32> to vector<1x32xf32>
    %18 = vector.extract_strided_slice %1 {offsets = [1, 0], sizes = [1, 32], strides = [1, 1]} : vector<29x32xf32> to vector<1x32xf32>
    %cst_11 = arith.constant dense<0.000000e+00> : vector<8xf32>
    %19 = vector.multi_reduction <add>, %8, %cst_11 [1] : vector<8x32xf32> to vector<8xf32>
    %20 = vector.shape_cast %19 : vector<8xf32> to vector<8x1xf32>
    %cst_12 = arith.constant 3.200000e+01 : f32
    %21 = vector.broadcast %cst_12 : f32 to vector<8x1xf32>
    %22 = arith.divf %20, %21 : vector<8x1xf32>
    %23 = vector.broadcast %22 : vector<8x1xf32> to vector<8x32xf32>
    %24 = arith.subf %8, %23 : vector<8x32xf32>
    %25 = arith.mulf %24, %24 : vector<8x32xf32>
    %cst_13 = arith.constant dense<0.000000e+00> : vector<8xf32>
    %26 = vector.multi_reduction <add>, %25, %cst_13 [1] : vector<8x32xf32> to vector<8xf32>
    %27 = vector.shape_cast %26 : vector<8xf32> to vector<8x1xf32>
    %cst_14 = arith.constant 3.200000e+01 : f32
    %28 = vector.broadcast %cst_14 : f32 to vector<8x1xf32>
    %29 = arith.divf %27, %28 : vector<8x1xf32>
    %cst_15 = arith.constant 9.99999974E-6 : f32
    %30 = vector.broadcast %cst_15 : f32 to vector<8x1xf32>
    %31 = arith.addf %29, %30 : vector<8x1xf32>
    %32 = math.rsqrt %31 : vector<8x1xf32>
    %33 = vector.broadcast %32 : vector<8x1xf32> to vector<8x32xf32>
    %34 = arith.mulf %24, %33 : vector<8x32xf32>
    %35 = vector.broadcast %17 : vector<1x32xf32> to vector<8x32xf32>
    %36 = arith.mulf %34, %35 : vector<8x32xf32>
    %37 = vector.broadcast %18 : vector<1x32xf32> to vector<8x32xf32>
    %38 = arith.addf %36, %37 : vector<8x32xf32>
    %c0_16 = arith.constant 0 : index
    %c0_17 = arith.constant 0 : index
    %c0_18 = arith.constant 0 : index
    %39 = vector.load %arg11[%c0_16, %c0_17, %c0_18] : memref<1x32x64xbf16, #tpu.memory_space<vmem>>, vector<1x32x64xbf16>
    %40 = vector.shape_cast %39 : vector<1x32x64xbf16> to vector<32x64xbf16>
    %41 = arith.truncf %38 : vector<8x32xf32> to vector<8x32xbf16>
    %cst_19 = arith.constant dense<0.000000e+00> : vector<8x64xf32>
    %42 = tpu.matmul %41, %40, %cst_19 {dimension_numbers = #tpu.dot_dimension_numbers<[1], [0], [0], [1], [0, 0, 1, 1], [], []>} : vector<8x32xbf16>, vector<32x64xbf16>, vector<8x64xf32> -> vector<8x64xf32>
    %43 = vector.extract_strided_slice %3 {offsets = [0, 0], sizes = [1, 64], strides = [1, 1]} : vector<2x64xf32> to vector<1x64xf32>
    %44 = vector.broadcast %43 : vector<1x64xf32> to vector<8x64xf32>
    %45 = arith.addf %42, %44 : vector<8x64xf32>
    %46 = arith.negf %45 : vector<8x64xf32>
    %47 = math.exp %46 : vector<8x64xf32>
    %cst_20 = arith.constant 1.000000e+00 : f32
    %48 = vector.broadcast %cst_20 : f32 to vector<8x64xf32>
    %49 = arith.addf %48, %47 : vector<8x64xf32>
    %50 = arith.divf %48, %49 : vector<8x64xf32>
    %51 = arith.mulf %45, %50 : vector<8x64xf32>
    %c0_21 = arith.constant 0 : index
    %c0_22 = arith.constant 0 : index
    %c0_23 = arith.constant 0 : index
    %52 = vector.load %arg12[%c0_21, %c0_22, %c0_23] : memref<1x64x32xbf16, #tpu.memory_space<vmem>>, vector<1x64x32xbf16>
    %53 = vector.shape_cast %52 : vector<1x64x32xbf16> to vector<64x32xbf16>
    %54 = arith.truncf %51 : vector<8x64xf32> to vector<8x64xbf16>
    %cst_24 = arith.constant dense<0.000000e+00> : vector<8x32xf32>
    %55 = tpu.matmul %54, %53, %cst_24 {dimension_numbers = #tpu.dot_dimension_numbers<[1], [0], [0], [1], [0, 0, 1, 1], [], []>} : vector<8x64xbf16>, vector<64x32xbf16>, vector<8x32xf32> -> vector<8x32xf32>
    %56 = vector.extract_strided_slice %1 {offsets = [2, 0], sizes = [1, 32], strides = [1, 1]} : vector<29x32xf32> to vector<1x32xf32>
    %57 = vector.broadcast %56 : vector<1x32xf32> to vector<8x32xf32>
    %58 = arith.addf %55, %57 : vector<8x32xf32>
    %cst_25 = arith.constant 5.000000e-01 : f32
    %59 = vector.broadcast %cst_25 : f32 to vector<8x32xf32>
    %60 = arith.mulf %59, %58 : vector<8x32xf32>
    %61 = arith.addf %8, %60 : vector<8x32xf32>
    %62 = vector.extract_strided_slice %1 {offsets = [3, 0], sizes = [1, 32], strides = [1, 1]} : vector<29x32xf32> to vector<1x32xf32>
    %63 = vector.extract_strided_slice %1 {offsets = [4, 0], sizes = [1, 32], strides = [1, 1]} : vector<29x32xf32> to vector<1x32xf32>
    %cst_26 = arith.constant dense<0.000000e+00> : vector<8xf32>
    %64 = vector.multi_reduction <add>, %61, %cst_26 [1] : vector<8x32xf32> to vector<8xf32>
    %65 = vector.shape_cast %64 : vector<8xf32> to vector<8x1xf32>
    %cst_27 = arith.constant 3.200000e+01 : f32
    %66 = vector.broadcast %cst_27 : f32 to vector<8x1xf32>
    %67 = arith.divf %65, %66 : vector<8x1xf32>
    %68 = vector.broadcast %67 : vector<8x1xf32> to vector<8x32xf32>
    %69 = arith.subf %61, %68 : vector<8x32xf32>
    %70 = arith.mulf %69, %69 : vector<8x32xf32>
    %cst_28 = arith.constant dense<0.000000e+00> : vector<8xf32>
    %71 = vector.multi_reduction <add>, %70, %cst_28 [1] : vector<8x32xf32> to vector<8xf32>
    %72 = vector.shape_cast %71 : vector<8xf32> to vector<8x1xf32>
    %cst_29 = arith.constant 3.200000e+01 : f32
    %73 = vector.broadcast %cst_29 : f32 to vector<8x1xf32>
    %74 = arith.divf %72, %73 : vector<8x1xf32>
    %cst_30 = arith.constant 9.99999974E-6 : f32
    %75 = vector.broadcast %cst_30 : f32 to vector<8x1xf32>
    %76 = arith.addf %74, %75 : vector<8x1xf32>
    %77 = math.rsqrt %76 : vector<8x1xf32>
    %78 = vector.broadcast %77 : vector<8x1xf32> to vector<8x32xf32>
    %79 = arith.mulf %69, %78 : vector<8x32xf32>
    %80 = vector.broadcast %62 : vector<1x32xf32> to vector<8x32xf32>
    %81 = arith.mulf %79, %80 : vector<8x32xf32>
    %82 = vector.broadcast %63 : vector<1x32xf32> to vector<8x32xf32>
    %83 = arith.addf %81, %82 : vector<8x32xf32>
    %84 = vector.extract_strided_slice %1 {offsets = [5, 0], sizes = [1, 32], strides = [1, 1]} : vector<29x32xf32> to vector<1x32xf32>
    %85 = vector.extract_strided_slice %1 {offsets = [6, 0], sizes = [1, 32], strides = [1, 1]} : vector<29x32xf32> to vector<1x32xf32>
    %86 = vector.extract_strided_slice %1 {offsets = [7, 0], sizes = [1, 32], strides = [1, 1]} : vector<29x32xf32> to vector<1x32xf32>
    %cst_31 = arith.constant 0.000000e+00 : f32
    %87 = vector.broadcast %cst_31 : f32 to vector<8x32xf32>
    %c0_32 = arith.constant 0 : index
    %c0_33 = arith.constant 0 : index
    %c0_34 = arith.constant 0 : index
    %c0_35 = arith.constant 0 : index
    %88 = vector.load %arg7[%c0_32, %c0_33, %c0_34, %c0_35] : memref<1x4x32x8xbf16, #tpu.memory_space<vmem>>, vector<1x1x32x8xbf16>
    %89 = vector.shape_cast %88 : vector<1x1x32x8xbf16> to vector<32x8xbf16>
    %90 = arith.truncf %83 : vector<8x32xf32> to vector<8x32xbf16>
    %cst_36 = arith.constant dense<0.000000e+00> : vector<8x8xf32>
    %91 = tpu.matmul %90, %89, %cst_36 {dimension_numbers = #tpu.dot_dimension_numbers<[1], [0], [0], [1], [0, 0, 1, 1], [], []>} : vector<8x32xbf16>, vector<32x8xbf16>, vector<8x8xf32> -> vector<8x8xf32>
    %92 = vector.extract_strided_slice %84 {offsets = [0, 0], sizes = [1, 8], strides = [1, 1]} : vector<1x32xf32> to vector<1x8xf32>
    %93 = vector.broadcast %92 : vector<1x8xf32> to vector<8x8xf32>
    %94 = arith.addf %91, %93 : vector<8x8xf32>
    %c0_37 = arith.constant 0 : index
    %c0_38 = arith.constant 0 : index
    %c0_39 = arith.constant 0 : index
    %c0_40 = arith.constant 0 : index
    %95 = vector.load %arg8[%c0_37, %c0_38, %c0_39, %c0_40] : memref<1x4x32x8xbf16, #tpu.memory_space<vmem>>, vector<1x1x32x8xbf16>
    %96 = vector.shape_cast %95 : vector<1x1x32x8xbf16> to vector<32x8xbf16>
    %97 = arith.truncf %83 : vector<8x32xf32> to vector<8x32xbf16>
    %cst_41 = arith.constant dense<0.000000e+00> : vector<8x8xf32>
    %98 = tpu.matmul %97, %96, %cst_41 {dimension_numbers = #tpu.dot_dimension_numbers<[1], [0], [0], [1], [0, 0, 1, 1], [], []>} : vector<8x32xbf16>, vector<32x8xbf16>, vector<8x8xf32> -> vector<8x8xf32>
    %99 = vector.extract_strided_slice %85 {offsets = [0, 0], sizes = [1, 8], strides = [1, 1]} : vector<1x32xf32> to vector<1x8xf32>
    %100 = vector.broadcast %99 : vector<1x8xf32> to vector<8x8xf32>
    %101 = arith.addf %98, %100 : vector<8x8xf32>
    %c0_42 = arith.constant 0 : index
    %c0_43 = arith.constant 0 : index
    %c0_44 = arith.constant 0 : index
    %c0_45 = arith.constant 0 : index
    %102 = vector.load %arg9[%c0_42, %c0_43, %c0_44, %c0_45] : memref<1x4x32x8xbf16, #tpu.memory_space<vmem>>, vector<1x1x32x8xbf16>
    %103 = vector.shape_cast %102 : vector<1x1x32x8xbf16> to vector<32x8xbf16>
    %104 = arith.truncf %83 : vector<8x32xf32> to vector<8x32xbf16>
    %cst_46 = arith.constant dense<0.000000e+00> : vector<8x8xf32>
    %105 = tpu.matmul %104, %103, %cst_46 {dimension_numbers = #tpu.dot_dimension_numbers<[1], [0], [0], [1], [0, 0, 1, 1], [], []>} : vector<8x32xbf16>, vector<32x8xbf16>, vector<8x8xf32> -> vector<8x8xf32>
    %106 = vector.extract_strided_slice %86 {offsets = [0, 0], sizes = [1, 8], strides = [1, 1]} : vector<1x32xf32> to vector<1x8xf32>
    %107 = vector.broadcast %106 : vector<1x8xf32> to vector<8x8xf32>
    %108 = arith.addf %105, %107 : vector<8x8xf32>
    %109 = arith.truncf %94 : vector<8x8xf32> to vector<8x8xbf16>
    %110 = arith.truncf %101 : vector<8x8xf32> to vector<8x8xbf16>
    %cst_47 = arith.constant dense<0.000000e+00> : vector<8x8xf32>
    %111 = tpu.matmul %109, %110, %cst_47 {dimension_numbers = #tpu.dot_dimension_numbers<[1], [1], [0], [0], [0, 0, 1, 0], [], []>} : vector<8x8xbf16>, vector<8x8xbf16>, vector<8x8xf32> -> vector<8x8xf32>
    %112 = vector.broadcast %16 : vector<1x8xf32> to vector<8x8xf32>
    %113 = arith.addf %111, %112 : vector<8x8xf32>
    %cst_48 = arith.constant dense<0xFF800000> : vector<8xf32>
    %114 = vector.multi_reduction <maximumf>, %113, %cst_48 [1] : vector<8x8xf32> to vector<8xf32>
    %115 = vector.shape_cast %114 : vector<8xf32> to vector<8x1xf32>
    %116 = vector.broadcast %115 : vector<8x1xf32> to vector<8x8xf32>
    %117 = arith.subf %113, %116 : vector<8x8xf32>
    %118 = math.exp %117 : vector<8x8xf32>
    %cst_49 = arith.constant dense<0.000000e+00> : vector<8xf32>
    %119 = vector.multi_reduction <add>, %118, %cst_49 [1] : vector<8x8xf32> to vector<8xf32>
    %120 = vector.shape_cast %119 : vector<8xf32> to vector<8x1xf32>
    %121 = tpu.reciprocal %120 {approx = true} : vector<8x1xf32> -> vector<8x1xf32>
    %122 = vector.broadcast %121 : vector<8x1xf32> to vector<8x8xf32>
    %123 = arith.mulf %118, %122 : vector<8x8xf32>
    %124 = arith.truncf %123 : vector<8x8xf32> to vector<8x8xbf16>
    %125 = arith.truncf %108 : vector<8x8xf32> to vector<8x8xbf16>
    %cst_50 = arith.constant dense<0.000000e+00> : vector<8x8xf32>
    %126 = tpu.matmul %124, %125, %cst_50 {dimension_numbers = #tpu.dot_dimension_numbers<[1], [0], [0], [1], [0, 0, 1, 1], [], []>} : vector<8x8xbf16>, vector<8x8xbf16>, vector<8x8xf32> -> vector<8x8xf32>
    %c0_51 = arith.constant 0 : index
    %c0_52 = arith.constant 0 : index
    %c0_53 = arith.constant 0 : index
    %c0_54 = arith.constant 0 : index
    %127 = vector.load %arg10[%c0_51, %c0_52, %c0_53, %c0_54] : memref<1x4x8x32xbf16, #tpu.memory_space<vmem>>, vector<1x1x8x32xbf16>
    %128 = vector.shape_cast %127 : vector<1x1x8x32xbf16> to vector<8x32xbf16>
    %129 = arith.truncf %126 : vector<8x8xf32> to vector<8x8xbf16>
    %cst_55 = arith.constant dense<0.000000e+00> : vector<8x32xf32>
    %130 = tpu.matmul %129, %128, %cst_55 {dimension_numbers = #tpu.dot_dimension_numbers<[1], [0], [0], [1], [0, 0, 1, 1], [], []>} : vector<8x8xbf16>, vector<8x32xbf16>, vector<8x32xf32> -> vector<8x32xf32>
    %131 = arith.addf %87, %130 : vector<8x32xf32>
    %c0_56 = arith.constant 0 : index
    %c1 = arith.constant 1 : index
    %c0_57 = arith.constant 0 : index
    %c0_58 = arith.constant 0 : index
    %132 = vector.load %arg7[%c0_56, %c1, %c0_57, %c0_58] : memref<1x4x32x8xbf16, #tpu.memory_space<vmem>>, vector<1x1x32x8xbf16>
    %133 = vector.shape_cast %132 : vector<1x1x32x8xbf16> to vector<32x8xbf16>
    %134 = arith.truncf %83 : vector<8x32xf32> to vector<8x32xbf16>
    %cst_59 = arith.constant dense<0.000000e+00> : vector<8x8xf32>
    %135 = tpu.matmul %134, %133, %cst_59 {dimension_numbers = #tpu.dot_dimension_numbers<[1], [0], [0], [1], [0, 0, 1, 1], [], []>} : vector<8x32xbf16>, vector<32x8xbf16>, vector<8x8xf32> -> vector<8x8xf32>
    %136 = vector.extract_strided_slice %84 {offsets = [0, 8], sizes = [1, 8], strides = [1, 1]} : vector<1x32xf32> to vector<1x8xf32>
    %137 = vector.broadcast %136 : vector<1x8xf32> to vector<8x8xf32>
    %138 = arith.addf %135, %137 : vector<8x8xf32>
    %c0_60 = arith.constant 0 : index
    %c1_61 = arith.constant 1 : index
    %c0_62 = arith.constant 0 : index
    %c0_63 = arith.constant 0 : index
    %139 = vector.load %arg8[%c0_60, %c1_61, %c0_62, %c0_63] : memref<1x4x32x8xbf16, #tpu.memory_space<vmem>>, vector<1x1x32x8xbf16>
    %140 = vector.shape_cast %139 : vector<1x1x32x8xbf16> to vector<32x8xbf16>
    %141 = arith.truncf %83 : vector<8x32xf32> to vector<8x32xbf16>
    %cst_64 = arith.constant dense<0.000000e+00> : vector<8x8xf32>
    %142 = tpu.matmul %141, %140, %cst_64 {dimension_numbers = #tpu.dot_dimension_numbers<[1], [0], [0], [1], [0, 0, 1, 1], [], []>} : vector<8x32xbf16>, vector<32x8xbf16>, vector<8x8xf32> -> vector<8x8xf32>
    %143 = vector.extract_strided_slice %85 {offsets = [0, 8], sizes = [1, 8], strides = [1, 1]} : vector<1x32xf32> to vector<1x8xf32>
    %144 = vector.broadcast %143 : vector<1x8xf32> to vector<8x8xf32>
    %145 = arith.addf %142, %144 : vector<8x8xf32>
    %c0_65 = arith.constant 0 : index
    %c1_66 = arith.constant 1 : index
    %c0_67 = arith.constant 0 : index
    %c0_68 = arith.constant 0 : index
    %146 = vector.load %arg9[%c0_65, %c1_66, %c0_67, %c0_68] : memref<1x4x32x8xbf16, #tpu.memory_space<vmem>>, vector<1x1x32x8xbf16>
    %147 = vector.shape_cast %146 : vector<1x1x32x8xbf16> to vector<32x8xbf16>
    %148 = arith.truncf %83 : vector<8x32xf32> to vector<8x32xbf16>
    %cst_69 = arith.constant dense<0.000000e+00> : vector<8x8xf32>
    %149 = tpu.matmul %148, %147, %cst_69 {dimension_numbers = #tpu.dot_dimension_numbers<[1], [0], [0], [1], [0, 0, 1, 1], [], []>} : vector<8x32xbf16>, vector<32x8xbf16>, vector<8x8xf32> -> vector<8x8xf32>
    %150 = vector.extract_strided_slice %86 {offsets = [0, 8], sizes = [1, 8], strides = [1, 1]} : vector<1x32xf32> to vector<1x8xf32>
    %151 = vector.broadcast %150 : vector<1x8xf32> to vector<8x8xf32>
    %152 = arith.addf %149, %151 : vector<8x8xf32>
    %153 = arith.truncf %138 : vector<8x8xf32> to vector<8x8xbf16>
    %154 = arith.truncf %145 : vector<8x8xf32> to vector<8x8xbf16>
    %cst_70 = arith.constant dense<0.000000e+00> : vector<8x8xf32>
    %155 = tpu.matmul %153, %154, %cst_70 {dimension_numbers = #tpu.dot_dimension_numbers<[1], [1], [0], [0], [0, 0, 1, 0], [], []>} : vector<8x8xbf16>, vector<8x8xbf16>, vector<8x8xf32> -> vector<8x8xf32>
    %156 = vector.broadcast %16 : vector<1x8xf32> to vector<8x8xf32>
    %157 = arith.addf %155, %156 : vector<8x8xf32>
    %cst_71 = arith.constant dense<0xFF800000> : vector<8xf32>
    %158 = vector.multi_reduction <maximumf>, %157, %cst_71 [1] : vector<8x8xf32> to vector<8xf32>
    %159 = vector.shape_cast %158 : vector<8xf32> to vector<8x1xf32>
    %160 = vector.broadcast %159 : vector<8x1xf32> to vector<8x8xf32>
    %161 = arith.subf %157, %160 : vector<8x8xf32>
    %162 = math.exp %161 : vector<8x8xf32>
    %cst_72 = arith.constant dense<0.000000e+00> : vector<8xf32>
    %163 = vector.multi_reduction <add>, %162, %cst_72 [1] : vector<8x8xf32> to vector<8xf32>
    %164 = vector.shape_cast %163 : vector<8xf32> to vector<8x1xf32>
    %165 = tpu.reciprocal %164 {approx = true} : vector<8x1xf32> -> vector<8x1xf32>
    %166 = vector.broadcast %165 : vector<8x1xf32> to vector<8x8xf32>
    %167 = arith.mulf %162, %166 : vector<8x8xf32>
    %168 = arith.truncf %167 : vector<8x8xf32> to vector<8x8xbf16>
    %169 = arith.truncf %152 : vector<8x8xf32> to vector<8x8xbf16>
    %cst_73 = arith.constant dense<0.000000e+00> : vector<8x8xf32>
    %170 = tpu.matmul %168, %169, %cst_73 {dimension_numbers = #tpu.dot_dimension_numbers<[1], [0], [0], [1], [0, 0, 1, 1], [], []>} : vector<8x8xbf16>, vector<8x8xbf16>, vector<8x8xf32> -> vector<8x8xf32>
    %c0_74 = arith.constant 0 : index
    %c1_75 = arith.constant 1 : index
    %c0_76 = arith.constant 0 : index
    %c0_77 = arith.constant 0 : index
    %171 = vector.load %arg10[%c0_74, %c1_75, %c0_76, %c0_77] : memref<1x4x8x32xbf16, #tpu.memory_space<vmem>>, vector<1x1x8x32xbf16>
    %172 = vector.shape_cast %171 : vector<1x1x8x32xbf16> to vector<8x32xbf16>
    %173 = arith.truncf %170 : vector<8x8xf32> to vector<8x8xbf16>
    %cst_78 = arith.constant dense<0.000000e+00> : vector<8x32xf32>
    %174 = tpu.matmul %173, %172, %cst_78 {dimension_numbers = #tpu.dot_dimension_numbers<[1], [0], [0], [1], [0, 0, 1, 1], [], []>} : vector<8x8xbf16>, vector<8x32xbf16>, vector<8x32xf32> -> vector<8x32xf32>
    %175 = arith.addf %131, %174 : vector<8x32xf32>
    %c0_79 = arith.constant 0 : index
    %c2 = arith.constant 2 : index
    %c0_80 = arith.constant 0 : index
    %c0_81 = arith.constant 0 : index
    %176 = vector.load %arg7[%c0_79, %c2, %c0_80, %c0_81] : memref<1x4x32x8xbf16, #tpu.memory_space<vmem>>, vector<1x1x32x8xbf16>
    %177 = vector.shape_cast %176 : vector<1x1x32x8xbf16> to vector<32x8xbf16>
    %178 = arith.truncf %83 : vector<8x32xf32> to vector<8x32xbf16>
    %cst_82 = arith.constant dense<0.000000e+00> : vector<8x8xf32>
    %179 = tpu.matmul %178, %177, %cst_82 {dimension_numbers = #tpu.dot_dimension_numbers<[1], [0], [0], [1], [0, 0, 1, 1], [], []>} : vector<8x32xbf16>, vector<32x8xbf16>, vector<8x8xf32> -> vector<8x8xf32>
    %180 = vector.extract_strided_slice %84 {offsets = [0, 16], sizes = [1, 8], strides = [1, 1]} : vector<1x32xf32> to vector<1x8xf32>
    %181 = vector.broadcast %180 : vector<1x8xf32> to vector<8x8xf32>
    %182 = arith.addf %179, %181 : vector<8x8xf32>
    %c0_83 = arith.constant 0 : index
    %c2_84 = arith.constant 2 : index
    %c0_85 = arith.constant 0 : index
    %c0_86 = arith.constant 0 : index
    %183 = vector.load %arg8[%c0_83, %c2_84, %c0_85, %c0_86] : memref<1x4x32x8xbf16, #tpu.memory_space<vmem>>, vector<1x1x32x8xbf16>
    %184 = vector.shape_cast %183 : vector<1x1x32x8xbf16> to vector<32x8xbf16>
    %185 = arith.truncf %83 : vector<8x32xf32> to vector<8x32xbf16>
    %cst_87 = arith.constant dense<0.000000e+00> : vector<8x8xf32>
    %186 = tpu.matmul %185, %184, %cst_87 {dimension_numbers = #tpu.dot_dimension_numbers<[1], [0], [0], [1], [0, 0, 1, 1], [], []>} : vector<8x32xbf16>, vector<32x8xbf16>, vector<8x8xf32> -> vector<8x8xf32>
    %187 = vector.extract_strided_slice %85 {offsets = [0, 16], sizes = [1, 8], strides = [1, 1]} : vector<1x32xf32> to vector<1x8xf32>
    %188 = vector.broadcast %187 : vector<1x8xf32> to vector<8x8xf32>
    %189 = arith.addf %186, %188 : vector<8x8xf32>
    %c0_88 = arith.constant 0 : index
    %c2_89 = arith.constant 2 : index
    %c0_90 = arith.constant 0 : index
    %c0_91 = arith.constant 0 : index
    %190 = vector.load %arg9[%c0_88, %c2_89, %c0_90, %c0_91] : memref<1x4x32x8xbf16, #tpu.memory_space<vmem>>, vector<1x1x32x8xbf16>
    %191 = vector.shape_cast %190 : vector<1x1x32x8xbf16> to vector<32x8xbf16>
    %192 = arith.truncf %83 : vector<8x32xf32> to vector<8x32xbf16>
    %cst_92 = arith.constant dense<0.000000e+00> : vector<8x8xf32>
    %193 = tpu.matmul %192, %191, %cst_92 {dimension_numbers = #tpu.dot_dimension_numbers<[1], [0], [0], [1], [0, 0, 1, 1], [], []>} : vector<8x32xbf16>, vector<32x8xbf16>, vector<8x8xf32> -> vector<8x8xf32>
    %194 = vector.extract_strided_slice %86 {offsets = [0, 16], sizes = [1, 8], strides = [1, 1]} : vector<1x32xf32> to vector<1x8xf32>
    %195 = vector.broadcast %194 : vector<1x8xf32> to vector<8x8xf32>
    %196 = arith.addf %193, %195 : vector<8x8xf32>
    %197 = arith.truncf %182 : vector<8x8xf32> to vector<8x8xbf16>
    %198 = arith.truncf %189 : vector<8x8xf32> to vector<8x8xbf16>
    %cst_93 = arith.constant dense<0.000000e+00> : vector<8x8xf32>
    %199 = tpu.matmul %197, %198, %cst_93 {dimension_numbers = #tpu.dot_dimension_numbers<[1], [1], [0], [0], [0, 0, 1, 0], [], []>} : vector<8x8xbf16>, vector<8x8xbf16>, vector<8x8xf32> -> vector<8x8xf32>
    %200 = vector.broadcast %16 : vector<1x8xf32> to vector<8x8xf32>
    %201 = arith.addf %199, %200 : vector<8x8xf32>
    %cst_94 = arith.constant dense<0xFF800000> : vector<8xf32>
    %202 = vector.multi_reduction <maximumf>, %201, %cst_94 [1] : vector<8x8xf32> to vector<8xf32>
    %203 = vector.shape_cast %202 : vector<8xf32> to vector<8x1xf32>
    %204 = vector.broadcast %203 : vector<8x1xf32> to vector<8x8xf32>
    %205 = arith.subf %201, %204 : vector<8x8xf32>
    %206 = math.exp %205 : vector<8x8xf32>
    %cst_95 = arith.constant dense<0.000000e+00> : vector<8xf32>
    %207 = vector.multi_reduction <add>, %206, %cst_95 [1] : vector<8x8xf32> to vector<8xf32>
    %208 = vector.shape_cast %207 : vector<8xf32> to vector<8x1xf32>
    %209 = tpu.reciprocal %208 {approx = true} : vector<8x1xf32> -> vector<8x1xf32>
    %210 = vector.broadcast %209 : vector<8x1xf32> to vector<8x8xf32>
    %211 = arith.mulf %206, %210 : vector<8x8xf32>
    %212 = arith.truncf %211 : vector<8x8xf32> to vector<8x8xbf16>
    %213 = arith.truncf %196 : vector<8x8xf32> to vector<8x8xbf16>
    %cst_96 = arith.constant dense<0.000000e+00> : vector<8x8xf32>
    %214 = tpu.matmul %212, %213, %cst_96 {dimension_numbers = #tpu.dot_dimension_numbers<[1], [0], [0], [1], [0, 0, 1, 1], [], []>} : vector<8x8xbf16>, vector<8x8xbf16>, vector<8x8xf32> -> vector<8x8xf32>
    %c0_97 = arith.constant 0 : index
    %c2_98 = arith.constant 2 : index
    %c0_99 = arith.constant 0 : index
    %c0_100 = arith.constant 0 : index
    %215 = vector.load %arg10[%c0_97, %c2_98, %c0_99, %c0_100] : memref<1x4x8x32xbf16, #tpu.memory_space<vmem>>, vector<1x1x8x32xbf16>
    %216 = vector.shape_cast %215 : vector<1x1x8x32xbf16> to vector<8x32xbf16>
    %217 = arith.truncf %214 : vector<8x8xf32> to vector<8x8xbf16>
    %cst_101 = arith.constant dense<0.000000e+00> : vector<8x32xf32>
    %218 = tpu.matmul %217, %216, %cst_101 {dimension_numbers = #tpu.dot_dimension_numbers<[1], [0], [0], [1], [0, 0, 1, 1], [], []>} : vector<8x8xbf16>, vector<8x32xbf16>, vector<8x32xf32> -> vector<8x32xf32>
    %219 = arith.addf %175, %218 : vector<8x32xf32>
    %c0_102 = arith.constant 0 : index
    %c3 = arith.constant 3 : index
    %c0_103 = arith.constant 0 : index
    %c0_104 = arith.constant 0 : index
    %220 = vector.load %arg7[%c0_102, %c3, %c0_103, %c0_104] : memref<1x4x32x8xbf16, #tpu.memory_space<vmem>>, vector<1x1x32x8xbf16>
    %221 = vector.shape_cast %220 : vector<1x1x32x8xbf16> to vector<32x8xbf16>
    %222 = arith.truncf %83 : vector<8x32xf32> to vector<8x32xbf16>
    %cst_105 = arith.constant dense<0.000000e+00> : vector<8x8xf32>
    %223 = tpu.matmul %222, %221, %cst_105 {dimension_numbers = #tpu.dot_dimension_numbers<[1], [0], [0], [1], [0, 0, 1, 1], [], []>} : vector<8x32xbf16>, vector<32x8xbf16>, vector<8x8xf32> -> vector<8x8xf32>
    %224 = vector.extract_strided_slice %84 {offsets = [0, 24], sizes = [1, 8], strides = [1, 1]} : vector<1x32xf32> to vector<1x8xf32>
    %225 = vector.broadcast %224 : vector<1x8xf32> to vector<8x8xf32>
    %226 = arith.addf %223, %225 : vector<8x8xf32>
    %c0_106 = arith.constant 0 : index
    %c3_107 = arith.constant 3 : index
    %c0_108 = arith.constant 0 : index
    %c0_109 = arith.constant 0 : index
    %227 = vector.load %arg8[%c0_106, %c3_107, %c0_108, %c0_109] : memref<1x4x32x8xbf16, #tpu.memory_space<vmem>>, vector<1x1x32x8xbf16>
    %228 = vector.shape_cast %227 : vector<1x1x32x8xbf16> to vector<32x8xbf16>
    %229 = arith.truncf %83 : vector<8x32xf32> to vector<8x32xbf16>
    %cst_110 = arith.constant dense<0.000000e+00> : vector<8x8xf32>
    %230 = tpu.matmul %229, %228, %cst_110 {dimension_numbers = #tpu.dot_dimension_numbers<[1], [0], [0], [1], [0, 0, 1, 1], [], []>} : vector<8x32xbf16>, vector<32x8xbf16>, vector<8x8xf32> -> vector<8x8xf32>
    %231 = vector.extract_strided_slice %85 {offsets = [0, 24], sizes = [1, 8], strides = [1, 1]} : vector<1x32xf32> to vector<1x8xf32>
    %232 = vector.broadcast %231 : vector<1x8xf32> to vector<8x8xf32>
    %233 = arith.addf %230, %232 : vector<8x8xf32>
    %c0_111 = arith.constant 0 : index
    %c3_112 = arith.constant 3 : index
    %c0_113 = arith.constant 0 : index
    %c0_114 = arith.constant 0 : index
    %234 = vector.load %arg9[%c0_111, %c3_112, %c0_113, %c0_114] : memref<1x4x32x8xbf16, #tpu.memory_space<vmem>>, vector<1x1x32x8xbf16>
    %235 = vector.shape_cast %234 : vector<1x1x32x8xbf16> to vector<32x8xbf16>
    %236 = arith.truncf %83 : vector<8x32xf32> to vector<8x32xbf16>
    %cst_115 = arith.constant dense<0.000000e+00> : vector<8x8xf32>
    %237 = tpu.matmul %236, %235, %cst_115 {dimension_numbers = #tpu.dot_dimension_numbers<[1], [0], [0], [1], [0, 0, 1, 1], [], []>} : vector<8x32xbf16>, vector<32x8xbf16>, vector<8x8xf32> -> vector<8x8xf32>
    %238 = vector.extract_strided_slice %86 {offsets = [0, 24], sizes = [1, 8], strides = [1, 1]} : vector<1x32xf32> to vector<1x8xf32>
    %239 = vector.broadcast %238 : vector<1x8xf32> to vector<8x8xf32>
    %240 = arith.addf %237, %239 : vector<8x8xf32>
    %241 = arith.truncf %226 : vector<8x8xf32> to vector<8x8xbf16>
    %242 = arith.truncf %233 : vector<8x8xf32> to vector<8x8xbf16>
    %cst_116 = arith.constant dense<0.000000e+00> : vector<8x8xf32>
    %243 = tpu.matmul %241, %242, %cst_116 {dimension_numbers = #tpu.dot_dimension_numbers<[1], [1], [0], [0], [0, 0, 1, 0], [], []>} : vector<8x8xbf16>, vector<8x8xbf16>, vector<8x8xf32> -> vector<8x8xf32>
    %244 = vector.broadcast %16 : vector<1x8xf32> to vector<8x8xf32>
    %245 = arith.addf %243, %244 : vector<8x8xf32>
    %cst_117 = arith.constant dense<0xFF800000> : vector<8xf32>
    %246 = vector.multi_reduction <maximumf>, %245, %cst_117 [1] : vector<8x8xf32> to vector<8xf32>
    %247 = vector.shape_cast %246 : vector<8xf32> to vector<8x1xf32>
    %248 = vector.broadcast %247 : vector<8x1xf32> to vector<8x8xf32>
    %249 = arith.subf %245, %248 : vector<8x8xf32>
    %250 = math.exp %249 : vector<8x8xf32>
    %cst_118 = arith.constant dense<0.000000e+00> : vector<8xf32>
    %251 = vector.multi_reduction <add>, %250, %cst_118 [1] : vector<8x8xf32> to vector<8xf32>
    %252 = vector.shape_cast %251 : vector<8xf32> to vector<8x1xf32>
    %253 = tpu.reciprocal %252 {approx = true} : vector<8x1xf32> -> vector<8x1xf32>
    %254 = vector.broadcast %253 : vector<8x1xf32> to vector<8x8xf32>
    %255 = arith.mulf %250, %254 : vector<8x8xf32>
    %256 = arith.truncf %255 : vector<8x8xf32> to vector<8x8xbf16>
    %257 = arith.truncf %240 : vector<8x8xf32> to vector<8x8xbf16>
    %cst_119 = arith.constant dense<0.000000e+00> : vector<8x8xf32>
    %258 = tpu.matmul %256, %257, %cst_119 {dimension_numbers = #tpu.dot_dimension_numbers<[1], [0], [0], [1], [0, 0, 1, 1], [], []>} : vector<8x8xbf16>, vector<8x8xbf16>, vector<8x8xf32> -> vector<8x8xf32>
    %c0_120 = arith.constant 0 : index
    %c3_121 = arith.constant 3 : index
    %c0_122 = arith.constant 0 : index
    %c0_123 = arith.constant 0 : index
    %259 = vector.load %arg10[%c0_120, %c3_121, %c0_122, %c0_123] : memref<1x4x8x32xbf16, #tpu.memory_space<vmem>>, vector<1x1x8x32xbf16>
    %260 = vector.shape_cast %259 : vector<1x1x8x32xbf16> to vector<8x32xbf16>
    %261 = arith.truncf %258 : vector<8x8xf32> to vector<8x8xbf16>
    %cst_124 = arith.constant dense<0.000000e+00> : vector<8x32xf32>
    %262 = tpu.matmul %261, %260, %cst_124 {dimension_numbers = #tpu.dot_dimension_numbers<[1], [0], [0], [1], [0, 0, 1, 1], [], []>} : vector<8x8xbf16>, vector<8x32xbf16>, vector<8x32xf32> -> vector<8x32xf32>
    %263 = arith.addf %219, %262 : vector<8x32xf32>
    %264 = arith.addf %61, %263 : vector<8x32xf32>
    %265 = vector.extract_strided_slice %1 {offsets = [8, 0], sizes = [1, 32], strides = [1, 1]} : vector<29x32xf32> to vector<1x32xf32>
    %266 = vector.broadcast %265 : vector<1x32xf32> to vector<8x32xf32>
    %267 = arith.addf %264, %266 : vector<8x32xf32>
    %268 = vector.extract_strided_slice %1 {offsets = [9, 0], sizes = [1, 32], strides = [1, 1]} : vector<29x32xf32> to vector<1x32xf32>
    %269 = vector.extract_strided_slice %1 {offsets = [10, 0], sizes = [1, 32], strides = [1, 1]} : vector<29x32xf32> to vector<1x32xf32>
    %cst_125 = arith.constant dense<0.000000e+00> : vector<8xf32>
    %270 = vector.multi_reduction <add>, %267, %cst_125 [1] : vector<8x32xf32> to vector<8xf32>
    %271 = vector.shape_cast %270 : vector<8xf32> to vector<8x1xf32>
    %cst_126 = arith.constant 3.200000e+01 : f32
    %272 = vector.broadcast %cst_126 : f32 to vector<8x1xf32>
    %273 = arith.divf %271, %272 : vector<8x1xf32>
    %274 = vector.broadcast %273 : vector<8x1xf32> to vector<8x32xf32>
    %275 = arith.subf %267, %274 : vector<8x32xf32>
    %276 = arith.mulf %275, %275 : vector<8x32xf32>
    %cst_127 = arith.constant dense<0.000000e+00> : vector<8xf32>
    %277 = vector.multi_reduction <add>, %276, %cst_127 [1] : vector<8x32xf32> to vector<8xf32>
    %278 = vector.shape_cast %277 : vector<8xf32> to vector<8x1xf32>
    %cst_128 = arith.constant 3.200000e+01 : f32
    %279 = vector.broadcast %cst_128 : f32 to vector<8x1xf32>
    %280 = arith.divf %278, %279 : vector<8x1xf32>
    %cst_129 = arith.constant 9.99999974E-6 : f32
    %281 = vector.broadcast %cst_129 : f32 to vector<8x1xf32>
    %282 = arith.addf %280, %281 : vector<8x1xf32>
    %283 = math.rsqrt %282 : vector<8x1xf32>
    %284 = vector.broadcast %283 : vector<8x1xf32> to vector<8x32xf32>
    %285 = arith.mulf %275, %284 : vector<8x32xf32>
    %286 = vector.broadcast %268 : vector<1x32xf32> to vector<8x32xf32>
    %287 = arith.mulf %285, %286 : vector<8x32xf32>
    %288 = vector.broadcast %269 : vector<1x32xf32> to vector<8x32xf32>
    %289 = arith.addf %287, %288 : vector<8x32xf32>
    %c0_130 = arith.constant 0 : index
    %c0_131 = arith.constant 0 : index
    %c0_132 = arith.constant 0 : index
    %290 = vector.load %arg15[%c0_130, %c0_131, %c0_132] : memref<1x32x32xbf16, #tpu.memory_space<vmem>>, vector<1x32x32xbf16>
    %291 = vector.shape_cast %290 : vector<1x32x32xbf16> to vector<32x32xbf16>
    %292 = arith.truncf %289 : vector<8x32xf32> to vector<8x32xbf16>
    %cst_133 = arith.constant dense<0.000000e+00> : vector<8x32xf32>
    %293 = tpu.matmul %292, %291, %cst_133 {dimension_numbers = #tpu.dot_dimension_numbers<[1], [0], [0], [1], [0, 0, 1, 1], [], []>} : vector<8x32xbf16>, vector<32x32xbf16>, vector<8x32xf32> -> vector<8x32xf32>
    %294 = vector.extract_strided_slice %1 {offsets = [11, 0], sizes = [1, 32], strides = [1, 1]} : vector<29x32xf32> to vector<1x32xf32>
    %295 = vector.broadcast %294 : vector<1x32xf32> to vector<8x32xf32>
    %296 = arith.addf %293, %295 : vector<8x32xf32>
    %c0_134 = arith.constant 0 : index
    %c0_135 = arith.constant 0 : index
    %c0_136 = arith.constant 0 : index
    %297 = vector.load %arg16[%c0_134, %c0_135, %c0_136] : memref<1x32x32xbf16, #tpu.memory_space<vmem>>, vector<1x32x32xbf16>
    %298 = vector.shape_cast %297 : vector<1x32x32xbf16> to vector<32x32xbf16>
    %299 = arith.truncf %289 : vector<8x32xf32> to vector<8x32xbf16>
    %cst_137 = arith.constant dense<0.000000e+00> : vector<8x32xf32>
    %300 = tpu.matmul %299, %298, %cst_137 {dimension_numbers = #tpu.dot_dimension_numbers<[1], [0], [0], [1], [0, 0, 1, 1], [], []>} : vector<8x32xbf16>, vector<32x32xbf16>, vector<8x32xf32> -> vector<8x32xf32>
    %301 = vector.extract_strided_slice %1 {offsets = [12, 0], sizes = [1, 32], strides = [1, 1]} : vector<29x32xf32> to vector<1x32xf32>
    %302 = vector.broadcast %301 : vector<1x32xf32> to vector<8x32xf32>
    %303 = arith.addf %300, %302 : vector<8x32xf32>
    %304 = arith.negf %303 : vector<8x32xf32>
    %305 = math.exp %304 : vector<8x32xf32>
    %cst_138 = arith.constant 1.000000e+00 : f32
    %306 = vector.broadcast %cst_138 : f32 to vector<8x32xf32>
    %307 = arith.addf %306, %305 : vector<8x32xf32>
    %308 = arith.divf %306, %307 : vector<8x32xf32>
    %309 = arith.mulf %296, %308 : vector<8x32xf32>
    %310 = tpu.iota {dimensions = array<i32: 0>} : vector<8x1xi32>
    %cst_139 = arith.constant 0.000000e+00 : f32
    %311 = vector.broadcast %cst_139 : f32 to vector<8x32xf32>
    %c3_i32 = arith.constant 3 : i32
    %312 = tpu.dynamic_rotate %309 by %c3_i32 dim 0 : vector<8x32xf32>, i32 -> vector<8x32xf32>
    %c-3_i32 = arith.constant -3 : i32
    %313 = vector.broadcast %c-3_i32 : i32 to vector<8x1xi32>
    %314 = arith.addi %310, %313 : vector<8x1xi32>
    %c0_i32_140 = arith.constant 0 : i32
    %315 = vector.broadcast %c0_i32_140 : i32 to vector<8x1xi32>
    %316 = arith.cmpi sge, %314, %315 : vector<8x1xi32>
    %c-3_i32_141 = arith.constant -3 : i32
    %317 = vector.broadcast %c-3_i32_141 : i32 to vector<8x1xi32>
    %318 = arith.addi %310, %317 : vector<8x1xi32>
    %c8_i32 = arith.constant 8 : i32
    %319 = vector.broadcast %c8_i32 : i32 to vector<8x1xi32>
    %320 = arith.cmpi slt, %318, %319 : vector<8x1xi32>
    %321 = arith.andi %316, %320 : vector<8x1xi1>
    %322 = arith.extui %321 : vector<8x1xi1> to vector<8x1xi32>
    %323 = arith.sitofp %322 : vector<8x1xi32> to vector<8x1xf32>
    %324 = vector.broadcast %323 : vector<8x1xf32> to vector<8x32xf32>
    %325 = arith.mulf %312, %324 : vector<8x32xf32>
    %326 = vector.extract_strided_slice %1 {offsets = [22, 0], sizes = [1, 32], strides = [1, 1]} : vector<29x32xf32> to vector<1x32xf32>
    %327 = vector.broadcast %326 : vector<1x32xf32> to vector<8x32xf32>
    %328 = arith.mulf %325, %327 : vector<8x32xf32>
    %329 = arith.addf %311, %328 : vector<8x32xf32>
    %c2_i32 = arith.constant 2 : i32
    %330 = tpu.dynamic_rotate %309 by %c2_i32 dim 0 : vector<8x32xf32>, i32 -> vector<8x32xf32>
    %c-2_i32 = arith.constant -2 : i32
    %331 = vector.broadcast %c-2_i32 : i32 to vector<8x1xi32>
    %332 = arith.addi %310, %331 : vector<8x1xi32>
    %c0_i32_142 = arith.constant 0 : i32
    %333 = vector.broadcast %c0_i32_142 : i32 to vector<8x1xi32>
    %334 = arith.cmpi sge, %332, %333 : vector<8x1xi32>
    %c-2_i32_143 = arith.constant -2 : i32
    %335 = vector.broadcast %c-2_i32_143 : i32 to vector<8x1xi32>
    %336 = arith.addi %310, %335 : vector<8x1xi32>
    %c8_i32_144 = arith.constant 8 : i32
    %337 = vector.broadcast %c8_i32_144 : i32 to vector<8x1xi32>
    %338 = arith.cmpi slt, %336, %337 : vector<8x1xi32>
    %339 = arith.andi %334, %338 : vector<8x1xi1>
    %340 = arith.extui %339 : vector<8x1xi1> to vector<8x1xi32>
    %341 = arith.sitofp %340 : vector<8x1xi32> to vector<8x1xf32>
    %342 = vector.broadcast %341 : vector<8x1xf32> to vector<8x32xf32>
    %343 = arith.mulf %330, %342 : vector<8x32xf32>
    %344 = vector.extract_strided_slice %1 {offsets = [23, 0], sizes = [1, 32], strides = [1, 1]} : vector<29x32xf32> to vector<1x32xf32>
    %345 = vector.broadcast %344 : vector<1x32xf32> to vector<8x32xf32>
    %346 = arith.mulf %343, %345 : vector<8x32xf32>
    %347 = arith.addf %329, %346 : vector<8x32xf32>
    %c1_i32 = arith.constant 1 : i32
    %348 = tpu.dynamic_rotate %309 by %c1_i32 dim 0 : vector<8x32xf32>, i32 -> vector<8x32xf32>
    %c-1_i32 = arith.constant -1 : i32
    %349 = vector.broadcast %c-1_i32 : i32 to vector<8x1xi32>
    %350 = arith.addi %310, %349 : vector<8x1xi32>
    %c0_i32_145 = arith.constant 0 : i32
    %351 = vector.broadcast %c0_i32_145 : i32 to vector<8x1xi32>
    %352 = arith.cmpi sge, %350, %351 : vector<8x1xi32>
    %c-1_i32_146 = arith.constant -1 : i32
    %353 = vector.broadcast %c-1_i32_146 : i32 to vector<8x1xi32>
    %354 = arith.addi %310, %353 : vector<8x1xi32>
    %c8_i32_147 = arith.constant 8 : i32
    %355 = vector.broadcast %c8_i32_147 : i32 to vector<8x1xi32>
    %356 = arith.cmpi slt, %354, %355 : vector<8x1xi32>
    %357 = arith.andi %352, %356 : vector<8x1xi1>
    %358 = arith.extui %357 : vector<8x1xi1> to vector<8x1xi32>
    %359 = arith.sitofp %358 : vector<8x1xi32> to vector<8x1xf32>
    %360 = vector.broadcast %359 : vector<8x1xf32> to vector<8x32xf32>
    %361 = arith.mulf %348, %360 : vector<8x32xf32>
    %362 = vector.extract_strided_slice %1 {offsets = [24, 0], sizes = [1, 32], strides = [1, 1]} : vector<29x32xf32> to vector<1x32xf32>
    %363 = vector.broadcast %362 : vector<1x32xf32> to vector<8x32xf32>
    %364 = arith.mulf %361, %363 : vector<8x32xf32>
    %365 = arith.addf %347, %364 : vector<8x32xf32>
    %c0_i32_148 = arith.constant 0 : i32
    %366 = vector.broadcast %c0_i32_148 : i32 to vector<8x1xi32>
    %367 = arith.addi %310, %366 : vector<8x1xi32>
    %c0_i32_149 = arith.constant 0 : i32
    %368 = vector.broadcast %c0_i32_149 : i32 to vector<8x1xi32>
    %369 = arith.cmpi sge, %367, %368 : vector<8x1xi32>
    %c0_i32_150 = arith.constant 0 : i32
    %370 = vector.broadcast %c0_i32_150 : i32 to vector<8x1xi32>
    %371 = arith.addi %310, %370 : vector<8x1xi32>
    %c8_i32_151 = arith.constant 8 : i32
    %372 = vector.broadcast %c8_i32_151 : i32 to vector<8x1xi32>
    %373 = arith.cmpi slt, %371, %372 : vector<8x1xi32>
    %374 = arith.andi %369, %373 : vector<8x1xi1>
    %375 = arith.extui %374 : vector<8x1xi1> to vector<8x1xi32>
    %376 = arith.sitofp %375 : vector<8x1xi32> to vector<8x1xf32>
    %377 = vector.broadcast %376 : vector<8x1xf32> to vector<8x32xf32>
    %378 = arith.mulf %309, %377 : vector<8x32xf32>
    %379 = vector.extract_strided_slice %1 {offsets = [25, 0], sizes = [1, 32], strides = [1, 1]} : vector<29x32xf32> to vector<1x32xf32>
    %380 = vector.broadcast %379 : vector<1x32xf32> to vector<8x32xf32>
    %381 = arith.mulf %378, %380 : vector<8x32xf32>
    %382 = arith.addf %365, %381 : vector<8x32xf32>
    %c7_i32 = arith.constant 7 : i32
    %383 = tpu.dynamic_rotate %309 by %c7_i32 dim 0 : vector<8x32xf32>, i32 -> vector<8x32xf32>
    %c1_i32_152 = arith.constant 1 : i32
    %384 = vector.broadcast %c1_i32_152 : i32 to vector<8x1xi32>
    %385 = arith.addi %310, %384 : vector<8x1xi32>
    %c0_i32_153 = arith.constant 0 : i32
    %386 = vector.broadcast %c0_i32_153 : i32 to vector<8x1xi32>
    %387 = arith.cmpi sge, %385, %386 : vector<8x1xi32>
    %c1_i32_154 = arith.constant 1 : i32
    %388 = vector.broadcast %c1_i32_154 : i32 to vector<8x1xi32>
    %389 = arith.addi %310, %388 : vector<8x1xi32>
    %c8_i32_155 = arith.constant 8 : i32
    %390 = vector.broadcast %c8_i32_155 : i32 to vector<8x1xi32>
    %391 = arith.cmpi slt, %389, %390 : vector<8x1xi32>
    %392 = arith.andi %387, %391 : vector<8x1xi1>
    %393 = arith.extui %392 : vector<8x1xi1> to vector<8x1xi32>
    %394 = arith.sitofp %393 : vector<8x1xi32> to vector<8x1xf32>
    %395 = vector.broadcast %394 : vector<8x1xf32> to vector<8x32xf32>
    %396 = arith.mulf %383, %395 : vector<8x32xf32>
    %397 = vector.extract_strided_slice %1 {offsets = [26, 0], sizes = [1, 32], strides = [1, 1]} : vector<29x32xf32> to vector<1x32xf32>
    %398 = vector.broadcast %397 : vector<1x32xf32> to vector<8x32xf32>
    %399 = arith.mulf %396, %398 : vector<8x32xf32>
    %400 = arith.addf %382, %399 : vector<8x32xf32>
    %c6_i32 = arith.constant 6 : i32
    %401 = tpu.dynamic_rotate %309 by %c6_i32 dim 0 : vector<8x32xf32>, i32 -> vector<8x32xf32>
    %c2_i32_156 = arith.constant 2 : i32
    %402 = vector.broadcast %c2_i32_156 : i32 to vector<8x1xi32>
    %403 = arith.addi %310, %402 : vector<8x1xi32>
    %c0_i32_157 = arith.constant 0 : i32
    %404 = vector.broadcast %c0_i32_157 : i32 to vector<8x1xi32>
    %405 = arith.cmpi sge, %403, %404 : vector<8x1xi32>
    %c2_i32_158 = arith.constant 2 : i32
    %406 = vector.broadcast %c2_i32_158 : i32 to vector<8x1xi32>
    %407 = arith.addi %310, %406 : vector<8x1xi32>
    %c8_i32_159 = arith.constant 8 : i32
    %408 = vector.broadcast %c8_i32_159 : i32 to vector<8x1xi32>
    %409 = arith.cmpi slt, %407, %408 : vector<8x1xi32>
    %410 = arith.andi %405, %409 : vector<8x1xi1>
    %411 = arith.extui %410 : vector<8x1xi1> to vector<8x1xi32>
    %412 = arith.sitofp %411 : vector<8x1xi32> to vector<8x1xf32>
    %413 = vector.broadcast %412 : vector<8x1xf32> to vector<8x32xf32>
    %414 = arith.mulf %401, %413 : vector<8x32xf32>
    %415 = vector.extract_strided_slice %1 {offsets = [27, 0], sizes = [1, 32], strides = [1, 1]} : vector<29x32xf32> to vector<1x32xf32>
    %416 = vector.broadcast %415 : vector<1x32xf32> to vector<8x32xf32>
    %417 = arith.mulf %414, %416 : vector<8x32xf32>
    %418 = arith.addf %400, %417 : vector<8x32xf32>
    %c5_i32 = arith.constant 5 : i32
    %419 = tpu.dynamic_rotate %309 by %c5_i32 dim 0 : vector<8x32xf32>, i32 -> vector<8x32xf32>
    %c3_i32_160 = arith.constant 3 : i32
    %420 = vector.broadcast %c3_i32_160 : i32 to vector<8x1xi32>
    %421 = arith.addi %310, %420 : vector<8x1xi32>
    %c0_i32_161 = arith.constant 0 : i32
    %422 = vector.broadcast %c0_i32_161 : i32 to vector<8x1xi32>
    %423 = arith.cmpi sge, %421, %422 : vector<8x1xi32>
    %c3_i32_162 = arith.constant 3 : i32
    %424 = vector.broadcast %c3_i32_162 : i32 to vector<8x1xi32>
    %425 = arith.addi %310, %424 : vector<8x1xi32>
    %c8_i32_163 = arith.constant 8 : i32
    %426 = vector.broadcast %c8_i32_163 : i32 to vector<8x1xi32>
    %427 = arith.cmpi slt, %425, %426 : vector<8x1xi32>
    %428 = arith.andi %423, %427 : vector<8x1xi1>
    %429 = arith.extui %428 : vector<8x1xi1> to vector<8x1xi32>
    %430 = arith.sitofp %429 : vector<8x1xi32> to vector<8x1xf32>
    %431 = vector.broadcast %430 : vector<8x1xf32> to vector<8x32xf32>
    %432 = arith.mulf %419, %431 : vector<8x32xf32>
    %433 = vector.extract_strided_slice %1 {offsets = [28, 0], sizes = [1, 32], strides = [1, 1]} : vector<29x32xf32> to vector<1x32xf32>
    %434 = vector.broadcast %433 : vector<1x32xf32> to vector<8x32xf32>
    %435 = arith.mulf %432, %434 : vector<8x32xf32>
    %436 = arith.addf %418, %435 : vector<8x32xf32>
    %437 = vector.extract_strided_slice %1 {offsets = [13, 0], sizes = [1, 32], strides = [1, 1]} : vector<29x32xf32> to vector<1x32xf32>
    %438 = vector.broadcast %437 : vector<1x32xf32> to vector<8x32xf32>
    %439 = arith.addf %436, %438 : vector<8x32xf32>
    %440 = vector.extract_strided_slice %1 {offsets = [14, 0], sizes = [1, 32], strides = [1, 1]} : vector<29x32xf32> to vector<1x32xf32>
    %441 = vector.broadcast %440 : vector<1x32xf32> to vector<8x32xf32>
    %442 = arith.mulf %439, %441 : vector<8x32xf32>
    %443 = vector.extract_strided_slice %1 {offsets = [15, 0], sizes = [1, 32], strides = [1, 1]} : vector<29x32xf32> to vector<1x32xf32>
    %444 = vector.broadcast %443 : vector<1x32xf32> to vector<8x32xf32>
    %445 = arith.addf %442, %444 : vector<8x32xf32>
    %446 = arith.negf %445 : vector<8x32xf32>
    %447 = math.exp %446 : vector<8x32xf32>
    %cst_164 = arith.constant 1.000000e+00 : f32
    %448 = vector.broadcast %cst_164 : f32 to vector<8x32xf32>
    %449 = arith.addf %448, %447 : vector<8x32xf32>
    %450 = arith.divf %448, %449 : vector<8x32xf32>
    %451 = arith.mulf %445, %450 : vector<8x32xf32>
    %c0_165 = arith.constant 0 : index
    %c0_166 = arith.constant 0 : index
    %c0_167 = arith.constant 0 : index
    %452 = vector.load %arg17[%c0_165, %c0_166, %c0_167] : memref<1x32x32xbf16, #tpu.memory_space<vmem>>, vector<1x32x32xbf16>
    %453 = vector.shape_cast %452 : vector<1x32x32xbf16> to vector<32x32xbf16>
    %454 = arith.truncf %451 : vector<8x32xf32> to vector<8x32xbf16>
    %cst_168 = arith.constant dense<0.000000e+00> : vector<8x32xf32>
    %455 = tpu.matmul %454, %453, %cst_168 {dimension_numbers = #tpu.dot_dimension_numbers<[1], [0], [0], [1], [0, 0, 1, 1], [], []>} : vector<8x32xbf16>, vector<32x32xbf16>, vector<8x32xf32> -> vector<8x32xf32>
    %456 = vector.extract_strided_slice %1 {offsets = [16, 0], sizes = [1, 32], strides = [1, 1]} : vector<29x32xf32> to vector<1x32xf32>
    %457 = vector.broadcast %456 : vector<1x32xf32> to vector<8x32xf32>
    %458 = arith.addf %455, %457 : vector<8x32xf32>
    %459 = arith.addf %267, %458 : vector<8x32xf32>
    %460 = vector.extract_strided_slice %1 {offsets = [17, 0], sizes = [1, 32], strides = [1, 1]} : vector<29x32xf32> to vector<1x32xf32>
    %461 = vector.extract_strided_slice %1 {offsets = [18, 0], sizes = [1, 32], strides = [1, 1]} : vector<29x32xf32> to vector<1x32xf32>
    %cst_169 = arith.constant dense<0.000000e+00> : vector<8xf32>
    %462 = vector.multi_reduction <add>, %459, %cst_169 [1] : vector<8x32xf32> to vector<8xf32>
    %463 = vector.shape_cast %462 : vector<8xf32> to vector<8x1xf32>
    %cst_170 = arith.constant 3.200000e+01 : f32
    %464 = vector.broadcast %cst_170 : f32 to vector<8x1xf32>
    %465 = arith.divf %463, %464 : vector<8x1xf32>
    %466 = vector.broadcast %465 : vector<8x1xf32> to vector<8x32xf32>
    %467 = arith.subf %459, %466 : vector<8x32xf32>
    %468 = arith.mulf %467, %467 : vector<8x32xf32>
    %cst_171 = arith.constant dense<0.000000e+00> : vector<8xf32>
    %469 = vector.multi_reduction <add>, %468, %cst_171 [1] : vector<8x32xf32> to vector<8xf32>
    %470 = vector.shape_cast %469 : vector<8xf32> to vector<8x1xf32>
    %cst_172 = arith.constant 3.200000e+01 : f32
    %471 = vector.broadcast %cst_172 : f32 to vector<8x1xf32>
    %472 = arith.divf %470, %471 : vector<8x1xf32>
    %cst_173 = arith.constant 9.99999974E-6 : f32
    %473 = vector.broadcast %cst_173 : f32 to vector<8x1xf32>
    %474 = arith.addf %472, %473 : vector<8x1xf32>
    %475 = math.rsqrt %474 : vector<8x1xf32>
    %476 = vector.broadcast %475 : vector<8x1xf32> to vector<8x32xf32>
    %477 = arith.mulf %467, %476 : vector<8x32xf32>
    %478 = vector.broadcast %460 : vector<1x32xf32> to vector<8x32xf32>
    %479 = arith.mulf %477, %478 : vector<8x32xf32>
    %480 = vector.broadcast %461 : vector<1x32xf32> to vector<8x32xf32>
    %481 = arith.addf %479, %480 : vector<8x32xf32>
    %c0_174 = arith.constant 0 : index
    %c0_175 = arith.constant 0 : index
    %c0_176 = arith.constant 0 : index
    %482 = vector.load %arg13[%c0_174, %c0_175, %c0_176] : memref<1x32x64xbf16, #tpu.memory_space<vmem>>, vector<1x32x64xbf16>
    %483 = vector.shape_cast %482 : vector<1x32x64xbf16> to vector<32x64xbf16>
    %484 = arith.truncf %481 : vector<8x32xf32> to vector<8x32xbf16>
    %cst_177 = arith.constant dense<0.000000e+00> : vector<8x64xf32>
    %485 = tpu.matmul %484, %483, %cst_177 {dimension_numbers = #tpu.dot_dimension_numbers<[1], [0], [0], [1], [0, 0, 1, 1], [], []>} : vector<8x32xbf16>, vector<32x64xbf16>, vector<8x64xf32> -> vector<8x64xf32>
    %486 = vector.extract_strided_slice %3 {offsets = [1, 0], sizes = [1, 64], strides = [1, 1]} : vector<2x64xf32> to vector<1x64xf32>
    %487 = vector.broadcast %486 : vector<1x64xf32> to vector<8x64xf32>
    %488 = arith.addf %485, %487 : vector<8x64xf32>
    %489 = arith.negf %488 : vector<8x64xf32>
    %490 = math.exp %489 : vector<8x64xf32>
    %cst_178 = arith.constant 1.000000e+00 : f32
    %491 = vector.broadcast %cst_178 : f32 to vector<8x64xf32>
    %492 = arith.addf %491, %490 : vector<8x64xf32>
    %493 = arith.divf %491, %492 : vector<8x64xf32>
    %494 = arith.mulf %488, %493 : vector<8x64xf32>
    %c0_179 = arith.constant 0 : index
    %c0_180 = arith.constant 0 : index
    %c0_181 = arith.constant 0 : index
    %495 = vector.load %arg14[%c0_179, %c0_180, %c0_181] : memref<1x64x32xbf16, #tpu.memory_space<vmem>>, vector<1x64x32xbf16>
    %496 = vector.shape_cast %495 : vector<1x64x32xbf16> to vector<64x32xbf16>
    %497 = arith.truncf %494 : vector<8x64xf32> to vector<8x64xbf16>
    %cst_182 = arith.constant dense<0.000000e+00> : vector<8x32xf32>
    %498 = tpu.matmul %497, %496, %cst_182 {dimension_numbers = #tpu.dot_dimension_numbers<[1], [0], [0], [1], [0, 0, 1, 1], [], []>} : vector<8x64xbf16>, vector<64x32xbf16>, vector<8x32xf32> -> vector<8x32xf32>
    %499 = vector.extract_strided_slice %1 {offsets = [19, 0], sizes = [1, 32], strides = [1, 1]} : vector<29x32xf32> to vector<1x32xf32>
    %500 = vector.broadcast %499 : vector<1x32xf32> to vector<8x32xf32>
    %501 = arith.addf %498, %500 : vector<8x32xf32>
    %cst_183 = arith.constant 5.000000e-01 : f32
    %502 = vector.broadcast %cst_183 : f32 to vector<8x32xf32>
    %503 = arith.mulf %502, %501 : vector<8x32xf32>
    %504 = arith.addf %459, %503 : vector<8x32xf32>
    %505 = vector.extract_strided_slice %1 {offsets = [20, 0], sizes = [1, 32], strides = [1, 1]} : vector<29x32xf32> to vector<1x32xf32>
    %506 = vector.extract_strided_slice %1 {offsets = [21, 0], sizes = [1, 32], strides = [1, 1]} : vector<29x32xf32> to vector<1x32xf32>
    %cst_184 = arith.constant dense<0.000000e+00> : vector<8xf32>
    %507 = vector.multi_reduction <add>, %504, %cst_184 [1] : vector<8x32xf32> to vector<8xf32>
    %508 = vector.shape_cast %507 : vector<8xf32> to vector<8x1xf32>
    %cst_185 = arith.constant 3.200000e+01 : f32
    %509 = vector.broadcast %cst_185 : f32 to vector<8x1xf32>
    %510 = arith.divf %508, %509 : vector<8x1xf32>
    %511 = vector.broadcast %510 : vector<8x1xf32> to vector<8x32xf32>
    %512 = arith.subf %504, %511 : vector<8x32xf32>
    %513 = arith.mulf %512, %512 : vector<8x32xf32>
    %cst_186 = arith.constant dense<0.000000e+00> : vector<8xf32>
    %514 = vector.multi_reduction <add>, %513, %cst_186 [1] : vector<8x32xf32> to vector<8xf32>
    %515 = vector.shape_cast %514 : vector<8xf32> to vector<8x1xf32>
    %cst_187 = arith.constant 3.200000e+01 : f32
    %516 = vector.broadcast %cst_187 : f32 to vector<8x1xf32>
    %517 = arith.divf %515, %516 : vector<8x1xf32>
    %cst_188 = arith.constant 9.99999974E-6 : f32
    %518 = vector.broadcast %cst_188 : f32 to vector<8x1xf32>
    %519 = arith.addf %517, %518 : vector<8x1xf32>
    %520 = math.rsqrt %519 : vector<8x1xf32>
    %521 = vector.broadcast %520 : vector<8x1xf32> to vector<8x32xf32>
    %522 = arith.mulf %512, %521 : vector<8x32xf32>
    %523 = vector.broadcast %505 : vector<1x32xf32> to vector<8x32xf32>
    %524 = arith.mulf %522, %523 : vector<8x32xf32>
    %525 = vector.broadcast %506 : vector<1x32xf32> to vector<8x32xf32>
    %526 = arith.addf %524, %525 : vector<8x32xf32>
    %c0_189 = arith.constant 0 : index
    %c0_190 = arith.constant 0 : index
    %527 = vector.load %arg21[%c0_189, %c0_190] : memref<8x32xf32, #tpu.memory_space<vmem>>, vector<8x32xf32>
    tpu.vector_store %arg21[%c0_189, %c0_190], %526 {strides = array<i32>} : memref<8x32xf32, #tpu.memory_space<vmem>>, vector<8x32xf32>,
    %c1_i32_191 = arith.constant 1 : i32
    %528 = arith.cmpi eq, %arg1, %c1_i32_191 : i32
    %529 = arith.extui %528 : i1 to i32
    %c0_i32_192 = arith.constant 0 : i32
    %530 = arith.cmpi ne, %529, %c0_i32_192 : i32
    scf.if %530 {
      %c0_193 = arith.constant 0 : index
      %c0_194 = arith.constant 0 : index
      %531 = vector.load %arg5[%c0_193, %c0_194] : memref<32x32xbf16, #tpu.memory_space<vmem>>, vector<32x32xbf16>
      %532 = arith.truncf %526 : vector<8x32xf32> to vector<8x32xbf16>
      %cst_195 = arith.constant dense<0.000000e+00> : vector<8x32xf32>
      %533 = tpu.matmul %532, %531, %cst_195 {dimension_numbers = #tpu.dot_dimension_numbers<[1], [0], [0], [1], [0, 0, 1, 1], [], []>} : vector<8x32xbf16>, vector<32x32xbf16>, vector<8x32xf32> -> vector<8x32xf32>
      %534 = vector.extract_strided_slice %4 {offsets = [1, 0], sizes = [1, 32], strides = [1, 1]} : vector<4x32xf32> to vector<1x32xf32>
      %535 = vector.broadcast %534 : vector<1x32xf32> to vector<8x32xf32>
      %536 = arith.addf %533, %535 : vector<8x32xf32>
      %537 = tpu.iota {dimensions = array<i32: 1>} : vector<1x32xi32>
      %c24_i32 = arith.constant 24 : i32
      %538 = vector.broadcast %c24_i32 : i32 to vector<1x32xi32>
      %539 = arith.cmpi slt, %537, %538 : vector<1x32xi32>
      %540 = arith.extui %539 : vector<1x32xi1> to vector<1x32xi32>
      %541 = arith.sitofp %540 : vector<1x32xi32> to vector<1x32xf32>
      %cst_196 = arith.constant dense<0.000000e+00> : vector<8xf32>
      %542 = vector.multi_reduction <add>, %536, %cst_196 [1] : vector<8x32xf32> to vector<8xf32>
      %543 = vector.shape_cast %542 : vector<8xf32> to vector<8x1xf32>
      %cst_197 = arith.constant 2.400000e+01 : f32
      %544 = vector.broadcast %cst_197 : f32 to vector<8x1xf32>
      %545 = arith.divf %543, %544 : vector<8x1xf32>
      %546 = vector.broadcast %545 : vector<8x1xf32> to vector<8x32xf32>
      %547 = arith.subf %536, %546 : vector<8x32xf32>
      %548 = vector.broadcast %541 : vector<1x32xf32> to vector<8x32xf32>
      %549 = arith.mulf %547, %548 : vector<8x32xf32>
      %550 = arith.mulf %549, %549 : vector<8x32xf32>
      %cst_198 = arith.constant dense<0.000000e+00> : vector<8xf32>
      %551 = vector.multi_reduction <add>, %550, %cst_198 [1] : vector<8x32xf32> to vector<8xf32>
      %552 = vector.shape_cast %551 : vector<8xf32> to vector<8x1xf32>
      %cst_199 = arith.constant 2.400000e+01 : f32
      %553 = vector.broadcast %cst_199 : f32 to vector<8x1xf32>
      %554 = arith.divf %552, %553 : vector<8x1xf32>
      %cst_200 = arith.constant 9.99999974E-6 : f32
      %555 = vector.broadcast %cst_200 : f32 to vector<8x1xf32>
      %556 = arith.addf %554, %555 : vector<8x1xf32>
      %557 = math.rsqrt %556 : vector<8x1xf32>
      %558 = vector.broadcast %557 : vector<8x1xf32> to vector<8x32xf32>
      %559 = arith.mulf %549, %558 : vector<8x32xf32>
      %560 = vector.extract_strided_slice %4 {offsets = [2, 0], sizes = [1, 32], strides = [1, 1]} : vector<4x32xf32> to vector<1x32xf32>
      %561 = vector.broadcast %560 : vector<1x32xf32> to vector<8x32xf32>
      %562 = arith.mulf %559, %561 : vector<8x32xf32>
      %563 = vector.extract_strided_slice %4 {offsets = [3, 0], sizes = [1, 32], strides = [1, 1]} : vector<4x32xf32> to vector<1x32xf32>
      %564 = vector.broadcast %563 : vector<1x32xf32> to vector<8x32xf32>
      %565 = arith.addf %562, %564 : vector<8x32xf32>
      %c0_201 = arith.constant 0 : index
      %c0_202 = arith.constant 0 : index
      %c0_203 = arith.constant 0 : index
      %566 = vector.load %arg20[%c0_201, %c0_202, %c0_203] : memref<1x8x32xf32, #tpu.memory_space<vmem>>, vector<1x8x32xf32>
      %567 = vector.shape_cast %566 : vector<1x8x32xf32> to vector<8x32xf32>
      %568 = vector.shape_cast %565 : vector<8x32xf32> to vector<1x8x32xf32>
      tpu.vector_store %arg20[%c0_201, %c0_202, %c0_203], %568 {strides = array<i32>} : memref<1x8x32xf32, #tpu.memory_space<vmem>>, vector<1x8x32xf32>,
    } else {
    }
    return
  }
  func.func @transform_0(%arg0: i32, %arg1: i32, %arg2: memref<2xi32, #tpu.memory_space<smem>>) -> (i32, i32, i32) {
    %c0_i32 = arith.constant 0 : i32
    %c0_i32_0 = arith.constant 0 : i32
    %c0_i32_1 = arith.constant 0 : i32
    return %arg0, %c0_i32, %c0_i32_0 : i32, i32, i32
  }
  func.func @transform_1(%arg0: i32, %arg1: i32, %arg2: memref<2xi32, #tpu.memory_space<smem>>) -> (i32, i32) {
    %c0_i32 = arith.constant 0 : i32
    %c0_i32_0 = arith.constant 0 : i32
    %c0_i32_1 = arith.constant 0 : i32
    return %c0_i32, %c0_i32_0 : i32, i32
  }
  func.func @transform_2(%arg0: i32, %arg1: i32, %arg2: memref<2xi32, #tpu.memory_space<smem>>) -> (i32, i32) {
    %c0_i32 = arith.constant 0 : i32
    %c0_i32_0 = arith.constant 0 : i32
    %c0_i32_1 = arith.constant 0 : i32
    return %c0_i32, %c0_i32_0 : i32, i32
  }
  func.func @transform_3(%arg0: i32, %arg1: i32, %arg2: memref<2xi32, #tpu.memory_space<smem>>) -> (i32, i32) {
    %c0_i32 = arith.constant 0 : i32
    %c0_i32_0 = arith.constant 0 : i32
    %c0_i32_1 = arith.constant 0 : i32
    return %c0_i32, %c0_i32_0 : i32, i32
  }
  func.func @transform_4(%arg0: i32, %arg1: i32, %arg2: memref<2xi32, #tpu.memory_space<smem>>) -> (i32, i32, i32, i32) {
    %c0_i32 = arith.constant 0 : i32
    %c0_i32_0 = arith.constant 0 : i32
    %c0_i32_1 = arith.constant 0 : i32
    %c0_i32_2 = arith.constant 0 : i32
    return %arg1, %c0_i32, %c0_i32_0, %c0_i32_1 : i32, i32, i32, i32
  }
  func.func @transform_5(%arg0: i32, %arg1: i32, %arg2: memref<2xi32, #tpu.memory_space<smem>>) -> (i32, i32, i32, i32) {
    %c0_i32 = arith.constant 0 : i32
    %c0_i32_0 = arith.constant 0 : i32
    %c0_i32_1 = arith.constant 0 : i32
    %c0_i32_2 = arith.constant 0 : i32
    return %arg1, %c0_i32, %c0_i32_0, %c0_i32_1 : i32, i32, i32, i32
  }
  func.func @transform_6(%arg0: i32, %arg1: i32, %arg2: memref<2xi32, #tpu.memory_space<smem>>) -> (i32, i32, i32, i32) {
    %c0_i32 = arith.constant 0 : i32
    %c0_i32_0 = arith.constant 0 : i32
    %c0_i32_1 = arith.constant 0 : i32
    %c0_i32_2 = arith.constant 0 : i32
    return %arg1, %c0_i32, %c0_i32_0, %c0_i32_1 : i32, i32, i32, i32
  }
  func.func @transform_7(%arg0: i32, %arg1: i32, %arg2: memref<2xi32, #tpu.memory_space<smem>>) -> (i32, i32, i32, i32) {
    %c0_i32 = arith.constant 0 : i32
    %c0_i32_0 = arith.constant 0 : i32
    %c0_i32_1 = arith.constant 0 : i32
    %c0_i32_2 = arith.constant 0 : i32
    return %arg1, %c0_i32, %c0_i32_0, %c0_i32_1 : i32, i32, i32, i32
  }
  func.func @transform_8(%arg0: i32, %arg1: i32, %arg2: memref<2xi32, #tpu.memory_space<smem>>) -> (i32, i32, i32) {
    %c0_i32 = arith.constant 0 : i32
    %c0_i32_0 = arith.constant 0 : i32
    %c0_i32_1 = arith.constant 0 : i32
    return %arg1, %c0_i32, %c0_i32_0 : i32, i32, i32
  }
  func.func @transform_9(%arg0: i32, %arg1: i32, %arg2: memref<2xi32, #tpu.memory_space<smem>>) -> (i32, i32, i32) {
    %c0_i32 = arith.constant 0 : i32
    %c0_i32_0 = arith.constant 0 : i32
    %c0_i32_1 = arith.constant 0 : i32
    return %arg1, %c0_i32, %c0_i32_0 : i32, i32, i32
  }
  func.func @transform_10(%arg0: i32, %arg1: i32, %arg2: memref<2xi32, #tpu.memory_space<smem>>) -> (i32, i32, i32) {
    %c0_i32 = arith.constant 0 : i32
    %c0_i32_0 = arith.constant 0 : i32
    %c0_i32_1 = arith.constant 0 : i32
    return %arg1, %c0_i32, %c0_i32_0 : i32, i32, i32
  }
  func.func @transform_11(%arg0: i32, %arg1: i32, %arg2: memref<2xi32, #tpu.memory_space<smem>>) -> (i32, i32, i32) {
    %c0_i32 = arith.constant 0 : i32
    %c0_i32_0 = arith.constant 0 : i32
    %c0_i32_1 = arith.constant 0 : i32
    return %arg1, %c0_i32, %c0_i32_0 : i32, i32, i32
  }
  func.func @transform_12(%arg0: i32, %arg1: i32, %arg2: memref<2xi32, #tpu.memory_space<smem>>) -> (i32, i32, i32) {
    %c0_i32 = arith.constant 0 : i32
    %c0_i32_0 = arith.constant 0 : i32
    %c0_i32_1 = arith.constant 0 : i32
    return %arg1, %c0_i32, %c0_i32_0 : i32, i32, i32
  }
  func.func @transform_13(%arg0: i32, %arg1: i32, %arg2: memref<2xi32, #tpu.memory_space<smem>>) -> (i32, i32, i32) {
    %c0_i32 = arith.constant 0 : i32
    %c0_i32_0 = arith.constant 0 : i32
    %c0_i32_1 = arith.constant 0 : i32
    return %arg1, %c0_i32, %c0_i32_0 : i32, i32, i32
  }
  func.func @transform_14(%arg0: i32, %arg1: i32, %arg2: memref<2xi32, #tpu.memory_space<smem>>) -> (i32, i32, i32) {
    %c0_i32 = arith.constant 0 : i32
    %c0_i32_0 = arith.constant 0 : i32
    %c0_i32_1 = arith.constant 0 : i32
    return %arg1, %c0_i32, %c0_i32_0 : i32, i32, i32
  }
  func.func @transform_15(%arg0: i32, %arg1: i32, %arg2: memref<2xi32, #tpu.memory_space<smem>>) -> (i32, i32, i32) {
    %c0_i32 = arith.constant 0 : i32
    %c0_i32_0 = arith.constant 0 : i32
    %c0_i32_1 = arith.constant 0 : i32
    return %arg1, %c0_i32, %c0_i32_0 : i32, i32, i32
  }
  func.func @transform_16(%arg0: i32, %arg1: i32, %arg2: memref<2xi32, #tpu.memory_space<smem>>) -> (i32, i32, i32) {
    %c0_i32 = arith.constant 0 : i32
    %c0_i32_0 = arith.constant 0 : i32
    %c0_i32_1 = arith.constant 0 : i32
    return %arg1, %c0_i32, %c0_i32_0 : i32, i32, i32
  }
  func.func @transform_17(%arg0: i32, %arg1: i32, %arg2: memref<2xi32, #tpu.memory_space<smem>>) -> (i32, i32, i32) {
    %c0_i32 = arith.constant 0 : i32
    %c0_i32_0 = arith.constant 0 : i32
    %c0_i32_1 = arith.constant 0 : i32
    return %arg0, %c0_i32, %c0_i32_0 : i32, i32, i32
  }
}

</mosaic_0001>

<llo_original>
// kernel: conformer_encoder_forward.1
$region0: #{conformer_encoder_forward.1}
  #allocation0 [shape = 'u32[]', space=smem, size = 0x4, offset = 0x4, fixed_abs, tag = 'smem constant byte address 0x4 - core index']
  #allocation1 [shape = 'u32[144,128]{1,0:T(1,128)}', space=vmem, size = 0x12000, scoped, tag = 'internal scratch']
  #allocation2 [shape = 'f32[8,32]{1,0:T(8,128)}', space=vmem, size = 0x1000, scoped, tag = 'scratch operand']
  #allocation3 [shape = 's32[1]{0}', space=sflag, size = 0x4, scoped, tag = 'scoped memory for conformer_encoder_forward.1']
  #allocation4 [shape = 'u8[512]{0}', space=smem, size = 0x200, scoped, tag = 'prefetched SMEM operand 0']
  %s0 = inlined_call_operand.vmem [shape: s32[2], index: 0, kind: input, shape index: {}]
  %s1 = inlined_call_operand.vmem [shape: bf16[2,8,32], index: 1, kind: input, shape index: {}]
  %s2 = inlined_call_operand.vmem [shape: bf16[32,32], index: 2, kind: input, shape index: {}]
  %s3 = inlined_call_operand.vmem [shape: bf16[32,32], index: 3, kind: input, shape index: {}]
  %s4 = inlined_call_operand.vmem [shape: f32[4,32], index: 4, kind: input, shape index: {}]
  %s5 = inlined_call_operand.vmem [shape: bf16[2,4,32,8], index: 5, kind: input, shape index: {}]
  %s6 = inlined_call_operand.vmem [shape: bf16[2,4,32,8], index: 6, kind: input, shape index: {}]
  %s7 = inlined_call_operand.vmem [shape: bf16[2,4,32,8], index: 7, kind: input, shape index: {}]
  %s8 = inlined_call_operand.vmem [shape: bf16[2,4,8,32], index: 8, kind: input, shape index: {}]
  %s9 = inlined_call_operand.vmem [shape: bf16[2,32,64], index: 9, kind: input, shape index: {}]
  %s10 = inlined_call_operand.vmem [shape: bf16[2,64,32], index: 10, kind: input, shape index: {}]
  %s11 = inlined_call_operand.vmem [shape: bf16[2,32,64], index: 11, kind: input, shape index: {}]
  %s12 = inlined_call_operand.vmem [shape: bf16[2,64,32], index: 12, kind: input, shape index: {}]
  %s13 = inlined_call_operand.vmem [shape: bf16[2,32,32], index: 13, kind: input, shape index: {}]
  %s14 = inlined_call_operand.vmem [shape: bf16[2,32,32], index: 14, kind: input, shape index: {}]
  %s15 = inlined_call_operand.vmem [shape: bf16[2,32,32], index: 15, kind: input, shape index: {}]
  %s16 = inlined_call_operand.vmem [shape: f32[2,29,32], index: 16, kind: input, shape index: {}]
  %s17 = inlined_call_operand.vmem [shape: f32[2,2,64], index: 17, kind: input, shape index: {}]
  %s18 = inlined_call_operand.hbm [shape: f32[2,8,32], index: 18, kind: output, shape index: {}]
  %s19 = sld [smem:[#allocation0]]
  $region109: #{conformer_encoder_forward.1} parent=0
    _
  %s21 = ssub.s32 1, %s19
  %s22 = scalar_select 0, %s21, %s19
  %s23 = sshll.u32 %s0, 4
  %s24 = int_to_ptr.vmem [resolvable:$true] %s23
  %26 = dma.vmem_to_smem %s24, 16, [#allocation4], [#allocation3]
  %27 = dma.done [#allocation3], 16
  %28 = sfence
  $region1: #{conformer_encoder_forward.1} parent=0
    #allocation5 [shape = 'u8[8192]{0}', space=vmem, size = 0x2000, scoped, tag = 'output window, operand 0']
    #allocation6 [shape = 's32[2]{0}', space=sflag, size = 0x8, scoped, tag = 'scoped memory for conformer_encoder_forward.1']
    %29 = vsyncpa [#allocation6], 0
    %s30 = scalar_lea.sflag [#allocation6], 1
    %31 = vsyncpa %s30, 0
    loop: start=0, step=1, limit=6
    $region2: #{conformer_encoder_forward.1} parent=1 // loop_pre_header
      _
    $region3: #{conformer_encoder_forward.1} parent=1 // loop_header
      %s33 = sphi 0, %s37
      %p34 = scmp.ge.s32.totalorder %s33, 6
      %s40 = sphi 0, %s52
      %s41 = sphi 0, %s48
      %s42 = sphi 0, %s40
      %s43 = sphi 0, %s41
      %s44 = sphi 0, %s42
      %s45 = sphi 0, %s43
      %s55 = sphi 0, %s57
      %s58 = sphi 0, %s55
      %s59 = sphi 0, %s58
      %s75 = sphi 0, %s59
      %s79 = sphi 0, %s79
      %s81 = sphi 0, %s79
      %s82 = sphi 0, %s81
      %s96 = sphi 0, %s82
      %s100 = sphi 0, %s100
      %s102 = sphi 0, %s100
      %s103 = sphi 0, %s102
      %s117 = sphi 0, %s103
      %s121 = sphi 0, %s121
      %s123 = sphi 0, %s121
      %s124 = sphi 0, %s123
      %s138 = sphi 0, %s124
      %s144 = sphi 0, %s146
      %s147 = sphi 0, %s144
      %s148 = sphi 0, %s147
      %s164 = sphi 0, %s148
      %s170 = sphi 0, %s172
      %s173 = sphi 0, %s170
      %s174 = sphi 0, %s173
      %s190 = sphi 0, %s174
      %s196 = sphi 0, %s198
      %s199 = sphi 0, %s196
      %s200 = sphi 0, %s199
      %s216 = sphi 0, %s200
      %s222 = sphi 0, %s224
      %s225 = sphi 0, %s222
      %s226 = sphi 0, %s225
      %s242 = sphi 0, %s226
      %s248 = sphi 0, %s250
      %s251 = sphi 0, %s248
      %s252 = sphi 0, %s251
      %s268 = sphi 0, %s252
      %s274 = sphi 0, %s276
      %s277 = sphi 0, %s274
      %s278 = sphi 0, %s277
      %s294 = sphi 0, %s278
      %s300 = sphi 0, %s302
      %s303 = sphi 0, %s300
      %s304 = sphi 0, %s303
      %s320 = sphi 0, %s304
      %s326 = sphi 0, %s328
      %s329 = sphi 0, %s326
      %s330 = sphi 0, %s329
      %s346 = sphi 0, %s330
      %s352 = sphi 0, %s354
      %s355 = sphi 0, %s352
      %s356 = sphi 0, %s355
      %s372 = sphi 0, %s356
      %s378 = sphi 0, %s380
      %s381 = sphi 0, %s378
      %s382 = sphi 0, %s381
      %s398 = sphi 0, %s382
      %s404 = sphi 0, %s406
      %s407 = sphi 0, %s404
      %s408 = sphi 0, %s407
      %s424 = sphi 0, %s408
      %s430 = sphi 0, %s432
      %s433 = sphi 0, %s430
      %s434 = sphi 0, %s433
      %s450 = sphi 0, %s434
      %s456 = sphi 0, %s458
      %s459 = sphi 0, %s456
      %s460 = sphi 0, %s459
      %s476 = sphi 0, %s460
      %s482 = sphi 0, %s484
      %s485 = sphi 0, %s482
      %s486 = sphi 0, %s485
      %s502 = sphi 0, %s486
    $region4: #{conformer_encoder_forward.1} parent=1 // loop_header_branch
      %36 = sbr.rel (%p34) target = $region8
    $region5: #{conformer_encoder_forward.1} parent=1 // loop_body
      %s38 = ssub.s32 %s33, 1
      %s39 = ssub.s32 %s33, 2
      %s46 = sadd.s32 1, %s41
      %p47 = scmp.ge.s32.totalorder %s46, 2
      %s48 = scalar_select %p47, 0, %s46
      %s49 = sadd.s32 1, %s40
      %s50 = scalar_select %p47, %s49, %s40
      %p51 = scmp.ge.s32.totalorder %s50, 2
      %s52 = scalar_select %p51, 0, %s50
      %s53 = ssub.s32 %s40, %s52
      %p54 = scmp.eq.s32.totalorder %s53, 0
      %s56 = sadd.s32 %s55, 1
      %s57 = scalar_select %p54, %s55, %s56
      %p60 = pneg %p54
      %p61 = scmp.eq.s32.totalorder %s33, 3
      %p62 = por %p60, %p61
      %p63 = scmp.ne.s32.totalorder %s55, %s58
      %p64 = scmp.eq.s32.totalorder %s33, 0
      %p65 = por %p63, %p64
      %p66 = scmp.ne.s32.totalorder %s55, %s58
      %p67 = scmp.eq.s32.totalorder %s38, 3
      %p68 = por %p66, %p67
      %p69 = scmp.ne.s32.totalorder %s58, %s59
      %p70 = scmp.eq.s32.totalorder %s38, 0
      %p71 = por %p69, %p70
      %p72 = scmp.ne.s32.totalorder %s58, %s59
      %p73 = scmp.eq.s32.totalorder %s39, 3
      %p74 = por %p72, %p73
      %p76 = scmp.ne.s32.totalorder %s59, %s75
      %p77 = scmp.eq.s32.totalorder %s39, 0
      %p78 = por %p76, %p77
      %s80 = sadd.s32 %s79, 1
      %p83 = scmp.eq.s32.totalorder %s33, 3
      %p84 = scmp.ne.s32.totalorder %s79, %s81
      %p85 = scmp.eq.s32.totalorder %s33, 0
      %p86 = por %p84, %p85
      %p87 = scmp.ne.s32.totalorder %s79, %s81
      %p88 = scmp.eq.s32.totalorder %s38, 3
      %p89 = por %p87, %p88
      %p90 = scmp.ne.s32.totalorder %s81, %s82
      %p91 = scmp.eq.s32.totalorder %s38, 0
      %p92 = por %p90, %p91
      %p93 = scmp.ne.s32.totalorder %s81, %s82
      %p94 = scmp.eq.s32.totalorder %s39, 3
      %p95 = por %p93, %p94
      %p97 = scmp.ne.s32.totalorder %s82, %s96
      %p98 = scmp.eq.s32.totalorder %s39, 0
      %p99 = por %p97, %p98
      %s101 = sadd.s32 %s100, 1
      %p104 = scmp.eq.s32.totalorder %s33, 3
      %p105 = scmp.ne.s32.totalorder %s100, %s102
      %p106 = scmp.eq.s32.totalorder %s33, 0
      %p107 = por %p105, %p106
      %p108 = scmp.ne.s32.totalorder %s100, %s102
      %p109 = scmp.eq.s32.totalorder %s38, 3
      %p110 = por %p108, %p109
      %p111 = scmp.ne.s32.totalorder %s102, %s103
      %p112 = scmp.eq.s32.totalorder %s38, 0
      %p113 = por %p111, %p112
      %p114 = scmp.ne.s32.totalorder %s102, %s103
      %p115 = scmp.eq.s32.totalorder %s39, 3
      %p116 = por %p114, %p115
      %p118 = scmp.ne.s32.totalorder %s103, %s117
      %p119 = scmp.eq.s32.totalorder %s39, 0
      %p120 = por %p118, %p119
      %s122 = sadd.s32 %s121, 1
      %p125 = scmp.eq.s32.totalorder %s33, 3
      %p126 = scmp.ne.s32.totalorder %s121, %s123
      %p127 = scmp.eq.s32.totalorder %s33, 0
      %p128 = por %p126, %p127
      %p129 = scmp.ne.s32.totalorder %s121, %s123
      %p130 = scmp.eq.s32.totalorder %s38, 3
      %p131 = por %p129, %p130
      %p132 = scmp.ne.s32.totalorder %s123, %s124
      %p133 = scmp.eq.s32.totalorder %s38, 0
      %p134 = por %p132, %p133
      %p135 = scmp.ne.s32.totalorder %s123, %s124
      %p136 = scmp.eq.s32.totalorder %s39, 3
      %p137 = por %p135, %p136
      %p139 = scmp.ne.s32.totalorder %s124, %s138
      %p140 = scmp.eq.s32.totalorder %s39, 0
      %p141 = por %p139, %p140
      %s142 = ssub.s32 %s41, %s48
      %p143 = scmp.eq.s32.totalorder %s142, 0
      %s145 = sadd.s32 %s144, 1
      %s146 = scalar_select %p143, %s144, %s145
      %p149 = pneg %p143
      %p150 = scmp.eq.s32.totalorder %s33, 3
      %p151 = por %p149, %p150
      %p152 = scmp.ne.s32.totalorder %s144, %s147
      %p153 = scmp.eq.s32.totalorder %s33, 0
      %p154 = por %p152, %p153
      %p155 = scmp.ne.s32.totalorder %s144, %s147
      %p156 = scmp.eq.s32.totalorder %s38, 3
      %p157 = por %p155, %p156
      %p158 = scmp.ne.s32.totalorder %s147, %s148
      %p159 = scmp.eq.s32.totalorder %s38, 0
      %p160 = por %p158, %p159
      %p161 = scmp.ne.s32.totalorder %s147, %s148
      %p162 = scmp.eq.s32.totalorder %s39, 3
      %p163 = por %p161, %p162
      %p165 = scmp.ne.s32.totalorder %s148, %s164
      %p166 = scmp.eq.s32.totalorder %s39, 0
      %p167 = por %p165, %p166
      %s168 = ssub.s32 %s41, %s48
      %p169 = scmp.eq.s32.totalorder %s168, 0
      %s171 = sadd.s32 %s170, 1
      %s172 = scalar_select %p169, %s170, %s171
      %p175 = pneg %p169
      %p176 = scmp.eq.s32.totalorder %s33, 3
      %p177 = por %p175, %p176
      %p178 = scmp.ne.s32.totalorder %s170, %s173
      %p179 = scmp.eq.s32.totalorder %s33, 0
      %p180 = por %p178, %p179
      %p181 = scmp.ne.s32.totalorder %s170, %s173
      %p182 = scmp.eq.s32.totalorder %s38, 3
      %p183 = por %p181, %p182
      %p184 = scmp.ne.s32.totalorder %s173, %s174
      %p185 = scmp.eq.s32.totalorder %s38, 0
      %p186 = por %p184, %p185
      %p187 = scmp.ne.s32.totalorder %s173, %s174
      %p188 = scmp.eq.s32.totalorder %s39, 3
      %p189 = por %p187, %p188
      %p191 = scmp.ne.s32.totalorder %s174, %s190
      %p192 = scmp.eq.s32.totalorder %s39, 0
      %p193 = por %p191, %p192
      %s194 = ssub.s32 %s41, %s48
      %p195 = scmp.eq.s32.totalorder %s194, 0
      %s197 = sadd.s32 %s196, 1
      %s198 = scalar_select %p195, %s196, %s197
      %p201 = pneg %p195
      %p202 = scmp.eq.s32.totalorder %s33, 3
      %p203 = por %p201, %p202
      %p204 = scmp.ne.s32.totalorder %s196, %s199
      %p205 = scmp.eq.s32.totalorder %s33, 0
      %p206 = por %p204, %p205
      %p207 = scmp.ne.s32.totalorder %s196, %s199
      %p208 = scmp.eq.s32.totalorder %s38, 3
      %p209 = por %p207, %p208
      %p210 = scmp.ne.s32.totalorder %s199, %s200
      %p211 = scmp.eq.s32.totalorder %s38, 0
      %p212 = por %p210, %p211
      %p213 = scmp.ne.s32.totalorder %s199, %s200
      %p214 = scmp.eq.s32.totalorder %s39, 3
      %p215 = por %p213, %p214
      %p217 = scmp.ne.s32.totalorder %s200, %s216
      %p218 = scmp.eq.s32.totalorder %s39, 0
      %p219 = por %p217, %p218
      %s220 = ssub.s32 %s41, %s48
      %p221 = scmp.eq.s32.totalorder %s220, 0
      %s223 = sadd.s32 %s222, 1
      %s224 = scalar_select %p221, %s222, %s223
      %p227 = pneg %p221
      %p228 = scmp.eq.s32.totalorder %s33, 3
      %p229 = por %p227, %p228
      %p230 = scmp.ne.s32.totalorder %s222, %s225
      %p231 = scmp.eq.s32.totalorder %s33, 0
      %p232 = por %p230, %p231
      %p233 = scmp.ne.s32.totalorder %s222, %s225
      %p234 = scmp.eq.s32.totalorder %s38, 3
      %p235 = por %p233, %p234
      %p236 = scmp.ne.s32.totalorder %s225, %s226
      %p237 = scmp.eq.s32.totalorder %s38, 0
      %p238 = por %p236, %p237
      %p239 = scmp.ne.s32.totalorder %s225, %s226
      %p240 = scmp.eq.s32.totalorder %s39, 3
      %p241 = por %p239, %p240
      %p243 = scmp.ne.s32.totalorder %s226, %s242
      %p244 = scmp.eq.s32.totalorder %s39, 0
      %p245 = por %p243, %p244
      %s246 = ssub.s32 %s41, %s48
      %p247 = scmp.eq.s32.totalorder %s246, 0
      %s249 = sadd.s32 %s248, 1
      %s250 = scalar_select %p247, %s248, %s249
      %p253 = pneg %p247
      %p254 = scmp.eq.s32.totalorder %s33, 3
      %p255 = por %p253, %p254
      %p256 = scmp.ne.s32.totalorder %s248, %s251
      %p257 = scmp.eq.s32.totalorder %s33, 0
      %p258 = por %p256, %p257
      %p259 = scmp.ne.s32.totalorder %s248, %s251
      %p260 = scmp.eq.s32.totalorder %s38, 3
      %p261 = por %p259, %p260
      %p262 = scmp.ne.s32.totalorder %s251, %s252
      %p263 = scmp.eq.s32.totalorder %s38, 0
      %p264 = por %p262, %p263
      %p265 = scmp.ne.s32.totalorder %s251, %s252
      %p266 = scmp.eq.s32.totalorder %s39, 3
      %p267 = por %p265, %p266
      %p269 = scmp.ne.s32.totalorder %s252, %s268
      %p270 = scmp.eq.s32.totalorder %s39, 0
      %p271 = por %p269, %p270
      %s272 = ssub.s32 %s41, %s48
      %p273 = scmp.eq.s32.totalorder %s272, 0
      %s275 = sadd.s32 %s274, 1
      %s276 = scalar_select %p273, %s274, %s275
      %p279 = pneg %p273
      %p280 = scmp.eq.s32.totalorder %s33, 3
      %p281 = por %p279, %p280
      %p282 = scmp.ne.s32.totalorder %s274, %s277
      %p283 = scmp.eq.s32.totalorder %s33, 0
      %p284 = por %p282, %p283
      %p285 = scmp.ne.s32.totalorder %s274, %s277
      %p286 = scmp.eq.s32.totalorder %s38, 3
      %p287 = por %p285, %p286
      %p288 = scmp.ne.s32.totalorder %s277, %s278
      %p289 = scmp.eq.s32.totalorder %s38, 0
      %p290 = por %p288, %p289
      %p291 = scmp.ne.s32.totalorder %s277, %s278
      %p292 = scmp.eq.s32.totalorder %s39, 3
      %p293 = por %p291, %p292
      %p295 = scmp.ne.s32.totalorder %s278, %s294
      %p296 = scmp.eq.s32.totalorder %s39, 0
      %p297 = por %p295, %p296
      %s298 = ssub.s32 %s41, %s48
      %p299 = scmp.eq.s32.totalorder %s298, 0
      %s301 = sadd.s32 %s300, 1
      %s302 = scalar_select %p299, %s300, %s301
      %p305 = pneg %p299
      %p306 = scmp.eq.s32.totalorder %s33, 3
      %p307 = por %p305, %p306
      %p308 = scmp.ne.s32.totalorder %s300, %s303
      %p309 = scmp.eq.s32.totalorder %s33, 0
      %p310 = por %p308, %p309
      %p311 = scmp.ne.s32.totalorder %s300, %s303
      %p312 = scmp.eq.s32.totalorder %s38, 3
      %p313 = por %p311, %p312
      %p314 = scmp.ne.s32.totalorder %s303, %s304
      %p315 = scmp.eq.s32.totalorder %s38, 0
      %p316 = por %p314, %p315
      %p317 = scmp.ne.s32.totalorder %s303, %s304
      %p318 = scmp.eq.s32.totalorder %s39, 3
      %p319 = por %p317, %p318
      %p321 = scmp.ne.s32.totalorder %s304, %s320
      %p322 = scmp.eq.s32.totalorder %s39, 0
      %p323 = por %p321, %p322
      %s324 = ssub.s32 %s41, %s48
      %p325 = scmp.eq.s32.totalorder %s324, 0
      %s327 = sadd.s32 %s326, 1
      %s328 = scalar_select %p325, %s326, %s327
      %p331 = pneg %p325
      %p332 = scmp.eq.s32.totalorder %s33, 3
      %p333 = por %p331, %p332
      %p334 = scmp.ne.s32.totalorder %s326, %s329
      %p335 = scmp.eq.s32.totalorder %s33, 0
      %p336 = por %p334, %p335
      %p337 = scmp.ne.s32.totalorder %s326, %s329
      %p338 = scmp.eq.s32.totalorder %s38, 3
      %p339 = por %p337, %p338
      %p340 = scmp.ne.s32.totalorder %s329, %s330
      %p341 = scmp.eq.s32.totalorder %s38, 0
      %p342 = por %p340, %p341
      %p343 = scmp.ne.s32.totalorder %s329, %s330
      %p344 = scmp.eq.s32.totalorder %s39, 3
      %p345 = por %p343, %p344
      %p347 = scmp.ne.s32.totalorder %s330, %s346
      %p348 = scmp.eq.s32.totalorder %s39, 0
      %p349 = por %p347, %p348
      %s350 = ssub.s32 %s41, %s48
      %p351 = scmp.eq.s32.totalorder %s350, 0
      %s353 = sadd.s32 %s352, 1
      %s354 = scalar_select %p351, %s352, %s353
      %p357 = pneg %p351
      %p358 = scmp.eq.s32.totalorder %s33, 3
      %p359 = por %p357, %p358
      %p360 = scmp.ne.s32.totalorder %s352, %s355
      %p361 = scmp.eq.s32.totalorder %s33, 0
      %p362 = por %p360, %p361
      %p363 = scmp.ne.s32.totalorder %s352, %s355
      %p364 = scmp.eq.s32.totalorder %s38, 3
      %p365 = por %p363, %p364
      %p366 = scmp.ne.s32.totalorder %s355, %s356
      %p367 = scmp.eq.s32.totalorder %s38, 0
      %p368 = por %p366, %p367
      %p369 = scmp.ne.s32.totalorder %s355, %s356
      %p370 = scmp.eq.s32.totalorder %s39, 3
      %p371 = por %p369, %p370
      %p373 = scmp.ne.s32.totalorder %s356, %s372
      %p374 = scmp.eq.s32.totalorder %s39, 0
      %p375 = por %p373, %p374
      %s376 = ssub.s32 %s41, %s48
      %p377 = scmp.eq.s32.totalorder %s376, 0
      %s379 = sadd.s32 %s378, 1
      %s380 = scalar_select %p377, %s378, %s379
      %p383 = pneg %p377
      %p384 = scmp.eq.s32.totalorder %s33, 3
      %p385 = por %p383, %p384
      %p386 = scmp.ne.s32.totalorder %s378, %s381
      %p387 = scmp.eq.s32.totalorder %s33, 0
      %p388 = por %p386, %p387
      %p389 = scmp.ne.s32.totalorder %s378, %s381
      %p390 = scmp.eq.s32.totalorder %s38, 3
      %p391 = por %p389, %p390
      %p392 = scmp.ne.s32.totalorder %s381, %s382
      %p393 = scmp.eq.s32.totalorder %s38, 0
      %p394 = por %p392, %p393
      %p395 = scmp.ne.s32.totalorder %s381, %s382
      %p396 = scmp.eq.s32.totalorder %s39, 3
      %p397 = por %p395, %p396
      %p399 = scmp.ne.s32.totalorder %s382, %s398
      %p400 = scmp.eq.s32.totalorder %s39, 0
      %p401 = por %p399, %p400
      %s402 = ssub.s32 %s41, %s48
      %p403 = scmp.eq.s32.totalorder %s402, 0
      %s405 = sadd.s32 %s404, 1
      %s406 = scalar_select %p403, %s404, %s405
      %p409 = pneg %p403
      %p410 = scmp.eq.s32.totalorder %s33, 3
      %p411 = por %p409, %p410
      %p412 = scmp.ne.s32.totalorder %s404, %s407
      %p413 = scmp.eq.s32.totalorder %s33, 0
      %p414 = por %p412, %p413
      %p415 = scmp.ne.s32.totalorder %s404, %s407
      %p416 = scmp.eq.s32.totalorder %s38, 3
      %p417 = por %p415, %p416
      %p418 = scmp.ne.s32.totalorder %s407, %s408
      %p419 = scmp.eq.s32.totalorder %s38, 0
      %p420 = por %p418, %p419
      %p421 = scmp.ne.s32.totalorder %s407, %s408
      %p422 = scmp.eq.s32.totalorder %s39, 3
      %p423 = por %p421, %p422
      %p425 = scmp.ne.s32.totalorder %s408, %s424
      %p426 = scmp.eq.s32.totalorder %s39, 0
      %p427 = por %p425, %p426
      %s428 = ssub.s32 %s41, %s48
      %p429 = scmp.eq.s32.totalorder %s428, 0
      %s431 = sadd.s32 %s430, 1
      %s432 = scalar_select %p429, %s430, %s431
      %p435 = pneg %p429
      %p436 = scmp.eq.s32.totalorder %s33, 3
      %p437 = por %p435, %p436
      %p438 = scmp.ne.s32.totalorder %s430, %s433
      %p439 = scmp.eq.s32.totalorder %s33, 0
      %p440 = por %p438, %p439
      %p441 = scmp.ne.s32.totalorder %s430, %s433
      %p442 = scmp.eq.s32.totalorder %s38, 3
      %p443 = por %p441, %p442
      %p444 = scmp.ne.s32.totalorder %s433, %s434
      %p445 = scmp.eq.s32.totalorder %s38, 0
      %p446 = por %p444, %p445
      %p447 = scmp.ne.s32.totalorder %s433, %s434
      %p448 = scmp.eq.s32.totalorder %s39, 3
      %p449 = por %p447, %p448
      %p451 = scmp.ne.s32.totalorder %s434, %s450
      %p452 = scmp.eq.s32.totalorder %s39, 0
      %p453 = por %p451, %p452
      %s454 = ssub.s32 %s41, %s48
      %p455 = scmp.eq.s32.totalorder %s454, 0
      %s457 = sadd.s32 %s456, 1
      %s458 = scalar_select %p455, %s456, %s457
      %p461 = pneg %p455
      %p462 = scmp.eq.s32.totalorder %s33, 3
      %p463 = por %p461, %p462
      %p464 = scmp.ne.s32.totalorder %s456, %s459
      %p465 = scmp.eq.s32.totalorder %s33, 0
      %p466 = por %p464, %p465
      %p467 = scmp.ne.s32.totalorder %s456, %s459
      %p468 = scmp.eq.s32.totalorder %s38, 3
      %p469 = por %p467, %p468
      %p470 = scmp.ne.s32.totalorder %s459, %s460
      %p471 = scmp.eq.s32.totalorder %s38, 0
      %p472 = por %p470, %p471
      %p473 = scmp.ne.s32.totalorder %s459, %s460
      %p474 = scmp.eq.s32.totalorder %s39, 3
      %p475 = por %p473, %p474
      %p477 = scmp.ne.s32.totalorder %s460, %s476
      %p478 = scmp.eq.s32.totalorder %s39, 0
      %p479 = por %p477, %p478
      %s480 = ssub.s32 %s40, %s52
      %p481 = scmp.eq.s32.totalorder %s480, 0
      %s483 = sadd.s32 %s482, 1
      %s484 = scalar_select %p481, %s482, %s483
      %p487 = pneg %p481
      %p488 = scmp.eq.s32.totalorder %s33, 3
      %p489 = por %p487, %p488
      %p490 = scmp.ne.s32.totalorder %s482, %s485
      %p491 = scmp.eq.s32.totalorder %s33, 0
      %p492 = por %p490, %p491
      %p493 = scmp.ne.s32.totalorder %s482, %s485
      %p494 = scmp.eq.s32.totalorder %s38, 3
      %p495 = por %p493, %p494
      %p496 = scmp.ne.s32.totalorder %s485, %s486
      %p497 = scmp.eq.s32.totalorder %s38, 0
      %p498 = por %p496, %p497
      %p499 = scmp.ne.s32.totalorder %s485, %s486
      %p500 = scmp.eq.s32.totalorder %s39, 3
      %p501 = por %p499, %p500
      %p503 = scmp.ne.s32.totalorder %s486, %s502
      %p504 = scmp.eq.s32.totalorder %s39, 0
      %p505 = por %p503, %p504
      %p506 = scmp.le.s32.totalorder 1, %s33
      %p507 = scmp.lt.s32.totalorder %s33, 5
      %p508 = pnand %p506, %p507
      %p509 = pneg %p508
      // Predicated region
      $region9: #{conformer_encoder_forward.1} parent=5 // pred_check
        _
      $region10: #{conformer_encoder_forward.1} parent=5 // pred_check_branch
        %511 = sbr.rel (%p508) target = $region12
      $region11: #{conformer_encoder_forward.1} parent=5 // pred_region
        %s512 = ssub.s32 %s33, 1
        // Predicated region
        $region13: #{conformer_encoder_forward.1} parent=11 // pred_check
          %p513 = pneg %p92
        $region14: #{conformer_encoder_forward.1} parent=11 // pred_check_branch
          %515 = sbr.rel (%p513) target = $region16
        $region15: #{conformer_encoder_forward.1} parent=11 // pred_region
          _
        $region16: #{conformer_encoder_forward.1} parent=11 // pred_fallthru
          _
        // Predicated region
        $region17: #{conformer_encoder_forward.1} parent=11 // pred_check
          %p516 = pneg %p113
        $region18: #{conformer_encoder_forward.1} parent=11 // pred_check_branch
          %518 = sbr.rel (%p516) target = $region20
        $region19: #{conformer_encoder_forward.1} parent=11 // pred_region
          _
        $region20: #{conformer_encoder_forward.1} parent=11 // pred_fallthru
          _
        // Predicated region
        $region21: #{conformer_encoder_forward.1} parent=11 // pred_check
          %p519 = pneg %p134
        $region22: #{conformer_encoder_forward.1} parent=11 // pred_check_branch
          %521 = sbr.rel (%p519) target = $region24
        $region23: #{conformer_encoder_forward.1} parent=11 // pred_region
          _
        $region24: #{conformer_encoder_forward.1} parent=11 // pred_fallthru
          _
      $region12: #{conformer_encoder_forward.1} parent=5 // pred_fallthru
        _
      %p522 = scmp.lt.s32.totalorder %s33, 4
      // Predicated region
      $region25: #{conformer_encoder_forward.1} parent=5 // pred_check
        %p523 = pneg %p522
      $region26: #{conformer_encoder_forward.1} parent=5 // pred_check_branch
        %525 = sbr.rel (%p523) target = $region28
      $region27: #{conformer_encoder_forward.1} parent=5 // pred_region
        // Predicated region
        $region29: #{conformer_encoder_forward.1} parent=27 // pred_check
          %p526 = pneg %p65
        $region30: #{conformer_encoder_forward.1} parent=27 // pred_check_branch
          %528 = sbr.rel (%p526) target = $region32
        $region31: #{conformer_encoder_forward.1} parent=27 // pred_region
          %p529 = scmp.lt.s32.totalorder %s40, 1
          %s530 = scalar_select %p529, %s40, 1
          %s531 = smul.addr %s530, 4
          %s532 = scalar_lea.vmem %s1, %s531
        $region32: #{conformer_encoder_forward.1} parent=27 // pred_fallthru
          _
        // Predicated region
        $region33: #{conformer_encoder_forward.1} parent=27 // pred_check
          %p533 = pneg %p154
        $region34: #{conformer_encoder_forward.1} parent=27 // pred_check_branch
          %535 = sbr.rel (%p533) target = $region36
        $region35: #{conformer_encoder_forward.1} parent=27 // pred_region
          %p536 = scmp.lt.s32.totalorder %s41, 1
          %s537 = scalar_select %p536, %s41, 1
          %s538 = smul.addr %s537, 16
          %s539 = smul.addr %s538, 4
          %s540 = scalar_lea.vmem %s5, %s539
        $region36: #{conformer_encoder_forward.1} parent=27 // pred_fallthru
          _
        // Predicated region
        $region37: #{conformer_encoder_forward.1} parent=27 // pred_check
          %p541 = pneg %p180
        $region38: #{conformer_encoder_forward.1} parent=27 // pred_check_branch
          %543 = sbr.rel (%p541) target = $region40
        $region39: #{conformer_encoder_forward.1} parent=27 // pred_region
          %p544 = scmp.lt.s32.totalorder %s41, 1
          %s545 = scalar_select %p544, %s41, 1
          %s546 = smul.addr %s545, 16
          %s547 = smul.addr %s546, 4
          %s548 = scalar_lea.vmem %s6, %s547
        $region40: #{conformer_encoder_forward.1} parent=27 // pred_fallthru
          _
        // Predicated region
        $region41: #{conformer_encoder_forward.1} parent=27 // pred_check
          %p549 = pneg %p206
        $region42: #{conformer_encoder_forward.1} parent=27 // pred_check_branch
          %551 = sbr.rel (%p549) target = $region44
        $region43: #{conformer_encoder_forward.1} parent=27 // pred_region
          %p552 = scmp.lt.s32.totalorder %s41, 1
          %s553 = scalar_select %p552, %s41, 1
          %s554 = smul.addr %s553, 16
          %s555 = smul.addr %s554, 4
          %s556 = scalar_lea.vmem %s7, %s555
        $region44: #{conformer_encoder_forward.1} parent=27 // pred_fallthru
          _
        // Predicated region
        $region45: #{conformer_encoder_forward.1} parent=27 // pred_check
          %p557 = pneg %p232
        $region46: #{conformer_encoder_forward.1} parent=27 // pred_check_branch
          %559 = sbr.rel (%p557) target = $region48
        $region47: #{conformer_encoder_forward.1} parent=27 // pred_region
          %p560 = scmp.lt.s32.totalorder %s41, 1
          %s561 = scalar_select %p560, %s41, 1
          %s562 = smul.addr %s561, 4
          %s563 = smul.addr %s562, 4
          %s564 = scalar_lea.vmem %s8, %s563
        $region48: #{conformer_encoder_forward.1} parent=27 // pred_fallthru
          _
        // Predicated region
        $region49: #{conformer_encoder_forward.1} parent=27 // pred_check
          %p565 = pneg %p258
        $region50: #{conformer_encoder_forward.1} parent=27 // pred_check_branch
          %567 = sbr.rel (%p565) target = $region52
        $region51: #{conformer_encoder_forward.1} parent=27 // pred_region
          %p568 = scmp.lt.s32.totalorder %s41, 1
          %s569 = scalar_select %p568, %s41, 1
          %s570 = smul.addr %s569, 4
          %s571 = smul.addr %s570, 4
          %s572 = scalar_lea.vmem %s9, %s571
        $region52: #{conformer_encoder_forward.1} parent=27 // pred_fallthru
          _
        // Predicated region
        $region53: #{conformer_encoder_forward.1} parent=27 // pred_check
          %p573 = pneg %p284
        $region54: #{conformer_encoder_forward.1} parent=27 // pred_check_branch
          %575 = sbr.rel (%p573) target = $region56
        $region55: #{conformer_encoder_forward.1} parent=27 // pred_region
          %p576 = scmp.lt.s32.totalorder %s41, 1
          %s577 = scalar_select %p576, %s41, 1
          %s578 = smul.addr %s577, 8
          %s579 = smul.addr %s578, 4
          %s580 = scalar_lea.vmem %s10, %s579
        $region56: #{conformer_encoder_forward.1} parent=27 // pred_fallthru
          _
        // Predicated region
        $region57: #{conformer_encoder_forward.1} parent=27 // pred_check
          %p581 = pneg %p310
        $region58: #{conformer_encoder_forward.1} parent=27 // pred_check_branch
          %583 = sbr.rel (%p581) target = $region60
        $region59: #{conformer_encoder_forward.1} parent=27 // pred_region
          %p584 = scmp.lt.s32.totalorder %s41, 1
          %s585 = scalar_select %p584, %s41, 1
          %s586 = smul.addr %s585, 4
          %s587 = smul.addr %s586, 4
          %s588 = scalar_lea.vmem %s11, %s587
        $region60: #{conformer_encoder_forward.1} parent=27 // pred_fallthru
          _
        // Predicated region
        $region61: #{conformer_encoder_forward.1} parent=27 // pred_check
          %p589 = pneg %p336
        $region62: #{conformer_encoder_forward.1} parent=27 // pred_check_branch
          %591 = sbr.rel (%p589) target = $region64
        $region63: #{conformer_encoder_forward.1} parent=27 // pred_region
          %p592 = scmp.lt.s32.totalorder %s41, 1
          %s593 = scalar_select %p592, %s41, 1
          %s594 = smul.addr %s593, 8
          %s595 = smul.addr %s594, 4
          %s596 = scalar_lea.vmem %s12, %s595
        $region64: #{conformer_encoder_forward.1} parent=27 // pred_fallthru
          _
        // Predicated region
        $region65: #{conformer_encoder_forward.1} parent=27 // pred_check
          %p597 = pneg %p362
        $region66: #{conformer_encoder_forward.1} parent=27 // pred_check_branch
          %599 = sbr.rel (%p597) target = $region68
        $region67: #{conformer_encoder_forward.1} parent=27 // pred_region
          %p600 = scmp.lt.s32.totalorder %s41, 1
          %s601 = scalar_select %p600, %s41, 1
          %s602 = smul.addr %s601, 4
          %s603 = smul.addr %s602, 4
          %s604 = scalar_lea.vmem %s13, %s603
        $region68: #{conformer_encoder_forward.1} parent=27 // pred_fallthru
          _
        // Predicated region
        $region69: #{conformer_encoder_forward.1} parent=27 // pred_check
          %p605 = pneg %p388
        $region70: #{conformer_encoder_forward.1} parent=27 // pred_check_branch
          %607 = sbr.rel (%p605) target = $region72
        $region71: #{conformer_encoder_forward.1} parent=27 // pred_region
          %p608 = scmp.lt.s32.totalorder %s41, 1
          %s609 = scalar_select %p608, %s41, 1
          %s610 = smul.addr %s609, 4
          %s611 = smul.addr %s610, 4
          %s612 = scalar_lea.vmem %s14, %s611
        $region72: #{conformer_encoder_forward.1} parent=27 // pred_fallthru
          _
        // Predicated region
        $region73: #{conformer_encoder_forward.1} parent=27 // pred_check
          %p613 = pneg %p414
        $region74: #{conformer_encoder_forward.1} parent=27 // pred_check_branch
          %615 = sbr.rel (%p613) target = $region76
        $region75: #{conformer_encoder_forward.1} parent=27 // pred_region
          %p616 = scmp.lt.s32.totalorder %s41, 1
          %s617 = scalar_select %p616, %s41, 1
          %s618 = smul.addr %s617, 4
          %s619 = smul.addr %s618, 4
          %s620 = scalar_lea.vmem %s15, %s619
        $region76: #{conformer_encoder_forward.1} parent=27 // pred_fallthru
          _
        // Predicated region
        $region77: #{conformer_encoder_forward.1} parent=27 // pred_check
          %p621 = pneg %p440
        $region78: #{conformer_encoder_forward.1} parent=27 // pred_check_branch
          %623 = sbr.rel (%p621) target = $region80
        $region79: #{conformer_encoder_forward.1} parent=27 // pred_region
          %p624 = scmp.lt.s32.totalorder %s41, 1
          %s625 = scalar_select %p624, %s41, 1
          %s626 = smul.addr %s625, 4
          %s627 = smul.addr %s626, 8
          %s628 = scalar_lea.vmem %s16, %s627
        $region80: #{conformer_encoder_forward.1} parent=27 // pred_fallthru
          _
        // Predicated region
        $region81: #{conformer_encoder_forward.1} parent=27 // pred_check
          %p629 = pneg %p466
        $region82: #{conformer_encoder_forward.1} parent=27 // pred_check_branch
          %631 = sbr.rel (%p629) target = $region84
        $region83: #{conformer_encoder_forward.1} parent=27 // pred_region
          %p632 = scmp.lt.s32.totalorder %s41, 1
          %s633 = scalar_select %p632, %s41, 1
          %s634 = smul.addr %s633, 2
          %s635 = scalar_lea.vmem %s17, %s634
        $region84: #{conformer_encoder_forward.1} parent=27 // pred_fallthru
          _
      $region28: #{conformer_encoder_forward.1} parent=5 // pred_fallthru
        _
      %p636 = scmp.le.s32.totalorder 1, %s33
      %p637 = scmp.lt.s32.totalorder %s33, 5
      %p638 = pnand %p636, %p637
      %p639 = pneg %p638
      // Predicated region
      $region85: #{conformer_encoder_forward.1} parent=5 // pred_check
        _
      $region86: #{conformer_encoder_forward.1} parent=5 // pred_check_branch
        %641 = sbr.rel (%p638) target = $region88
      $region87: #{conformer_encoder_forward.1} parent=5 // pred_region
        %s642 = ssub.s32 %s33, 1
        %p643 = scmp.lt.s32.totalorder %s42, 1
        %s644 = scalar_select %p643, %s42, 1
        %s645 = smul.addr %s644, 4
        %s646 = scalar_lea.vmem %s1, %s645
        %p647 = pneg %p71
        %p648 = pneg %p68
        %p649 = pneg %p92
        %p650 = pneg %p89
        %p651 = pneg %p113
        %p652 = pneg %p110
        %p653 = pneg %p134
        %p654 = pneg %p131
        %p655 = scmp.lt.s32.totalorder %s43, 1
        %s656 = scalar_select %p655, %s43, 1
        %s657 = smul.addr %s656, 16
        %s658 = smul.addr %s657, 4
        %s659 = scalar_lea.vmem %s5, %s658
        %p660 = pneg %p160
        %p661 = pneg %p157
        %p662 = scmp.lt.s32.totalorder %s43, 1
        %s663 = scalar_select %p662, %s43, 1
        %s664 = smul.addr %s663, 16
        %s665 = smul.addr %s664, 4
        %s666 = scalar_lea.vmem %s6, %s665
        %p667 = pneg %p186
        %p668 = pneg %p183
        %p669 = scmp.lt.s32.totalorder %s43, 1
        %s670 = scalar_select %p669, %s43, 1
        %s671 = smul.addr %s670, 16
        %s672 = smul.addr %s671, 4
        %s673 = scalar_lea.vmem %s7, %s672
        %p674 = pneg %p212
        %p675 = pneg %p209
        %p676 = scmp.lt.s32.totalorder %s43, 1
        %s677 = scalar_select %p676, %s43, 1
        %s678 = smul.addr %s677, 4
        %s679 = smul.addr %s678, 4
        %s680 = scalar_lea.vmem %s8, %s679
        %p681 = pneg %p238
        %p682 = pneg %p235
        %p683 = scmp.lt.s32.totalorder %s43, 1
        %s684 = scalar_select %p683, %s43, 1
        %s685 = smul.addr %s684, 4
        %s686 = smul.addr %s685, 4
        %s687 = scalar_lea.vmem %s9, %s686
        %p688 = pneg %p264
        %p689 = pneg %p261
        %p690 = scmp.lt.s32.totalorder %s43, 1
        %s691 = scalar_select %p690, %s43, 1
        %s692 = smul.addr %s691, 8
        %s693 = smul.addr %s692, 4
        %s694 = scalar_lea.vmem %s10, %s693
        %p695 = pneg %p290
        %p696 = pneg %p287
        %p697 = scmp.lt.s32.totalorder %s43, 1
        %s698 = scalar_select %p697, %s43, 1
        %s699 = smul.addr %s698, 4
        %s700 = smul.addr %s699, 4
        %s701 = scalar_lea.vmem %s11, %s700
        %p702 = pneg %p316
        %p703 = pneg %p313
        %p704 = scmp.lt.s32.totalorder %s43, 1
        %s705 = scalar_select %p704, %s43, 1
        %s706 = smul.addr %s705, 8
        %s707 = smul.addr %s706, 4
        %s708 = scalar_lea.vmem %s12, %s707
        %p709 = pneg %p342
        %p710 = pneg %p339
        %p711 = scmp.lt.s32.totalorder %s43, 1
        %s712 = scalar_select %p711, %s43, 1
        %s713 = smul.addr %s712, 4
        %s714 = smul.addr %s713, 4
        %s715 = scalar_lea.vmem %s13, %s714
        %p716 = pneg %p368
        %p717 = pneg %p365
        %p718 = scmp.lt.s32.totalorder %s43, 1
        %s719 = scalar_select %p718, %s43, 1
        %s720 = smul.addr %s719, 4
        %s721 = smul.addr %s720, 4
        %s722 = scalar_lea.vmem %s14, %s721
        %p723 = pneg %p394
        %p724 = pneg %p391
        %p725 = scmp.lt.s32.totalorder %s43, 1
        %s726 = scalar_select %p725, %s43, 1
        %s727 = smul.addr %s726, 4
        %s728 = smul.addr %s727, 4
        %s729 = scalar_lea.vmem %s15, %s728
        %p730 = pneg %p420
        %p731 = pneg %p417
        %p732 = scmp.lt.s32.totalorder %s43, 1
        %s733 = scalar_select %p732, %s43, 1
        %s734 = smul.addr %s733, 4
        %s735 = smul.addr %s734, 8
        %s736 = scalar_lea.vmem %s16, %s735
        %p737 = pneg %p446
        %p738 = pneg %p443
        %p739 = scmp.lt.s32.totalorder %s43, 1
        %s740 = scalar_select %p739, %s43, 1
        %s741 = smul.addr %s740, 2
        %s742 = scalar_lea.vmem %s17, %s741
        %p743 = pneg %p472
        %p744 = pneg %p469
        %p745 = pneg %p498
        %p746 = pneg %p495
        %s747 = sand.u32 %s485, 1
        %s748 = scalar_lea.sflag [#allocation6], %s747
        %s749 = sand.u32 %s485, 1
        %s750 = smul.addr %s749, 8
        %s751 = scalar_lea.vmem [#allocation5], %s750
        %p752 = scmp.lt.s32.totalorder %s42, 1
        %s753 = scalar_select %p752, %s42, 1
        %s754 = smul.addr %s753, 4
        %s755 = scalar_lea.vmem %s1, %s754
        %p756 = scmp.lt.s32.totalorder %s43, 1
        %s757 = scalar_select %p756, %s43, 1
        %s758 = smul.addr %s757, 16
        %s759 = smul.addr %s758, 4
        %s760 = scalar_lea.vmem %s5, %s759
        %p761 = scmp.lt.s32.totalorder %s43, 1
        %s762 = scalar_select %p761, %s43, 1
        %s763 = smul.addr %s762, 16
        %s764 = smul.addr %s763, 4
        %s765 = scalar_lea.vmem %s6, %s764
        %p766 = scmp.lt.s32.totalorder %s43, 1
        %s767 = scalar_select %p766, %s43, 1
        %s768 = smul.addr %s767, 16
        %s769 = smul.addr %s768, 4
        %s770 = scalar_lea.vmem %s7, %s769
        %p771 = scmp.lt.s32.totalorder %s43, 1
        %s772 = scalar_select %p771, %s43, 1
        %s773 = smul.addr %s772, 4
        %s774 = smul.addr %s773, 4
        %s775 = scalar_lea.vmem %s8, %s774
        %p776 = scmp.lt.s32.totalorder %s43, 1
        %s777 = scalar_select %p776, %s43, 1
        %s778 = smul.addr %s777, 4
        %s779 = smul.addr %s778, 4
        %s780 = scalar_lea.vmem %s9, %s779
        %p781 = scmp.lt.s32.totalorder %s43, 1
        %s782 = scalar_select %p781, %s43, 1
        %s783 = smul.addr %s782, 8
        %s784 = smul.addr %s783, 4
        %s785 = scalar_lea.vmem %s10, %s784
        %p786 = scmp.lt.s32.totalorder %s43, 1
        %s787 = scalar_select %p786, %s43, 1
        %s788 = smul.addr %s787, 4
        %s789 = smul.addr %s788, 4
        %s790 = scalar_lea.vmem %s11, %s789
        %p791 = scmp.lt.s32.totalorder %s43, 1
        %s792 = scalar_select %p791, %s43, 1
        %s793 = smul.addr %s792, 8
        %s794 = smul.addr %s793, 4
        %s795 = scalar_lea.vmem %s12, %s794
        %p796 = scmp.lt.s32.totalorder %s43, 1
        %s797 = scalar_select %p796, %s43, 1
        %s798 = smul.addr %s797, 4
        %s799 = smul.addr %s798, 4
        %s800 = scalar_lea.vmem %s13, %s799
        %p801 = scmp.lt.s32.totalorder %s43, 1
        %s802 = scalar_select %p801, %s43, 1
        %s803 = smul.addr %s802, 4
        %s804 = smul.addr %s803, 4
        %s805 = scalar_lea.vmem %s14, %s804
        %p806 = scmp.lt.s32.totalorder %s43, 1
        %s807 = scalar_select %p806, %s43, 1
        %s808 = smul.addr %s807, 4
        %s809 = smul.addr %s808, 4
        %s810 = scalar_lea.vmem %s15, %s809
        %p811 = scmp.lt.s32.totalorder %s43, 1
        %s812 = scalar_select %p811, %s43, 1
        %s813 = smul.addr %s812, 4
        %s814 = smul.addr %s813, 8
        %s815 = scalar_lea.vmem %s16, %s814
        %p816 = scmp.lt.s32.totalorder %s43, 1
        %s817 = scalar_select %p816, %s43, 1
        %s818 = smul.addr %s817, 2
        %s819 = scalar_lea.vmem %s17, %s818
        %v821 = vld [vmem:[%s815] sm:$0xff]
        %v822 = vld [vmem:[%s815 + $0x8] sm:$0xff]
        %v823 = vld [vmem:[%s815 + $0x10] sm:$0xff]
        %v824 = vld [vmem:[%s815 + $0x18] sm:$0x1f]
        %v825 = vld [vmem:[%s819] sm:$0x3]
        %v826 = vld [vmem:[%s4] sm:$0xf]
        %p827 = scmp.eq.s32.totalorder %s43, 0
        // Predicated region
        $region89: #{conformer_encoder_forward.1} parent=87 // pred_check
          %p828 = pneg %p827
        $region90: #{conformer_encoder_forward.1} parent=87 // pred_check_branch
          %830 = sbr.rel (%p828) target = $region92
        $region91: #{conformer_encoder_forward.1} parent=87 // pred_region
          %v831 = vld [vmem:[%s755] sm:$0xf]
          %v832 = vld [vmem:[%s2] sm:$0xf]
          %v833 = vld [vmem:[%s2 + $0x4] sm:$0xf]
          %v834 = vld [vmem:[%s2 + $0x8] sm:$0xf]
          %v835 = vld [vmem:[%s2 + $0xc] sm:$0xf]
          %v836 = vlaneseq
          %v837 = vshrl.u32 %v836, 7
          %v838 = vsub.s32 0, %v837
          %v839 = vrot.slane %v826, %v838
          %v844 = vunpack.c.l.b16 %v832
          %v845 = vunpack.c.l.b16 %v833
          %v846 = vunpack.c.l.b16 %v834
          %v847 = vunpack.c.l.b16 %v835
          %v848 = vpack.c.b16 %v845, %v844
          %v849 = vpack.c.b16 %v847, %v846
          %vm852 = vcmask 261120
          %v854 = vsel %vm852, %v831, 0
          %856 = vmatprep.subr.bf16.mxu0 0
          %857 = vmatpush1.bf16.msra.mxu0 %v848
          %858 = vmatprep.subr.bf16.mxu0 0
          %859 = vmatpush1.bf16.msra.mxu0 %v849
          %860 = vmatprep.subr.bf16.mxu0 0
          %861 = vmatpush1.bf16.msra.mxu0 0
          %862 = vmatprep.subr.bf16.mxu0 0
          %863 = vmatpush1.bf16.msra.mxu0 0
          %864 = vmatprep.subr.bf16.mxu0 0
          %865 = vmatpush1.bf16.msra.mxu0 0
          %866 = vmatprep.subr.bf16.mxu0 0
          %867 = vmatpush1.bf16.msra.mxu0 0
          %868 = vmatprep.subr.bf16.mxu0 0
          %869 = vmatpush1.bf16.msra.mxu0 0
          %870 = vmatprep.subr.bf16.mxu0 0
          %871 = vmatpush1.bf16.msra.mxu0 0
          %872 = vmatprep.subr.bf16.mxu0 0
          %873 = vmatpush1.bf16.msra.mxu0 0
          %874 = vmatprep.subr.bf16.mxu0 0
          %875 = vmatpush1.bf16.msra.mxu0 0
          %876 = vmatprep.subr.bf16.mxu0 0
          %877 = vmatpush1.bf16.msra.mxu0 0
          %878 = vmatprep.subr.bf16.mxu0 0
          %879 = vmatpush1.bf16.msra.mxu0 0
          %880 = vmatprep.subr.bf16.mxu0 0
          %881 = vmatpush1.bf16.msra.mxu0 0
          %882 = vmatprep.subr.bf16.mxu0 0
          %883 = vmatpush1.bf16.msra.mxu0 0
          %884 = vmatprep.subr.bf16.mxu0 0
          %885 = vmatpush1.bf16.msra.mxu0 0
          %886 = vmatprep.subr.bf16.mxu0 0
          %887 = vmatpush1.bf16.msra.mxu0 0
          %888 = vmatprep.mubr.bf16.mxu0 0
          %889 = vmatmul.mubr.bf16.gmra.mrb[0].mxu0 %v854
          %v890 = vpop.f32.mrb[0].mxu0
          %v891 = vadd.f32 %v839, %v890
          %v892 = vpop.f32.mrb[0].mxu0
          %v893 = vpop.f32.mrb[0].mxu0
          %v894 = vpop.f32.mrb[0].mxu0
          %895 = vdwg.mxu0
          %896 = vst.msk [vmem:[#allocation2] sm:$0xff] %vm852, %v891
        $region92: #{conformer_encoder_forward.1} parent=87 // pred_fallthru
          _
        %v897 = vld [vmem:[#allocation2] sm:$0xff]
        %v898 = vlaneseq
        %v899 = vand.u32 %v898, 127
        %s900 = sld [smem:[#allocation4 + %s42]]
        %v901 = vstv %s900
        %vm902 = vcmp.lt.s32.totalorder %v899, %v901
        %v903 = vsel %vm902, 0.0, -1e+30
        %vm904 = vcmask 261120
        %v905 = vsel %vm904, %v897, 0.0
        %906 = vadd.xlane.f32.xlu0 %v905
        %v907 = vpop.xlane.xlu0 %906
        %v908 = vrcp.pop 32.0
        %v909 = vmul.f32 %v907, %v908
        %v910 = vsub.f32 %v897, %v909
        %v911 = vmul.f32 %v910, %v910
        %v912 = vsel %vm904, %v911, 0.0
        %913 = vadd.xlane.f32.xlu0 %v912
        %v914 = vpop.xlane.xlu0 %913
        %v915 = vmul.f32 %v914, %v908
        %v916 = vadd.f32 %v915, 1e-05
        %v917 = vrsqrt.pop %v916
        %v918 = vmul.f32 %v910, %v917
        %v919 = vlaneseq
        %v920 = vshrl.u32 %v919, 7
        %v921 = vsub.s32 0, %v920
        %v922 = vrot.slane %v821, %v921
        %v923 = vmul.f32 %v918, %v922
        %v924 = vlaneseq
        %v925 = vshrl.u32 %v924, 7
        %v926 = vsub.s32 1, %v925
        %v927 = vrot.slane %v821, %v926
        %v928 = vadd.f32 %v923, %v927
        %v929 = vld [vmem:[%s780] sm:$0xf]
        %v930 = vld [vmem:[%s780 + $0x4] sm:$0xf]
        %v931 = vld [vmem:[%s780 + $0x8] sm:$0xf]
        %v932 = vld [vmem:[%s780 + $0xc] sm:$0xf]
        %v933 = vpack.c.bf16 %v928, %v928
        %v934 = vlaneseq
        %v935 = vshrl.u32 %v934, 7
        %v936 = vsub.s32 0, %v935
        %v937 = vrot.slane %v825, %v936
        %v942 = vunpack.c.l.b16 %v929
        %v943 = vunpack.c.l.b16 %v930
        %v944 = vunpack.c.l.b16 %v931
        %v945 = vunpack.c.l.b16 %v932
        %v946 = vpack.c.b16 %v943, %v942
        %v947 = vpack.c.b16 %v945, %v944
        %v951 = vsel %vm904, %v933, 0
        %953 = vmatprep.subr.bf16.mxu0 0
        %954 = vmatpush1.bf16.msra.mxu0 %v946
        %955 = vmatprep.subr.bf16.mxu0 0
        %956 = vmatpush1.bf16.msra.mxu0 %v947
        %957 = vmatprep.subr.bf16.mxu0 0
        %958 = vmatpush1.bf16.msra.mxu0 0
        %959 = vmatprep.subr.bf16.mxu0 0
        %960 = vmatpush1.bf16.msra.mxu0 0
        %961 = vmatprep.subr.bf16.mxu0 0
        %962 = vmatpush1.bf16.msra.mxu0 0
        %963 = vmatprep.subr.bf16.mxu0 0
        %964 = vmatpush1.bf16.msra.mxu0 0
        %965 = vmatprep.subr.bf16.mxu0 0
        %966 = vmatpush1.bf16.msra.mxu0 0
        %967 = vmatprep.subr.bf16.mxu0 0
        %968 = vmatpush1.bf16.msra.mxu0 0
        %969 = vmatprep.subr.bf16.mxu0 0
        %970 = vmatpush1.bf16.msra.mxu0 0
        %971 = vmatprep.subr.bf16.mxu0 0
        %972 = vmatpush1.bf16.msra.mxu0 0
        %973 = vmatprep.subr.bf16.mxu0 0
        %974 = vmatpush1.bf16.msra.mxu0 0
        %975 = vmatprep.subr.bf16.mxu0 0
        %976 = vmatpush1.bf16.msra.mxu0 0
        %977 = vmatprep.subr.bf16.mxu0 0
        %978 = vmatpush1.bf16.msra.mxu0 0
        %979 = vmatprep.subr.bf16.mxu0 0
        %980 = vmatpush1.bf16.msra.mxu0 0
        %981 = vmatprep.subr.bf16.mxu0 0
        %982 = vmatpush1.bf16.msra.mxu0 0
        %983 = vmatprep.subr.bf16.mxu0 0
        %984 = vmatpush1.bf16.msra.mxu0 0
        %985 = vmatprep.mubr.bf16.mxu0 0
        %986 = vmatmul.mubr.bf16.gmra.mrb[0].mxu0 %v951
        %v987 = vpop.f32.mrb[0].mxu0
        %v988 = vadd.f32 %v937, %v987
        %v989 = vpop.f32.mrb[0].mxu0
        %v990 = vpop.f32.mrb[0].mxu0
        %v991 = vpop.f32.mrb[0].mxu0
        %992 = vdwg.mxu0
        %v993 = vxor.u32 %v988, 2147483648
        %v994 = vmul.f32 %v993, 1.442695
        %v995 = vpow.pop %v994
        %v996 = vadd.f32 %v995, 1.0
        %v997 = vrcp.pop %v996
        %v998 = vmul.f32 1.0, %v997
        %v999 = vmul.f32 %v988, %v998
        %v1000 = vld [vmem:[%s785] sm:$0xf]
        %v1001 = vld [vmem:[%s785 + $0x4] sm:$0xf]
        %v1002 = vld [vmem:[%s785 + $0x8] sm:$0xf]
        %v1003 = vld [vmem:[%s785 + $0xc] sm:$0xf]
        %v1004 = vld [vmem:[%s785 + $0x10] sm:$0xf]
        %v1005 = vld [vmem:[%s785 + $0x14] sm:$0xf]
        %v1006 = vld [vmem:[%s785 + $0x18] sm:$0xf]
        %v1007 = vld [vmem:[%s785 + $0x1c] sm:$0xf]
        %v1008 = vpack.c.bf16 %v999, %v999
        %v1009 = vlaneseq
        %v1010 = vshrl.u32 %v1009, 7
        %v1011 = vsub.s32 2, %v1010
        %v1012 = vrot.slane %v821, %v1011
        %v1021 = vunpack.c.l.b16 %v1000
        %v1022 = vunpack.c.l.b16 %v1001
        %v1023 = vunpack.c.l.b16 %v1002
        %v1024 = vunpack.c.l.b16 %v1003
        %v1025 = vunpack.c.l.b16 %v1004
        %v1026 = vunpack.c.l.b16 %v1005
        %v1027 = vunpack.c.l.b16 %v1006
        %v1028 = vunpack.c.l.b16 %v1007
        %v1029 = vpack.c.b16 %v1022, %v1021
        %v1030 = vpack.c.b16 %v1024, %v1023
        %v1031 = vpack.c.b16 %v1026, %v1025
        %v1032 = vpack.c.b16 %v1028, %v1027
        %vm1037 = vcmask 523264
        %v1039 = vsel %vm1037, %v1008, 0
        %1041 = vmatprep.subr.bf16.mxu0 0
        %1042 = vmatpush1.bf16.msra.mxu0 %v1029
        %1043 = vmatprep.subr.bf16.mxu0 0
        %1044 = vmatpush1.bf16.msra.mxu0 %v1030
        %1045 = vmatprep.subr.bf16.mxu0 0
        %1046 = vmatpush1.bf16.msra.mxu0 %v1031
        %1047 = vmatprep.subr.bf16.mxu0 0
        %1048 = vmatpush1.bf16.msra.mxu0 %v1032
        %1049 = vmatprep.subr.bf16.mxu0 0
        %1050 = vmatpush1.bf16.msra.mxu0 0
        %1051 = vmatprep.subr.bf16.mxu0 0
        %1052 = vmatpush1.bf16.msra.mxu0 0
        %1053 = vmatprep.subr.bf16.mxu0 0
        %1054 = vmatpush1.bf16.msra.mxu0 0
        %1055 = vmatprep.subr.bf16.mxu0 0
        %1056 = vmatpush1.bf16.msra.mxu0 0
        %1057 = vmatprep.subr.bf16.mxu0 0
        %1058 = vmatpush1.bf16.msra.mxu0 0
        %1059 = vmatprep.subr.bf16.mxu0 0
        %1060 = vmatpush1.bf16.msra.mxu0 0
        %1061 = vmatprep.subr.bf16.mxu0 0
        %1062 = vmatpush1.bf16.msra.mxu0 0
        %1063 = vmatprep.subr.bf16.mxu0 0
        %1064 = vmatpush1.bf16.msra.mxu0 0
        %1065 = vmatprep.subr.bf16.mxu0 0
        %1066 = vmatpush1.bf16.msra.mxu0 0
        %1067 = vmatprep.subr.bf16.mxu0 0
        %1068 = vmatpush1.bf16.msra.mxu0 0
        %1069 = vmatprep.subr.bf16.mxu0 0
        %1070 = vmatpush1.bf16.msra.mxu0 0
        %1071 = vmatprep.subr.bf16.mxu0 0
        %1072 = vmatpush1.bf16.msra.mxu0 0
        %1073 = vmatprep.mubr.bf16.mxu0 0
        %1074 = vmatmul.mubr.bf16.gmra.mrb[0].mxu0 %v1039
        %v1075 = vpop.f32.mrb[0].mxu0
        %v1076 = vadd.f32 %v1012, %v1075
        %v1077 = vpop.f32.mrb[0].mxu0
        %v1078 = vpop.f32.mrb[0].mxu0
        %v1079 = vpop.f32.mrb[0].mxu0
        %1080 = vdwg.mxu0
        %v1081 = vmul.f32 %v1076, 0.5
        %v1082 = vadd.f32 %v897, %v1081
        %v1083 = vsel %vm904, %v1082, 0.0
        %1084 = vadd.xlane.f32.xlu0 %v1083
        %v1085 = vpop.xlane.xlu0 %1084
        %v1086 = vmul.f32 %v1085, %v908
        %v1087 = vsub.f32 %v1082, %v1086
        %v1088 = vmul.f32 %v1087, %v1087
        %v1089 = vsel %vm904, %v1088, 0.0
        %1090 = vadd.xlane.f32.xlu0 %v1089
        %v1091 = vpop.xlane.xlu0 %1090
        %v1092 = vmul.f32 %v1091, %v908
        %v1093 = vadd.f32 %v1092, 1e-05
        %v1094 = vrsqrt.pop %v1093
        %v1095 = vmul.f32 %v1087, %v1094
        %v1096 = vlaneseq
        %v1097 = vshrl.u32 %v1096, 7
        %v1098 = vsub.s32 3, %v1097
        %v1099 = vrot.slane %v821, %v1098
        %v1100 = vmul.f32 %v1095, %v1099
        %v1101 = vlaneseq
        %v1102 = vshrl.u32 %v1101, 7
        %v1103 = vsub.s32 4, %v1102
        %v1104 = vrot.slane %v821, %v1103
        %v1105 = vadd.f32 %v1100, %v1104
        %v1106 = vld [vmem:[%s760] sm:$0xf]
        %v1107 = vld [vmem:[%s760 + $0x4] sm:$0xf]
        %v1108 = vld [vmem:[%s760 + $0x8] sm:$0xf]
        %v1109 = vld [vmem:[%s760 + $0xc] sm:$0xf]
        %v1110 = vpack.c.bf16 %v1105, %v1105
        %v1111 = vlaneseq
        %v1112 = vshrl.u32 %v1111, 7
        %v1113 = vsub.s32 5, %v1112
        %v1114 = vrot.slane %v821, %v1113
        %v1119 = vunpack.c.l.b16 %v1106
        %v1120 = vunpack.c.l.b16 %v1107
        %v1121 = vunpack.c.l.b16 %v1108
        %v1122 = vunpack.c.l.b16 %v1109
        %v1123 = vpack.c.b16 %v1120, %v1119
        %v1124 = vpack.c.b16 %v1122, %v1121
        %v1128 = vsel %vm904, %v1110, 0
        %1130 = vmatprep.subr.bf16.mxu0 0
        %1131 = vmatpush1.bf16.msra.mxu0 %v1123
        %1132 = vmatprep.subr.bf16.mxu0 0
        %1133 = vmatpush1.bf16.msra.mxu0 %v1124
        %1134 = vmatprep.subr.bf16.mxu0 0
        %1135 = vmatpush1.bf16.msra.mxu0 0
        %1136 = vmatprep.subr.bf16.mxu0 0
        %1137 = vmatpush1.bf16.msra.mxu0 0
        %1138 = vmatprep.subr.bf16.mxu0 0
        %1139 = vmatpush1.bf16.msra.mxu0 0
        %1140 = vmatprep.subr.bf16.mxu0 0
        %1141 = vmatpush1.bf16.msra.mxu0 0
        %1142 = vmatprep.subr.bf16.mxu0 0
        %1143 = vmatpush1.bf16.msra.mxu0 0
        %1144 = vmatprep.subr.bf16.mxu0 0
        %1145 = vmatpush1.bf16.msra.mxu0 0
        %1146 = vmatprep.subr.bf16.mxu0 0
        %1147 = vmatpush1.bf16.msra.mxu0 0
        %1148 = vmatprep.subr.bf16.mxu0 0
        %1149 = vmatpush1.bf16.msra.mxu0 0
        %1150 = vmatprep.subr.bf16.mxu0 0
        %1151 = vmatpush1.bf16.msra.mxu0 0
        %1152 = vmatprep.subr.bf16.mxu0 0
        %1153 = vmatpush1.bf16.msra.mxu0 0
        %1154 = vmatprep.subr.bf16.mxu0 0
        %1155 = vmatpush1.bf16.msra.mxu0 0
        %1156 = vmatprep.subr.bf16.mxu0 0
        %1157 = vmatpush1.bf16.msra.mxu0 0
        %1158 = vmatprep.subr.bf16.mxu0 0
        %1159 = vmatpush1.bf16.msra.mxu0 0
        %1160 = vmatprep.subr.bf16.mxu0 0
        %1161 = vmatpush1.bf16.msra.mxu0 0
        %1162 = vmatprep.mubr.bf16.mxu0 0
        %1163 = vmatmul.mubr.bf16.gmra.mrb[0].mxu0 %v1128
        %v1164 = vpop.f32.mrb[0].mxu0
        %v1165 = vadd.f32 %v1114, %v1164
        %v1166 = vpop.f32.mrb[0].mxu0
        %v1167 = vpop.f32.mrb[0].mxu0
        %v1168 = vpop.f32.mrb[0].mxu0
        %1169 = vdwg.mxu0
        %v1170 = vld [vmem:[%s765] sm:$0xf]
        %v1171 = vld [vmem:[%s765 + $0x4] sm:$0xf]
        %v1172 = vld [vmem:[%s765 + $0x8] sm:$0xf]
        %v1173 = vld [vmem:[%s765 + $0xc] sm:$0xf]
        %v1174 = vlaneseq
        %v1175 = vshrl.u32 %v1174, 7
        %v1176 = vsub.s32 6, %v1175
        %v1177 = vrot.slane %v821, %v1176
        %v1182 = vunpack.c.l.b16 %v1170
        %v1183 = vunpack.c.l.b16 %v1171
        %v1184 = vunpack.c.l.b16 %v1172
        %v1185 = vunpack.c.l.b16 %v1173
        %v1186 = vpack.c.b16 %v1183, %v1182
        %v1187 = vpack.c.b16 %v1185, %v1184
        %1190 = vmatprep.subr.bf16.mxu0 0
        %1191 = vmatpush1.bf16.msra.mxu0 %v1186
        %1192 = vmatprep.subr.bf16.mxu0 0
        %1193 = vmatpush1.bf16.msra.mxu0 %v1187
        %1194 = vmatprep.subr.bf16.mxu0 0
        %1195 = vmatpush1.bf16.msra.mxu0 0
        %1196 = vmatprep.subr.bf16.mxu0 0
        %1197 = vmatpush1.bf16.msra.mxu0 0
        %1198 = vmatprep.subr.bf16.mxu0 0
        %1199 = vmatpush1.bf16.msra.mxu0 0
        %1200 = vmatprep.subr.bf16.mxu0 0
        %1201 = vmatpush1.bf16.msra.mxu0 0
        %1202 = vmatprep.subr.bf16.mxu0 0
        %1203 = vmatpush1.bf16.msra.mxu0 0
        %1204 = vmatprep.subr.bf16.mxu0 0
        %1205 = vmatpush1.bf16.msra.mxu0 0
        %1206 = vmatprep.subr.bf16.mxu0 0
        %1207 = vmatpush1.bf16.msra.mxu0 0
        %1208 = vmatprep.subr.bf16.mxu0 0
        %1209 = vmatpush1.bf16.msra.mxu0 0
        %1210 = vmatprep.subr.bf16.mxu0 0
        %1211 = vmatpush1.bf16.msra.mxu0 0
        %1212 = vmatprep.subr.bf16.mxu0 0
        %1213 = vmatpush1.bf16.msra.mxu0 0
        %1214 = vmatprep.subr.bf16.mxu0 0
        %1215 = vmatpush1.bf16.msra.mxu0 0
        %1216 = vmatprep.subr.bf16.mxu0 0
        %1217 = vmatpush1.bf16.msra.mxu0 0
        %1218 = vmatprep.subr.bf16.mxu0 0
        %1219 = vmatpush1.bf16.msra.mxu0 0
        %1220 = vmatprep.subr.bf16.mxu0 0
        %1221 = vmatpush1.bf16.msra.mxu0 0
        %1222 = vmatprep.mubr.bf16.mxu0 0
        %1223 = vmatmul.mubr.bf16.gmra.mrb[0].mxu0 %v1128
        %v1224 = vpop.f32.mrb[0].mxu0
        %v1225 = vadd.f32 %v1177, %v1224
        %v1226 = vpop.f32.mrb[0].mxu0
        %v1227 = vpop.f32.mrb[0].mxu0
        %v1228 = vpop.f32.mrb[0].mxu0
        %1229 = vdwg.mxu0
        %v1230 = vld [vmem:[%s770] sm:$0xf]
        %v1231 = vld [vmem:[%s770 + $0x4] sm:$0xf]
        %v1232 = vld [vmem:[%s770 + $0x8] sm:$0xf]
        %v1233 = vld [vmem:[%s770 + $0xc] sm:$0xf]
        %v1234 = vlaneseq
        %v1235 = vshrl.u32 %v1234, 7
        %v1236 = vsub.s32 7, %v1235
        %v1237 = vrot.slane %v821, %v1236
        %v1242 = vunpack.c.l.b16 %v1230
        %v1243 = vunpack.c.l.b16 %v1231
        %v1244 = vunpack.c.l.b16 %v1232
        %v1245 = vunpack.c.l.b16 %v1233
        %v1246 = vpack.c.b16 %v1243, %v1242
        %v1247 = vpack.c.b16 %v1245, %v1244
        %1250 = vmatprep.subr.bf16.mxu0 0
        %1251 = vmatpush1.bf16.msra.mxu0 %v1246
        %1252 = vmatprep.subr.bf16.mxu0 0
        %1253 = vmatpush1.bf16.msra.mxu0 %v1247
        %1254 = vmatprep.subr.bf16.mxu0 0
        %1255 = vmatpush1.bf16.msra.mxu0 0
        %1256 = vmatprep.subr.bf16.mxu0 0
        %1257 = vmatpush1.bf16.msra.mxu0 0
        %1258 = vmatprep.subr.bf16.mxu0 0
        %1259 = vmatpush1.bf16.msra.mxu0 0
        %1260 = vmatprep.subr.bf16.mxu0 0
        %1261 = vmatpush1.bf16.msra.mxu0 0
        %1262 = vmatprep.subr.bf16.mxu0 0
        %1263 = vmatpush1.bf16.msra.mxu0 0
        %1264 = vmatprep.subr.bf16.mxu0 0
        %1265 = vmatpush1.bf16.msra.mxu0 0
        %1266 = vmatprep.subr.bf16.mxu0 0
        %1267 = vmatpush1.bf16.msra.mxu0 0
        %1268 = vmatprep.subr.bf16.mxu0 0
        %1269 = vmatpush1.bf16.msra.mxu0 0
        %1270 = vmatprep.subr.bf16.mxu0 0
        %1271 = vmatpush1.bf16.msra.mxu0 0
        %1272 = vmatprep.subr.bf16.mxu0 0
        %1273 = vmatpush1.bf16.msra.mxu0 0
        %1274 = vmatprep.subr.bf16.mxu0 0
        %1275 = vmatpush1.bf16.msra.mxu0 0
        %1276 = vmatprep.subr.bf16.mxu0 0
        %1277 = vmatpush1.bf16.msra.mxu0 0
        %1278 = vmatprep.subr.bf16.mxu0 0
        %1279 = vmatpush1.bf16.msra.mxu0 0
        %1280 = vmatprep.subr.bf16.mxu0 0
        %1281 = vmatpush1.bf16.msra.mxu0 0
        %1282 = vmatprep.mubr.bf16.mxu0 0
        %1283 = vmatmul.mubr.bf16.gmra.mrb[0].mxu0 %v1128
        %v1284 = vpop.f32.mrb[0].mxu0
        %v1285 = vadd.f32 %v1237, %v1284
        %v1286 = vpop.f32.mrb[0].mxu0
        %v1287 = vpop.f32.mrb[0].mxu0
        %v1288 = vpop.f32.mrb[0].mxu0
        %1289 = vdwg.mxu0
        %v1290 = vpack.c.bf16 %v1165, %v1165
        %v1291 = vpack.c.bf16 %v1225, %v1225
        %vm1292 = vcmask 64512
        %v1294 = vsel %vm1292, %v1290, 0
        %v1297 = vsel %vm1292, %v1291, 0
        %1299 = vmatprep.subr.bf16.mxu0 0
        %1300 = vmatpush1.bf16.xpose.msra.mxu0 %v1297
        %1301 = vmatprep.subr.bf16.mxu0 0
        %1302 = vmatpush1.bf16.xpose.msra.mxu0 0
        %1303 = vmatprep.subr.bf16.mxu0 0
        %1304 = vmatpush1.bf16.xpose.msra.mxu0 0
        %1305 = vmatprep.subr.bf16.mxu0 0
        %1306 = vmatpush1.bf16.xpose.msra.mxu0 0
        %1307 = vmatprep.subr.bf16.mxu0 0
        %1308 = vmatpush1.bf16.xpose.msra.mxu0 0
        %1309 = vmatprep.subr.bf16.mxu0 0
        %1310 = vmatpush1.bf16.xpose.msra.mxu0 0
        %1311 = vmatprep.subr.bf16.mxu0 0
        %1312 = vmatpush1.bf16.xpose.msra.mxu0 0
        %1313 = vmatprep.subr.bf16.mxu0 0
        %1314 = vmatpush1.bf16.xpose.msra.mxu0 0
        %1315 = vmatprep.subr.bf16.mxu0 0
        %1316 = vmatpush1.bf16.xpose.msra.mxu0 0
        %1317 = vmatprep.subr.bf16.mxu0 0
        %1318 = vmatpush1.bf16.xpose.msra.mxu0 0
        %1319 = vmatprep.subr.bf16.mxu0 0
        %1320 = vmatpush1.bf16.xpose.msra.mxu0 0
        %1321 = vmatprep.subr.bf16.mxu0 0
        %1322 = vmatpush1.bf16.xpose.msra.mxu0 0
        %1323 = vmatprep.subr.bf16.mxu0 0
        %1324 = vmatpush1.bf16.xpose.msra.mxu0 0
        %1325 = vmatprep.subr.bf16.mxu0 0
        %1326 = vmatpush1.bf16.xpose.msra.mxu0 0
        %1327 = vmatprep.subr.bf16.mxu0 0
        %1328 = vmatpush1.bf16.xpose.msra.mxu0 0
        %1329 = vmatprep.subr.bf16.mxu0 0
        %1330 = vmatpush1.bf16.xpose.msra.mxu0 0
        %1331 = vmatprep.mubr.bf16.mxu0 0
        %1332 = vmatmul.mubr.bf16.gmra.mrb[0].mxu0 %v1294
        %v1333 = vpop.f32.mrb[0].mxu0
        %v1334 = vadd.f32 %v903, %v1333
        %v1335 = vpop.f32.mrb[0].mxu0
        %v1336 = vpop.f32.mrb[0].mxu0
        %v1337 = vpop.f32.mrb[0].mxu0
        %1338 = vdwg.mxu0
        %v1339 = vsel %vm1292, %v1334, -inf
        %1340 = vmax.xlane.f32.xlu0 %v1339
        %v1341 = vpop.xlane.xlu0 %1340
        %v1342 = vsub.f32 %v1334, %v1341
        %v1343 = vmul.f32 %v1342, 1.442695
        %v1344 = vpow.pop %v1343
        %v1345 = vsel %vm1292, %v1344, 0.0
        %1346 = vadd.xlane.f32.xlu0 %v1345
        %v1347 = vpop.xlane.xlu0 %1346
        %v1348 = vrcp.pop %v1347
        %v1349 = vmul.f32 %v1344, %v1348
        %v1350 = vpack.c.bf16 %v1349, %v1349
        %v1351 = vpack.c.bf16 %v1285, %v1285
        %v1353 = vsel %vm1292, %v1350, 0
        %vm1355 = vcmask 1043456
        %v1357 = vsel %vm1355, %v1351, 0
        %1359 = vmatprep.subr.bf16.mxu0 0
        %1360 = vmatpush1.bf16.msra.mxu0 %v1357
        %1361 = vmatprep.subr.bf16.mxu0 0
        %1362 = vmatpush1.bf16.msra.mxu0 0
        %1363 = vmatprep.subr.bf16.mxu0 0
        %1364 = vmatpush1.bf16.msra.mxu0 0
        %1365 = vmatprep.subr.bf16.mxu0 0
        %1366 = vmatpush1.bf16.msra.mxu0 0
        %1367 = vmatprep.subr.bf16.mxu0 0
        %1368 = vmatpush1.bf16.msra.mxu0 0
        %1369 = vmatprep.subr.bf16.mxu0 0
        %1370 = vmatpush1.bf16.msra.mxu0 0
        %1371 = vmatprep.subr.bf16.mxu0 0
        %1372 = vmatpush1.bf16.msra.mxu0 0
        %1373 = vmatprep.subr.bf16.mxu0 0
        %1374 = vmatpush1.bf16.msra.mxu0 0
        %1375 = vmatprep.subr.bf16.mxu0 0
        %1376 = vmatpush1.bf16.msra.mxu0 0
        %1377 = vmatprep.subr.bf16.mxu0 0
        %1378 = vmatpush1.bf16.msra.mxu0 0
        %1379 = vmatprep.subr.bf16.mxu0 0
        %1380 = vmatpush1.bf16.msra.mxu0 0
        %1381 = vmatprep.subr.bf16.mxu0 0
        %1382 = vmatpush1.bf16.msra.mxu0 0
        %1383 = vmatprep.subr.bf16.mxu0 0
        %1384 = vmatpush1.bf16.msra.mxu0 0
        %1385 = vmatprep.subr.bf16.mxu0 0
        %1386 = vmatpush1.bf16.msra.mxu0 0
        %1387 = vmatprep.subr.bf16.mxu0 0
        %1388 = vmatpush1.bf16.msra.mxu0 0
        %1389 = vmatprep.subr.bf16.mxu0 0
        %1390 = vmatpush1.bf16.msra.mxu0 0
        %1391 = vmatprep.mubr.bf16.mxu0 0
        %1392 = vmatmul.mubr.bf16.gmra.mrb[0].mxu0 %v1353
        %v1393 = vpop.f32.mrb[0].mxu0
        %v1394 = vadd.f32 0.0, %v1393
        %v1395 = vpop.f32.mrb[0].mxu0
        %v1396 = vpop.f32.mrb[0].mxu0
        %v1397 = vpop.f32.mrb[0].mxu0
        %1398 = vdwg.mxu0
        %v1399 = vld [vmem:[%s775] sm:$0xf]
        %v1400 = vpack.c.bf16 %v1394, %v1394
        %s1401 = scalar_lea.vmem %s760, 16
        %v1402 = vld [vmem:[%s1401] sm:$0xf]
        %v1403 = vld [vmem:[%s1401 + $0x4] sm:$0xf]
        %v1404 = vld [vmem:[%s1401 + $0x8] sm:$0xf]
        %v1405 = vld [vmem:[%s1401 + $0xc] sm:$0xf]
        %v1410 = vunpack.c.l.b16 %v1402
        %v1411 = vunpack.c.l.b16 %v1403
        %v1412 = vunpack.c.l.b16 %v1404
        %v1413 = vunpack.c.l.b16 %v1405
        %v1414 = vpack.c.b16 %v1411, %v1410
        %v1415 = vpack.c.b16 %v1413, %v1412
        %1419 = vrot.lane.b32.xlu0 %v1114, 120
        %v1420 = vpop.permute.xlu0 %1419
        %1422 = vmatprep.subr.bf16.mxu0 0
        %1423 = vmatpush1.bf16.msra.mxu0 %v1414
        %1424 = vmatprep.subr.bf16.mxu0 0
        %1425 = vmatpush1.bf16.msra.mxu0 %v1415
        %1426 = vmatprep.subr.bf16.mxu0 0
        %1427 = vmatpush1.bf16.msra.mxu0 0
        %1428 = vmatprep.subr.bf16.mxu0 0
        %1429 = vmatpush1.bf16.msra.mxu0 0
        %1430 = vmatprep.subr.bf16.mxu0 0
        %1431 = vmatpush1.bf16.msra.mxu0 0
        %1432 = vmatprep.subr.bf16.mxu0 0
        %1433 = vmatpush1.bf16.msra.mxu0 0
        %1434 = vmatprep.subr.bf16.mxu0 0
        %1435 = vmatpush1.bf16.msra.mxu0 0
        %1436 = vmatprep.subr.bf16.mxu0 0
        %1437 = vmatpush1.bf16.msra.mxu0 0
        %1438 = vmatprep.subr.bf16.mxu0 0
        %1439 = vmatpush1.bf16.msra.mxu0 0
        %1440 = vmatprep.subr.bf16.mxu0 0
        %1441 = vmatpush1.bf16.msra.mxu0 0
        %1442 = vmatprep.subr.bf16.mxu0 0
        %1443 = vmatpush1.bf16.msra.mxu0 0
        %1444 = vmatprep.subr.bf16.mxu0 0
        %1445 = vmatpush1.bf16.msra.mxu0 0
        %1446 = vmatprep.subr.bf16.mxu0 0
        %1447 = vmatpush1.bf16.msra.mxu0 0
        %1448 = vmatprep.subr.bf16.mxu0 0
        %1449 = vmatpush1.bf16.msra.mxu0 0
        %1450 = vmatprep.subr.bf16.mxu0 0
        %1451 = vmatpush1.bf16.msra.mxu0 0
        %1452 = vmatprep.subr.bf16.mxu0 0
        %1453 = vmatpush1.bf16.msra.mxu0 0
        %1454 = vmatprep.mubr.bf16.mxu0 0
        %1455 = vmatmul.mubr.bf16.gmra.mrb[0].mxu0 %v1128
        %v1456 = vpop.f32.mrb[0].mxu0
        %v1457 = vadd.f32 %v1420, %v1456
        %v1458 = vpop.f32.mrb[0].mxu0
        %v1459 = vpop.f32.mrb[0].mxu0
        %v1460 = vpop.f32.mrb[0].mxu0
        %1461 = vdwg.mxu0
        %s1462 = scalar_lea.vmem %s765, 16
        %v1463 = vld [vmem:[%s1462] sm:$0xf]
        %v1464 = vld [vmem:[%s1462 + $0x4] sm:$0xf]
        %v1465 = vld [vmem:[%s1462 + $0x8] sm:$0xf]
        %v1466 = vld [vmem:[%s1462 + $0xc] sm:$0xf]
        %v1471 = vunpack.c.l.b16 %v1463
        %v1472 = vunpack.c.l.b16 %v1464
        %v1473 = vunpack.c.l.b16 %v1465
        %v1474 = vunpack.c.l.b16 %v1466
        %v1475 = vpack.c.b16 %v1472, %v1471
        %v1476 = vpack.c.b16 %v1474, %v1473
        %1480 = vrot.lane.b32.xlu0 %v1177, 120
        %v1481 = vpop.permute.xlu0 %1480
        %1483 = vmatprep.subr.bf16.mxu0 0
        %1484 = vmatpush1.bf16.msra.mxu0 %v1475
        %1485 = vmatprep.subr.bf16.mxu0 0
        %1486 = vmatpush1.bf16.msra.mxu0 %v1476
        %1487 = vmatprep.subr.bf16.mxu0 0
        %1488 = vmatpush1.bf16.msra.mxu0 0
        %1489 = vmatprep.subr.bf16.mxu0 0
        %1490 = vmatpush1.bf16.msra.mxu0 0
        %1491 = vmatprep.subr.bf16.mxu0 0
        %1492 = vmatpush1.bf16.msra.mxu0 0
        %1493 = vmatprep.subr.bf16.mxu0 0
        %1494 = vmatpush1.bf16.msra.mxu0 0
        %1495 = vmatprep.subr.bf16.mxu0 0
        %1496 = vmatpush1.bf16.msra.mxu0 0
        %1497 = vmatprep.subr.bf16.mxu0 0
        %1498 = vmatpush1.bf16.msra.mxu0 0
        %1499 = vmatprep.subr.bf16.mxu0 0
        %1500 = vmatpush1.bf16.msra.mxu0 0
        %1501 = vmatprep.subr.bf16.mxu0 0
        %1502 = vmatpush1.bf16.msra.mxu0 0
        %1503 = vmatprep.subr.bf16.mxu0 0
        %1504 = vmatpush1.bf16.msra.mxu0 0
        %1505 = vmatprep.subr.bf16.mxu0 0
        %1506 = vmatpush1.bf16.msra.mxu0 0
        %1507 = vmatprep.subr.bf16.mxu0 0
        %1508 = vmatpush1.bf16.msra.mxu0 0
        %1509 = vmatprep.subr.bf16.mxu0 0
        %1510 = vmatpush1.bf16.msra.mxu0 0
        %1511 = vmatprep.subr.bf16.mxu0 0
        %1512 = vmatpush1.bf16.msra.mxu0 0
        %1513 = vmatprep.subr.bf16.mxu0 0
        %1514 = vmatpush1.bf16.msra.mxu0 0
        %1515 = vmatprep.mubr.bf16.mxu0 0
        %1516 = vmatmul.mubr.bf16.gmra.mrb[0].mxu0 %v1128
        %v1517 = vpop.f32.mrb[0].mxu0
        %v1518 = vadd.f32 %v1481, %v1517
        %v1519 = vpop.f32.mrb[0].mxu0
        %v1520 = vpop.f32.mrb[0].mxu0
        %v1521 = vpop.f32.mrb[0].mxu0
        %1522 = vdwg.mxu0
        %s1523 = scalar_lea.vmem %s770, 16
        %v1524 = vld [vmem:[%s1523] sm:$0xf]
        %v1525 = vld [vmem:[%s1523 + $0x4] sm:$0xf]
        %v1526 = vld [vmem:[%s1523 + $0x8] sm:$0xf]
        %v1527 = vld [vmem:[%s1523 + $0xc] sm:$0xf]
        %v1532 = vunpack.c.l.b16 %v1524
        %v1533 = vunpack.c.l.b16 %v1525
        %v1534 = vunpack.c.l.b16 %v1526
        %v1535 = vunpack.c.l.b16 %v1527
        %v1536 = vpack.c.b16 %v1533, %v1532
        %v1537 = vpack.c.b16 %v1535, %v1534
        %1541 = vrot.lane.b32.xlu0 %v1237, 120
        %v1542 = vpop.permute.xlu0 %1541
        %1544 = vmatprep.subr.bf16.mxu0 0
        %1545 = vmatpush1.bf16.msra.mxu0 %v1536
        %1546 = vmatprep.subr.bf16.mxu0 0
        %1547 = vmatpush1.bf16.msra.mxu0 %v1537
        %1548 = vmatprep.subr.bf16.mxu0 0
        %1549 = vmatpush1.bf16.msra.mxu0 0
        %1550 = vmatprep.subr.bf16.mxu0 0
        %1551 = vmatpush1.bf16.msra.mxu0 0
        %1552 = vmatprep.subr.bf16.mxu0 0
        %1553 = vmatpush1.bf16.msra.mxu0 0
        %1554 = vmatprep.subr.bf16.mxu0 0
        %1555 = vmatpush1.bf16.msra.mxu0 0
        %1556 = vmatprep.subr.bf16.mxu0 0
        %1557 = vmatpush1.bf16.msra.mxu0 0
        %1558 = vmatprep.subr.bf16.mxu0 0
        %1559 = vmatpush1.bf16.msra.mxu0 0
        %1560 = vmatprep.subr.bf16.mxu0 0
        %1561 = vmatpush1.bf16.msra.mxu0 0
        %1562 = vmatprep.subr.bf16.mxu0 0
        %1563 = vmatpush1.bf16.msra.mxu0 0
        %1564 = vmatprep.subr.bf16.mxu0 0
        %1565 = vmatpush1.bf16.msra.mxu0 0
        %1566 = vmatprep.subr.bf16.mxu0 0
        %1567 = vmatpush1.bf16.msra.mxu0 0
        %1568 = vmatprep.subr.bf16.mxu0 0
        %1569 = vmatpush1.bf16.msra.mxu0 0
        %1570 = vmatprep.subr.bf16.mxu0 0
        %1571 = vmatpush1.bf16.msra.mxu0 0
        %1572 = vmatprep.subr.bf16.mxu0 0
        %1573 = vmatpush1.bf16.msra.mxu0 0
        %1574 = vmatprep.subr.bf16.mxu0 0
        %1575 = vmatpush1.bf16.msra.mxu0 0
        %1576 = vmatprep.mubr.bf16.mxu0 0
        %1577 = vmatmul.mubr.bf16.gmra.mrb[0].mxu0 %v1128
        %v1578 = vpop.f32.mrb[0].mxu0
        %v1579 = vadd.f32 %v1542, %v1578
        %v1580 = vpop.f32.mrb[0].mxu0
        %v1581 = vpop.f32.mrb[0].mxu0
        %v1582 = vpop.f32.mrb[0].mxu0
        %1583 = vdwg.mxu0
        %v1584 = vpack.c.bf16 %v1457, %v1457
        %v1585 = vpack.c.bf16 %v1518, %v1518
        %v1587 = vsel %vm1292, %v1584, 0
        %v1590 = vsel %vm1292, %v1585, 0
        %1592 = vmatprep.subr.bf16.mxu0 0
        %1593 = vmatpush1.bf16.xpose.msra.mxu0 %v1590
        %1594 = vmatprep.subr.bf16.mxu0 0
        %1595 = vmatpush1.bf16.xpose.msra.mxu0 0
        %1596 = vmatprep.subr.bf16.mxu0 0
        %1597 = vmatpush1.bf16.xpose.msra.mxu0 0
        %1598 = vmatprep.subr.bf16.mxu0 0
        %1599 = vmatpush1.bf16.xpose.msra.mxu0 0
        %1600 = vmatprep.subr.bf16.mxu0 0
        %1601 = vmatpush1.bf16.xpose.msra.mxu0 0
        %1602 = vmatprep.subr.bf16.mxu0 0
        %1603 = vmatpush1.bf16.xpose.msra.mxu0 0
        %1604 = vmatprep.subr.bf16.mxu0 0
        %1605 = vmatpush1.bf16.xpose.msra.mxu0 0
        %1606 = vmatprep.subr.bf16.mxu0 0
        %1607 = vmatpush1.bf16.xpose.msra.mxu0 0
        %1608 = vmatprep.subr.bf16.mxu0 0
        %1609 = vmatpush1.bf16.xpose.msra.mxu0 0
        %1610 = vmatprep.subr.bf16.mxu0 0
        %1611 = vmatpush1.bf16.xpose.msra.mxu0 0
        %1612 = vmatprep.subr.bf16.mxu0 0
        %1613 = vmatpush1.bf16.xpose.msra.mxu0 0
        %1614 = vmatprep.subr.bf16.mxu0 0
        %1615 = vmatpush1.bf16.xpose.msra.mxu0 0
        %1616 = vmatprep.subr.bf16.mxu0 0
        %1617 = vmatpush1.bf16.xpose.msra.mxu0 0
        %1618 = vmatprep.subr.bf16.mxu0 0
        %1619 = vmatpush1.bf16.xpose.msra.mxu0 0
        %1620 = vmatprep.subr.bf16.mxu0 0
        %1621 = vmatpush1.bf16.xpose.msra.mxu0 0
        %1622 = vmatprep.subr.bf16.mxu0 0
        %1623 = vmatpush1.bf16.xpose.msra.mxu0 0
        %1624 = vmatprep.mubr.bf16.mxu0 0
        %1625 = vmatmul.mubr.bf16.gmra.mrb[0].mxu0 %v1587
        %v1626 = vpop.f32.mrb[0].mxu0
        %v1627 = vadd.f32 %v903, %v1626
        %v1628 = vpop.f32.mrb[0].mxu0
        %v1629 = vpop.f32.mrb[0].mxu0
        %v1630 = vpop.f32.mrb[0].mxu0
        %1631 = vdwg.mxu0
        %v1632 = vsel %vm1292, %v1627, -inf
        %1633 = vmax.xlane.f32.xlu0 %v1632
        %v1634 = vpop.xlane.xlu0 %1633
        %v1635 = vsub.f32 %v1627, %v1634
        %v1636 = vmul.f32 %v1635, 1.442695
        %v1637 = vpow.pop %v1636
        %v1638 = vsel %vm1292, %v1637, 0.0
        %1639 = vadd.xlane.f32.xlu0 %v1638
        %v1640 = vpop.xlane.xlu0 %1639
        %v1641 = vrcp.pop %v1640
        %v1642 = vmul.f32 %v1637, %v1641
        %v1643 = vpack.c.bf16 %v1642, %v1642
        %v1644 = vpack.c.bf16 %v1579, %v1579
        %v1646 = vsel %vm1292, %v1643, 0
        %v1649 = vsel %vm1355, %v1644, 0
        %1651 = vmatprep.subr.bf16.mxu0 0
        %1652 = vmatpush1.bf16.msra.mxu0 %v1649
        %1653 = vmatprep.subr.bf16.mxu0 0
        %1654 = vmatpush1.bf16.msra.mxu0 0
        %1655 = vmatprep.subr.bf16.mxu0 0
        %1656 = vmatpush1.bf16.msra.mxu0 0
        %1657 = vmatprep.subr.bf16.mxu0 0
        %1658 = vmatpush1.bf16.msra.mxu0 0
        %1659 = vmatprep.subr.bf16.mxu0 0
        %1660 = vmatpush1.bf16.msra.mxu0 0
        %1661 = vmatprep.subr.bf16.mxu0 0
        %1662 = vmatpush1.bf16.msra.mxu0 0
        %1663 = vmatprep.subr.bf16.mxu0 0
        %1664 = vmatpush1.bf16.msra.mxu0 0
        %1665 = vmatprep.subr.bf16.mxu0 0
        %1666 = vmatpush1.bf16.msra.mxu0 0
        %1667 = vmatprep.subr.bf16.mxu0 0
        %1668 = vmatpush1.bf16.msra.mxu0 0
        %1669 = vmatprep.subr.bf16.mxu0 0
        %1670 = vmatpush1.bf16.msra.mxu0 0
        %1671 = vmatprep.subr.bf16.mxu0 0
        %1672 = vmatpush1.bf16.msra.mxu0 0
        %1673 = vmatprep.subr.bf16.mxu0 0
        %1674 = vmatpush1.bf16.msra.mxu0 0
        %1675 = vmatprep.subr.bf16.mxu0 0
        %1676 = vmatpush1.bf16.msra.mxu0 0
        %1677 = vmatprep.subr.bf16.mxu0 0
        %1678 = vmatpush1.bf16.msra.mxu0 0
        %1679 = vmatprep.subr.bf16.mxu0 0
        %1680 = vmatpush1.bf16.msra.mxu0 0
        %1681 = vmatprep.subr.bf16.mxu0 0
        %1682 = vmatpush1.bf16.msra.mxu0 0
        %1683 = vmatprep.mubr.bf16.mxu0 0
        %1684 = vmatmul.mubr.bf16.gmra.mrb[0].mxu0 %v1646
        %v1685 = vpop.f32.mrb[0].mxu0
        %v1686 = vadd.f32 0.0, %v1685
        %v1687 = vpop.f32.mrb[0].mxu0
        %v1688 = vpop.f32.mrb[0].mxu0
        %v1689 = vpop.f32.mrb[0].mxu0
        %1690 = vdwg.mxu0
        %s1691 = scalar_lea.vmem %s775, 4
        %v1692 = vld [vmem:[%s1691] sm:$0xf]
        %v1693 = vpack.c.bf16 %v1686, %v1686
        %v1695 = vsel %vm1292, %v1693, 0
        %v1698 = vsel %vm1355, %v1692, 0
        %1700 = vmatprep.subr.bf16.mxu0 0
        %1701 = vmatpush1.bf16.msra.mxu0 %v1698
        %1702 = vmatprep.subr.bf16.mxu0 0
        %1703 = vmatpush1.bf16.msra.mxu0 0
        %1704 = vmatprep.subr.bf16.mxu0 0
        %1705 = vmatpush1.bf16.msra.mxu0 0
        %1706 = vmatprep.subr.bf16.mxu0 0
        %1707 = vmatpush1.bf16.msra.mxu0 0
        %1708 = vmatprep.subr.bf16.mxu0 0
        %1709 = vmatpush1.bf16.msra.mxu0 0
        %1710 = vmatprep.subr.bf16.mxu0 0
        %1711 = vmatpush1.bf16.msra.mxu0 0
        %1712 = vmatprep.subr.bf16.mxu0 0
        %1713 = vmatpush1.bf16.msra.mxu0 0
        %1714 = vmatprep.subr.bf16.mxu0 0
        %1715 = vmatpush1.bf16.msra.mxu0 0
        %1716 = vmatprep.subr.bf16.mxu0 0
        %1717 = vmatpush1.bf16.msra.mxu0 0
        %1718 = vmatprep.subr.bf16.mxu0 0
        %1719 = vmatpush1.bf16.msra.mxu0 0
        %1720 = vmatprep.subr.bf16.mxu0 0
        %1721 = vmatpush1.bf16.msra.mxu0 0
        %1722 = vmatprep.subr.bf16.mxu0 0
        %1723 = vmatpush1.bf16.msra.mxu0 0
        %1724 = vmatprep.subr.bf16.mxu0 0
        %1725 = vmatpush1.bf16.msra.mxu0 0
        %1726 = vmatprep.subr.bf16.mxu0 0
        %1727 = vmatpush1.bf16.msra.mxu0 0
        %1728 = vmatprep.subr.bf16.mxu0 0
        %1729 = vmatpush1.bf16.msra.mxu0 0
        %1730 = vmatprep.subr.bf16.mxu0 0
        %1731 = vmatpush1.bf16.msra.mxu0 0
        %1732 = vmatprep.mubr.bf16.mxu0 0
        %1733 = vmatmul.mubr.bf16.gmra.mrb[0].mxu0 %v1695
        %v1734 = vpop.f32.mrb[0].mxu0
        %v1735 = vadd.f32 0.0, %v1734
        %v1736 = vpop.f32.mrb[0].mxu0
        %v1737 = vpop.f32.mrb[0].mxu0
        %v1738 = vpop.f32.mrb[0].mxu0
        %1739 = vdwg.mxu0
        %v1741 = vsel %vm1292, %v1400, 0
        %v1744 = vsel %vm1355, %v1399, 0
        %1746 = vmatprep.subr.bf16.mxu0 0
        %1747 = vmatpush1.bf16.msra.mxu0 %v1744
        %1748 = vmatprep.subr.bf16.mxu0 0
        %1749 = vmatpush1.bf16.msra.mxu0 0
        %1750 = vmatprep.subr.bf16.mxu0 0
        %1751 = vmatpush1.bf16.msra.mxu0 0
        %1752 = vmatprep.subr.bf16.mxu0 0
        %1753 = vmatpush1.bf16.msra.mxu0 0
        %1754 = vmatprep.subr.bf16.mxu0 0
        %1755 = vmatpush1.bf16.msra.mxu0 0
        %1756 = vmatprep.subr.bf16.mxu0 0
        %1757 = vmatpush1.bf16.msra.mxu0 0
        %1758 = vmatprep.subr.bf16.mxu0 0
        %1759 = vmatpush1.bf16.msra.mxu0 0
        %1760 = vmatprep.subr.bf16.mxu0 0
        %1761 = vmatpush1.bf16.msra.mxu0 0
        %1762 = vmatprep.subr.bf16.mxu0 0
        %1763 = vmatpush1.bf16.msra.mxu0 0
        %1764 = vmatprep.subr.bf16.mxu0 0
        %1765 = vmatpush1.bf16.msra.mxu0 0
        %1766 = vmatprep.subr.bf16.mxu0 0
        %1767 = vmatpush1.bf16.msra.mxu0 0
        %1768 = vmatprep.subr.bf16.mxu0 0
        %1769 = vmatpush1.bf16.msra.mxu0 0
        %1770 = vmatprep.subr.bf16.mxu0 0
        %1771 = vmatpush1.bf16.msra.mxu0 0
        %1772 = vmatprep.subr.bf16.mxu0 0
        %1773 = vmatpush1.bf16.msra.mxu0 0
        %1774 = vmatprep.subr.bf16.mxu0 0
        %1775 = vmatpush1.bf16.msra.mxu0 0
        %1776 = vmatprep.subr.bf16.mxu0 0
        %1777 = vmatpush1.bf16.msra.mxu0 0
        %1778 = vmatprep.mubr.bf16.mxu0 0
        %1779 = vmatmul.mubr.bf16.gmra.mrb[0].mxu0 %v1741
        %v1780 = vpop.f32.mrb[0].mxu0
        %v1781 = vadd.f32 %v1735, %v1780
        %v1782 = vpop.f32.mrb[0].mxu0
        %v1783 = vpop.f32.mrb[0].mxu0
        %v1784 = vpop.f32.mrb[0].mxu0
        %1785 = vdwg.mxu0
        %s1786 = scalar_lea.vmem %s760, 32
        %v1787 = vld [vmem:[%s1786] sm:$0xf]
        %v1788 = vld [vmem:[%s1786 + $0x4] sm:$0xf]
        %v1789 = vld [vmem:[%s1786 + $0x8] sm:$0xf]
        %v1790 = vld [vmem:[%s1786 + $0xc] sm:$0xf]
        %v1795 = vunpack.c.l.b16 %v1787
        %v1796 = vunpack.c.l.b16 %v1788
        %v1797 = vunpack.c.l.b16 %v1789
        %v1798 = vunpack.c.l.b16 %v1790
        %v1799 = vpack.c.b16 %v1796, %v1795
        %v1800 = vpack.c.b16 %v1798, %v1797
        %1803 = vrot.lane.b32.xlu0 %v1114, 112
        %v1804 = vpop.permute.xlu0 %1803
        %1806 = vmatprep.subr.bf16.mxu0 0
        %1807 = vmatpush1.bf16.msra.mxu0 %v1799
        %1808 = vmatprep.subr.bf16.mxu0 0
        %1809 = vmatpush1.bf16.msra.mxu0 %v1800
        %1810 = vmatprep.subr.bf16.mxu0 0
        %1811 = vmatpush1.bf16.msra.mxu0 0
        %1812 = vmatprep.subr.bf16.mxu0 0
        %1813 = vmatpush1.bf16.msra.mxu0 0
        %1814 = vmatprep.subr.bf16.mxu0 0
        %1815 = vmatpush1.bf16.msra.mxu0 0
        %1816 = vmatprep.subr.bf16.mxu0 0
        %1817 = vmatpush1.bf16.msra.mxu0 0
        %1818 = vmatprep.subr.bf16.mxu0 0
        %1819 = vmatpush1.bf16.msra.mxu0 0
        %1820 = vmatprep.subr.bf16.mxu0 0
        %1821 = vmatpush1.bf16.msra.mxu0 0
        %1822 = vmatprep.subr.bf16.mxu0 0
        %1823 = vmatpush1.bf16.msra.mxu0 0
        %1824 = vmatprep.subr.bf16.mxu0 0
        %1825 = vmatpush1.bf16.msra.mxu0 0
        %1826 = vmatprep.subr.bf16.mxu0 0
        %1827 = vmatpush1.bf16.msra.mxu0 0
        %1828 = vmatprep.subr.bf16.mxu0 0
        %1829 = vmatpush1.bf16.msra.mxu0 0
        %1830 = vmatprep.subr.bf16.mxu0 0
        %1831 = vmatpush1.bf16.msra.mxu0 0
        %1832 = vmatprep.subr.bf16.mxu0 0
        %1833 = vmatpush1.bf16.msra.mxu0 0
        %1834 = vmatprep.subr.bf16.mxu0 0
        %1835 = vmatpush1.bf16.msra.mxu0 0
        %1836 = vmatprep.subr.bf16.mxu0 0
        %1837 = vmatpush1.bf16.msra.mxu0 0
        %1838 = vmatprep.mubr.bf16.mxu0 0
        %1839 = vmatmul.mubr.bf16.gmra.mrb[0].mxu0 %v1128
        %v1840 = vpop.f32.mrb[0].mxu0
        %v1841 = vadd.f32 %v1804, %v1840
        %v1842 = vpop.f32.mrb[0].mxu0
        %v1843 = vpop.f32.mrb[0].mxu0
        %v1844 = vpop.f32.mrb[0].mxu0
        %1845 = vdwg.mxu0
        %s1846 = scalar_lea.vmem %s765, 32
        %v1847 = vld [vmem:[%s1846] sm:$0xf]
        %v1848 = vld [vmem:[%s1846 + $0x4] sm:$0xf]
        %v1849 = vld [vmem:[%s1846 + $0x8] sm:$0xf]
        %v1850 = vld [vmem:[%s1846 + $0xc] sm:$0xf]
        %v1855 = vunpack.c.l.b16 %v1847
        %v1856 = vunpack.c.l.b16 %v1848
        %v1857 = vunpack.c.l.b16 %v1849
        %v1858 = vunpack.c.l.b16 %v1850
        %v1859 = vpack.c.b16 %v1856, %v1855
        %v1860 = vpack.c.b16 %v1858, %v1857
        %1863 = vrot.lane.b32.xlu0 %v1177, 112
        %v1864 = vpop.permute.xlu0 %1863
        %1866 = vmatprep.subr.bf16.mxu0 0
        %1867 = vmatpush1.bf16.msra.mxu0 %v1859
        %1868 = vmatprep.subr.bf16.mxu0 0
        %1869 = vmatpush1.bf16.msra.mxu0 %v1860
        %1870 = vmatprep.subr.bf16.mxu0 0
        %1871 = vmatpush1.bf16.msra.mxu0 0
        %1872 = vmatprep.subr.bf16.mxu0 0
        %1873 = vmatpush1.bf16.msra.mxu0 0
        %1874 = vmatprep.subr.bf16.mxu0 0
        %1875 = vmatpush1.bf16.msra.mxu0 0
        %1876 = vmatprep.subr.bf16.mxu0 0
        %1877 = vmatpush1.bf16.msra.mxu0 0
        %1878 = vmatprep.subr.bf16.mxu0 0
        %1879 = vmatpush1.bf16.msra.mxu0 0
        %1880 = vmatprep.subr.bf16.mxu0 0
        %1881 = vmatpush1.bf16.msra.mxu0 0
        %1882 = vmatprep.subr.bf16.mxu0 0
        %1883 = vmatpush1.bf16.msra.mxu0 0
        %1884 = vmatprep.subr.bf16.mxu0 0
        %1885 = vmatpush1.bf16.msra.mxu0 0
        %1886 = vmatprep.subr.bf16.mxu0 0
        %1887 = vmatpush1.bf16.msra.mxu0 0
        %1888 = vmatprep.subr.bf16.mxu0 0
        %1889 = vmatpush1.bf16.msra.mxu0 0
        %1890 = vmatprep.subr.bf16.mxu0 0
        %1891 = vmatpush1.bf16.msra.mxu0 0
        %1892 = vmatprep.subr.bf16.mxu0 0
        %1893 = vmatpush1.bf16.msra.mxu0 0
        %1894 = vmatprep.subr.bf16.mxu0 0
        %1895 = vmatpush1.bf16.msra.mxu0 0
        %1896 = vmatprep.subr.bf16.mxu0 0
        %1897 = vmatpush1.bf16.msra.mxu0 0
        %1898 = vmatprep.mubr.bf16.mxu0 0
        %1899 = vmatmul.mubr.bf16.gmra.mrb[0].mxu0 %v1128
        %v1900 = vpop.f32.mrb[0].mxu0
        %v1901 = vadd.f32 %v1864, %v1900
        %v1902 = vpop.f32.mrb[0].mxu0
        %v1903 = vpop.f32.mrb[0].mxu0
        %v1904 = vpop.f32.mrb[0].mxu0
        %1905 = vdwg.mxu0
        %s1906 = scalar_lea.vmem %s770, 32
        %v1907 = vld [vmem:[%s1906] sm:$0xf]
        %v1908 = vld [vmem:[%s1906 + $0x4] sm:$0xf]
        %v1909 = vld [vmem:[%s1906 + $0x8] sm:$0xf]
        %v1910 = vld [vmem:[%s1906 + $0xc] sm:$0xf]
        %v1915 = vunpack.c.l.b16 %v1907
        %v1916 = vunpack.c.l.b16 %v1908
        %v1917 = vunpack.c.l.b16 %v1909
        %v1918 = vunpack.c.l.b16 %v1910
        %v1919 = vpack.c.b16 %v1916, %v1915
        %v1920 = vpack.c.b16 %v1918, %v1917
        %1923 = vrot.lane.b32.xlu0 %v1237, 112
        %v1924 = vpop.permute.xlu0 %1923
        %1926 = vmatprep.subr.bf16.mxu0 0
        %1927 = vmatpush1.bf16.msra.mxu0 %v1919
        %1928 = vmatprep.subr.bf16.mxu0 0
        %1929 = vmatpush1.bf16.msra.mxu0 %v1920
        %1930 = vmatprep.subr.bf16.mxu0 0
        %1931 = vmatpush1.bf16.msra.mxu0 0
        %1932 = vmatprep.subr.bf16.mxu0 0
        %1933 = vmatpush1.bf16.msra.mxu0 0
        %1934 = vmatprep.subr.bf16.mxu0 0
        %1935 = vmatpush1.bf16.msra.mxu0 0
        %1936 = vmatprep.subr.bf16.mxu0 0
        %1937 = vmatpush1.bf16.msra.mxu0 0
        %1938 = vmatprep.subr.bf16.mxu0 0
        %1939 = vmatpush1.bf16.msra.mxu0 0
        %1940 = vmatprep.subr.bf16.mxu0 0
        %1941 = vmatpush1.bf16.msra.mxu0 0
        %1942 = vmatprep.subr.bf16.mxu0 0
        %1943 = vmatpush1.bf16.msra.mxu0 0
        %1944 = vmatprep.subr.bf16.mxu0 0
        %1945 = vmatpush1.bf16.msra.mxu0 0
        %1946 = vmatprep.subr.bf16.mxu0 0
        %1947 = vmatpush1.bf16.msra.mxu0 0
        %1948 = vmatprep.subr.bf16.mxu0 0
        %1949 = vmatpush1.bf16.msra.mxu0 0
        %1950 = vmatprep.subr.bf16.mxu0 0
        %1951 = vmatpush1.bf16.msra.mxu0 0
        %1952 = vmatprep.subr.bf16.mxu0 0
        %1953 = vmatpush1.bf16.msra.mxu0 0
        %1954 = vmatprep.subr.bf16.mxu0 0
        %1955 = vmatpush1.bf16.msra.mxu0 0
        %1956 = vmatprep.subr.bf16.mxu0 0
        %1957 = vmatpush1.bf16.msra.mxu0 0
        %1958 = vmatprep.mubr.bf16.mxu0 0
        %1959 = vmatmul.mubr.bf16.gmra.mrb[0].mxu0 %v1128
        %v1960 = vpop.f32.mrb[0].mxu0
        %v1961 = vadd.f32 %v1924, %v1960
        %v1962 = vpop.f32.mrb[0].mxu0
        %v1963 = vpop.f32.mrb[0].mxu0
        %v1964 = vpop.f32.mrb[0].mxu0
        %1965 = vdwg.mxu0
        %v1966 = vpack.c.bf16 %v1841, %v1841
        %v1967 = vpack.c.bf16 %v1901, %v1901
        %v1969 = vsel %vm1292, %v1966, 0
        %v1972 = vsel %vm1292, %v1967, 0
        %1974 = vmatprep.subr.bf16.mxu0 0
        %1975 = vmatpush1.bf16.xpose.msra.mxu0 %v1972
        %1976 = vmatprep.subr.bf16.mxu0 0
        %1977 = vmatpush1.bf16.xpose.msra.mxu0 0
        %1978 = vmatprep.subr.bf16.mxu0 0
        %1979 = vmatpush1.bf16.xpose.msra.mxu0 0
        %1980 = vmatprep.subr.bf16.mxu0 0
        %1981 = vmatpush1.bf16.xpose.msra.mxu0 0
        %1982 = vmatprep.subr.bf16.mxu0 0
        %1983 = vmatpush1.bf16.xpose.msra.mxu0 0
        %1984 = vmatprep.subr.bf16.mxu0 0
        %1985 = vmatpush1.bf16.xpose.msra.mxu0 0
        %1986 = vmatprep.subr.bf16.mxu0 0
        %1987 = vmatpush1.bf16.xpose.msra.mxu0 0
        %1988 = vmatprep.subr.bf16.mxu0 0
        %1989 = vmatpush1.bf16.xpose.msra.mxu0 0
        %1990 = vmatprep.subr.bf16.mxu0 0
        %1991 = vmatpush1.bf16.xpose.msra.mxu0 0
        %1992 = vmatprep.subr.bf16.mxu0 0
        %1993 = vmatpush1.bf16.xpose.msra.mxu0 0
        %1994 = vmatprep.subr.bf16.mxu0 0
        %1995 = vmatpush1.bf16.xpose.msra.mxu0 0
        %1996 = vmatprep.subr.bf16.mxu0 0
        %1997 = vmatpush1.bf16.xpose.msra.mxu0 0
        %1998 = vmatprep.subr.bf16.mxu0 0
        %1999 = vmatpush1.bf16.xpose.msra.mxu0 0
        %2000 = vmatprep.subr.bf16.mxu0 0
        %2001 = vmatpush1.bf16.xpose.msra.mxu0 0
        %2002 = vmatprep.subr.bf16.mxu0 0
        %2003 = vmatpush1.bf16.xpose.msra.mxu0 0
        %2004 = vmatprep.subr.bf16.mxu0 0
        %2005 = vmatpush1.bf16.xpose.msra.mxu0 0
        %2006 = vmatprep.mubr.bf16.mxu0 0
        %2007 = vmatmul.mubr.bf16.gmra.mrb[0].mxu0 %v1969
        %v2008 = vpop.f32.mrb[0].mxu0
        %v2009 = vadd.f32 %v903, %v2008
        %v2010 = vpop.f32.mrb[0].mxu0
        %v2011 = vpop.f32.mrb[0].mxu0
        %v2012 = vpop.f32.mrb[0].mxu0
        %2013 = vdwg.mxu0
        %v2014 = vsel %vm1292, %v2009, -inf
        %2015 = vmax.xlane.f32.xlu0 %v2014
        %v2016 = vpop.xlane.xlu0 %2015
        %v2017 = vsub.f32 %v2009, %v2016
        %v2018 = vmul.f32 %v2017, 1.442695
        %v2019 = vpow.pop %v2018
        %v2020 = vsel %vm1292, %v2019, 0.0
        %2021 = vadd.xlane.f32.xlu0 %v2020
        %v2022 = vpop.xlane.xlu0 %2021
        %v2023 = vrcp.pop %v2022
        %v2024 = vmul.f32 %v2019, %v2023
        %v2025 = vpack.c.bf16 %v2024, %v2024
        %v2026 = vpack.c.bf16 %v1961, %v1961
        %v2028 = vsel %vm1292, %v2025, 0
        %v2031 = vsel %vm1355, %v2026, 0
        %2033 = vmatprep.subr.bf16.mxu0 0
        %2034 = vmatpush1.bf16.msra.mxu0 %v2031
        %2035 = vmatprep.subr.bf16.mxu0 0
        %2036 = vmatpush1.bf16.msra.mxu0 0
        %2037 = vmatprep.subr.bf16.mxu0 0
        %2038 = vmatpush1.bf16.msra.mxu0 0
        %2039 = vmatprep.subr.bf16.mxu0 0
        %2040 = vmatpush1.bf16.msra.mxu0 0
        %2041 = vmatprep.subr.bf16.mxu0 0
        %2042 = vmatpush1.bf16.msra.mxu0 0
        %2043 = vmatprep.subr.bf16.mxu0 0
        %2044 = vmatpush1.bf16.msra.mxu0 0
        %2045 = vmatprep.subr.bf16.mxu0 0
        %2046 = vmatpush1.bf16.msra.mxu0 0
        %2047 = vmatprep.subr.bf16.mxu0 0
        %2048 = vmatpush1.bf16.msra.mxu0 0
        %2049 = vmatprep.subr.bf16.mxu0 0
        %2050 = vmatpush1.bf16.msra.mxu0 0
        %2051 = vmatprep.subr.bf16.mxu0 0
        %2052 = vmatpush1.bf16.msra.mxu0 0
        %2053 = vmatprep.subr.bf16.mxu0 0
        %2054 = vmatpush1.bf16.msra.mxu0 0
        %2055 = vmatprep.subr.bf16.mxu0 0
        %2056 = vmatpush1.bf16.msra.mxu0 0
        %2057 = vmatprep.subr.bf16.mxu0 0
        %2058 = vmatpush1.bf16.msra.mxu0 0
        %2059 = vmatprep.subr.bf16.mxu0 0
        %2060 = vmatpush1.bf16.msra.mxu0 0
        %2061 = vmatprep.subr.bf16.mxu0 0
        %2062 = vmatpush1.bf16.msra.mxu0 0
        %2063 = vmatprep.subr.bf16.mxu0 0
        %2064 = vmatpush1.bf16.msra.mxu0 0
        %2065 = vmatprep.mubr.bf16.mxu0 0
        %2066 = vmatmul.mubr.bf16.gmra.mrb[0].mxu0 %v2028
        %v2067 = vpop.f32.mrb[0].mxu0
        %v2068 = vadd.f32 0.0, %v2067
        %v2069 = vpop.f32.mrb[0].mxu0
        %v2070 = vpop.f32.mrb[0].mxu0
        %v2071 = vpop.f32.mrb[0].mxu0
        %2072 = vdwg.mxu0
        %s2073 = scalar_lea.vmem %s775, 8
        %v2074 = vld [vmem:[%s2073] sm:$0xf]
        %v2075 = vpack.c.bf16 %v2068, %v2068
        %v2077 = vsel %vm1292, %v2075, 0
        %v2080 = vsel %vm1355, %v2074, 0
        %2082 = vmatprep.subr.bf16.mxu0 0
        %2083 = vmatpush1.bf16.msra.mxu0 %v2080
        %2084 = vmatprep.subr.bf16.mxu0 0
        %2085 = vmatpush1.bf16.msra.mxu0 0
        %2086 = vmatprep.subr.bf16.mxu0 0
        %2087 = vmatpush1.bf16.msra.mxu0 0
        %2088 = vmatprep.subr.bf16.mxu0 0
        %2089 = vmatpush1.bf16.msra.mxu0 0
        %2090 = vmatprep.subr.bf16.mxu0 0
        %2091 = vmatpush1.bf16.msra.mxu0 0
        %2092 = vmatprep.subr.bf16.mxu0 0
        %2093 = vmatpush1.bf16.msra.mxu0 0
        %2094 = vmatprep.subr.bf16.mxu0 0
        %2095 = vmatpush1.bf16.msra.mxu0 0
        %2096 = vmatprep.subr.bf16.mxu0 0
        %2097 = vmatpush1.bf16.msra.mxu0 0
        %2098 = vmatprep.subr.bf16.mxu0 0
        %2099 = vmatpush1.bf16.msra.mxu0 0
        %2100 = vmatprep.subr.bf16.mxu0 0
        %2101 = vmatpush1.bf16.msra.mxu0 0
        %2102 = vmatprep.subr.bf16.mxu0 0
        %2103 = vmatpush1.bf16.msra.mxu0 0
        %2104 = vmatprep.subr.bf16.mxu0 0
        %2105 = vmatpush1.bf16.msra.mxu0 0
        %2106 = vmatprep.subr.bf16.mxu0 0
        %2107 = vmatpush1.bf16.msra.mxu0 0
        %2108 = vmatprep.subr.bf16.mxu0 0
        %2109 = vmatpush1.bf16.msra.mxu0 0
        %2110 = vmatprep.subr.bf16.mxu0 0
        %2111 = vmatpush1.bf16.msra.mxu0 0
        %2112 = vmatprep.subr.bf16.mxu0 0
        %2113 = vmatpush1.bf16.msra.mxu0 0
        %2114 = vmatprep.mubr.bf16.mxu0 0
        %2115 = vmatmul.mubr.bf16.gmra.mrb[0].mxu0 %v2077
        %v2116 = vpop.f32.mrb[0].mxu0
        %v2117 = vadd.f32 0.0, %v2116
        %v2118 = vpop.f32.mrb[0].mxu0
        %v2119 = vpop.f32.mrb[0].mxu0
        %v2120 = vpop.f32.mrb[0].mxu0
        %2121 = vdwg.mxu0
        %v2122 = vadd.f32 %v1781, %v2117
        %s2123 = scalar_lea.vmem %s760, 48
        %v2124 = vld [vmem:[%s2123] sm:$0xf]
        %v2125 = vld [vmem:[%s2123 + $0x4] sm:$0xf]
        %v2126 = vld [vmem:[%s2123 + $0x8] sm:$0xf]
        %v2127 = vld [vmem:[%s2123 + $0xc] sm:$0xf]
        %v2132 = vunpack.c.l.b16 %v2124
        %v2133 = vunpack.c.l.b16 %v2125
        %v2134 = vunpack.c.l.b16 %v2126
        %v2135 = vunpack.c.l.b16 %v2127
        %v2136 = vpack.c.b16 %v2133, %v2132
        %v2137 = vpack.c.b16 %v2135, %v2134
        %2140 = vrot.lane.b32.xlu0 %v1114, 104
        %v2141 = vpop.permute.xlu0 %2140
        %2143 = vmatprep.subr.bf16.mxu0 0
        %2144 = vmatpush1.bf16.msra.mxu0 %v2136
        %2145 = vmatprep.subr.bf16.mxu0 0
        %2146 = vmatpush1.bf16.msra.mxu0 %v2137
        %2147 = vmatprep.subr.bf16.mxu0 0
        %2148 = vmatpush1.bf16.msra.mxu0 0
        %2149 = vmatprep.subr.bf16.mxu0 0
        %2150 = vmatpush1.bf16.msra.mxu0 0
        %2151 = vmatprep.subr.bf16.mxu0 0
        %2152 = vmatpush1.bf16.msra.mxu0 0
        %2153 = vmatprep.subr.bf16.mxu0 0
        %2154 = vmatpush1.bf16.msra.mxu0 0
        %2155 = vmatprep.subr.bf16.mxu0 0
        %2156 = vmatpush1.bf16.msra.mxu0 0
        %2157 = vmatprep.subr.bf16.mxu0 0
        %2158 = vmatpush1.bf16.msra.mxu0 0
        %2159 = vmatprep.subr.bf16.mxu0 0
        %2160 = vmatpush1.bf16.msra.mxu0 0
        %2161 = vmatprep.subr.bf16.mxu0 0
        %2162 = vmatpush1.bf16.msra.mxu0 0
        %2163 = vmatprep.subr.bf16.mxu0 0
        %2164 = vmatpush1.bf16.msra.mxu0 0
        %2165 = vmatprep.subr.bf16.mxu0 0
        %2166 = vmatpush1.bf16.msra.mxu0 0
        %2167 = vmatprep.subr.bf16.mxu0 0
        %2168 = vmatpush1.bf16.msra.mxu0 0
        %2169 = vmatprep.subr.bf16.mxu0 0
        %2170 = vmatpush1.bf16.msra.mxu0 0
        %2171 = vmatprep.subr.bf16.mxu0 0
        %2172 = vmatpush1.bf16.msra.mxu0 0
        %2173 = vmatprep.subr.bf16.mxu0 0
        %2174 = vmatpush1.bf16.msra.mxu0 0
        %2175 = vmatprep.mubr.bf16.mxu0 0
        %2176 = vmatmul.mubr.bf16.gmra.mrb[0].mxu0 %v1128
        %v2177 = vpop.f32.mrb[0].mxu0
        %v2178 = vadd.f32 %v2141, %v2177
        %v2179 = vpop.f32.mrb[0].mxu0
        %v2180 = vpop.f32.mrb[0].mxu0
        %v2181 = vpop.f32.mrb[0].mxu0
        %2182 = vdwg.mxu0
        %s2183 = scalar_lea.vmem %s765, 48
        %v2184 = vld [vmem:[%s2183] sm:$0xf]
        %v2185 = vld [vmem:[%s2183 + $0x4] sm:$0xf]
        %v2186 = vld [vmem:[%s2183 + $0x8] sm:$0xf]
        %v2187 = vld [vmem:[%s2183 + $0xc] sm:$0xf]
        %v2192 = vunpack.c.l.b16 %v2184
        %v2193 = vunpack.c.l.b16 %v2185
        %v2194 = vunpack.c.l.b16 %v2186
        %v2195 = vunpack.c.l.b16 %v2187
        %v2196 = vpack.c.b16 %v2193, %v2192
        %v2197 = vpack.c.b16 %v2195, %v2194
        %2200 = vrot.lane.b32.xlu0 %v1177, 104
        %v2201 = vpop.permute.xlu0 %2200
        %2203 = vmatprep.subr.bf16.mxu0 0
        %2204 = vmatpush1.bf16.msra.mxu0 %v2196
        %2205 = vmatprep.subr.bf16.mxu0 0
        %2206 = vmatpush1.bf16.msra.mxu0 %v2197
        %2207 = vmatprep.subr.bf16.mxu0 0
        %2208 = vmatpush1.bf16.msra.mxu0 0
        %2209 = vmatprep.subr.bf16.mxu0 0
        %2210 = vmatpush1.bf16.msra.mxu0 0
        %2211 = vmatprep.subr.bf16.mxu0 0
        %2212 = vmatpush1.bf16.msra.mxu0 0
        %2213 = vmatprep.subr.bf16.mxu0 0
        %2214 = vmatpush1.bf16.msra.mxu0 0
        %2215 = vmatprep.subr.bf16.mxu0 0
        %2216 = vmatpush1.bf16.msra.mxu0 0
        %2217 = vmatprep.subr.bf16.mxu0 0
        %2218 = vmatpush1.bf16.msra.mxu0 0
        %2219 = vmatprep.subr.bf16.mxu0 0
        %2220 = vmatpush1.bf16.msra.mxu0 0
        %2221 = vmatprep.subr.bf16.mxu0 0
        %2222 = vmatpush1.bf16.msra.mxu0 0
        %2223 = vmatprep.subr.bf16.mxu0 0
        %2224 = vmatpush1.bf16.msra.mxu0 0
        %2225 = vmatprep.subr.bf16.mxu0 0
        %2226 = vmatpush1.bf16.msra.mxu0 0
        %2227 = vmatprep.subr.bf16.mxu0 0
        %2228 = vmatpush1.bf16.msra.mxu0 0
        %2229 = vmatprep.subr.bf16.mxu0 0
        %2230 = vmatpush1.bf16.msra.mxu0 0
        %2231 = vmatprep.subr.bf16.mxu0 0
        %2232 = vmatpush1.bf16.msra.mxu0 0
        %2233 = vmatprep.subr.bf16.mxu0 0
        %2234 = vmatpush1.bf16.msra.mxu0 0
        %2235 = vmatprep.mubr.bf16.mxu0 0
        %2236 = vmatmul.mubr.bf16.gmra.mrb[0].mxu0 %v1128
        %v2237 = vpop.f32.mrb[0].mxu0
        %v2238 = vadd.f32 %v2201, %v2237
        %v2239 = vpop.f32.mrb[0].mxu0
        %v2240 = vpop.f32.mrb[0].mxu0
        %v2241 = vpop.f32.mrb[0].mxu0
        %2242 = vdwg.mxu0
        %s2243 = scalar_lea.vmem %s770, 48
        %v2244 = vld [vmem:[%s2243] sm:$0xf]
        %v2245 = vld [vmem:[%s2243 + $0x4] sm:$0xf]
        %v2246 = vld [vmem:[%s2243 + $0x8] sm:$0xf]
        %v2247 = vld [vmem:[%s2243 + $0xc] sm:$0xf]
        %v2252 = vunpack.c.l.b16 %v2244
        %v2253 = vunpack.c.l.b16 %v2245
        %v2254 = vunpack.c.l.b16 %v2246
        %v2255 = vunpack.c.l.b16 %v2247
        %v2256 = vpack.c.b16 %v2253, %v2252
        %v2257 = vpack.c.b16 %v2255, %v2254
        %2260 = vrot.lane.b32.xlu0 %v1237, 104
        %v2261 = vpop.permute.xlu0 %2260
        %2263 = vmatprep.subr.bf16.mxu0 0
        %2264 = vmatpush1.bf16.msra.mxu0 %v2256
        %2265 = vmatprep.subr.bf16.mxu0 0
        %2266 = vmatpush1.bf16.msra.mxu0 %v2257
        %2267 = vmatprep.subr.bf16.mxu0 0
        %2268 = vmatpush1.bf16.msra.mxu0 0
        %2269 = vmatprep.subr.bf16.mxu0 0
        %2270 = vmatpush1.bf16.msra.mxu0 0
        %2271 = vmatprep.subr.bf16.mxu0 0
        %2272 = vmatpush1.bf16.msra.mxu0 0
        %2273 = vmatprep.subr.bf16.mxu0 0
        %2274 = vmatpush1.bf16.msra.mxu0 0
        %2275 = vmatprep.subr.bf16.mxu0 0
        %2276 = vmatpush1.bf16.msra.mxu0 0
        %2277 = vmatprep.subr.bf16.mxu0 0
        %2278 = vmatpush1.bf16.msra.mxu0 0
        %2279 = vmatprep.subr.bf16.mxu0 0
        %2280 = vmatpush1.bf16.msra.mxu0 0
        %2281 = vmatprep.subr.bf16.mxu0 0
        %2282 = vmatpush1.bf16.msra.mxu0 0
        %2283 = vmatprep.subr.bf16.mxu0 0
        %2284 = vmatpush1.bf16.msra.mxu0 0
        %2285 = vmatprep.subr.bf16.mxu0 0
        %2286 = vmatpush1.bf16.msra.mxu0 0
        %2287 = vmatprep.subr.bf16.mxu0 0
        %2288 = vmatpush1.bf16.msra.mxu0 0
        %2289 = vmatprep.subr.bf16.mxu0 0
        %2290 = vmatpush1.bf16.msra.mxu0 0
        %2291 = vmatprep.subr.bf16.mxu0 0
        %2292 = vmatpush1.bf16.msra.mxu0 0
        %2293 = vmatprep.subr.bf16.mxu0 0
        %2294 = vmatpush1.bf16.msra.mxu0 0
        %2295 = vmatprep.mubr.bf16.mxu0 0
        %2296 = vmatmul.mubr.bf16.gmra.mrb[0].mxu0 %v1128
        %v2297 = vpop.f32.mrb[0].mxu0
        %v2298 = vadd.f32 %v2261, %v2297
        %v2299 = vpop.f32.mrb[0].mxu0
        %v2300 = vpop.f32.mrb[0].mxu0
        %v2301 = vpop.f32.mrb[0].mxu0
        %2302 = vdwg.mxu0
        %v2303 = vpack.c.bf16 %v2178, %v2178
        %v2304 = vpack.c.bf16 %v2238, %v2238
        %v2306 = vsel %vm1292, %v2303, 0
        %v2309 = vsel %vm1292, %v2304, 0
        %2311 = vmatprep.subr.bf16.mxu0 0
        %2312 = vmatpush1.bf16.xpose.msra.mxu0 %v2309
        %2313 = vmatprep.subr.bf16.mxu0 0
        %2314 = vmatpush1.bf16.xpose.msra.mxu0 0
        %2315 = vmatprep.subr.bf16.mxu0 0
        %2316 = vmatpush1.bf16.xpose.msra.mxu0 0
        %2317 = vmatprep.subr.bf16.mxu0 0
        %2318 = vmatpush1.bf16.xpose.msra.mxu0 0
        %2319 = vmatprep.subr.bf16.mxu0 0
        %2320 = vmatpush1.bf16.xpose.msra.mxu0 0
        %2321 = vmatprep.subr.bf16.mxu0 0
        %2322 = vmatpush1.bf16.xpose.msra.mxu0 0
        %2323 = vmatprep.subr.bf16.mxu0 0
        %2324 = vmatpush1.bf16.xpose.msra.mxu0 0
        %2325 = vmatprep.subr.bf16.mxu0 0
        %2326 = vmatpush1.bf16.xpose.msra.mxu0 0
        %2327 = vmatprep.subr.bf16.mxu0 0
        %2328 = vmatpush1.bf16.xpose.msra.mxu0 0
        %2329 = vmatprep.subr.bf16.mxu0 0
        %2330 = vmatpush1.bf16.xpose.msra.mxu0 0
        %2331 = vmatprep.subr.bf16.mxu0 0
        %2332 = vmatpush1.bf16.xpose.msra.mxu0 0
        %2333 = vmatprep.subr.bf16.mxu0 0
        %2334 = vmatpush1.bf16.xpose.msra.mxu0 0
        %2335 = vmatprep.subr.bf16.mxu0 0
        %2336 = vmatpush1.bf16.xpose.msra.mxu0 0
        %2337 = vmatprep.subr.bf16.mxu0 0
        %2338 = vmatpush1.bf16.xpose.msra.mxu0 0
        %2339 = vmatprep.subr.bf16.mxu0 0
        %2340 = vmatpush1.bf16.xpose.msra.mxu0 0
        %2341 = vmatprep.subr.bf16.mxu0 0
        %2342 = vmatpush1.bf16.xpose.msra.mxu0 0
        %2343 = vmatprep.mubr.bf16.mxu0 0
        %2344 = vmatmul.mubr.bf16.gmra.mrb[0].mxu0 %v2306
        %v2345 = vpop.f32.mrb[0].mxu0
        %v2346 = vadd.f32 %v903, %v2345
        %v2347 = vpop.f32.mrb[0].mxu0
        %v2348 = vpop.f32.mrb[0].mxu0
        %v2349 = vpop.f32.mrb[0].mxu0
        %2350 = vdwg.mxu0
        %v2351 = vsel %vm1292, %v2346, -inf
        %2352 = vmax.xlane.f32.xlu0 %v2351
        %v2353 = vpop.xlane.xlu0 %2352
        %v2354 = vsub.f32 %v2346, %v2353
        %v2355 = vmul.f32 %v2354, 1.442695
        %v2356 = vpow.pop %v2355
        %v2357 = vsel %vm1292, %v2356, 0.0
        %2358 = vadd.xlane.f32.xlu0 %v2357
        %v2359 = vpop.xlane.xlu0 %2358
        %v2360 = vrcp.pop %v2359
        %v2361 = vmul.f32 %v2356, %v2360
        %v2362 = vpack.c.bf16 %v2361, %v2361
        %v2363 = vpack.c.bf16 %v2298, %v2298
        %v2365 = vsel %vm1292, %v2362, 0
        %v2368 = vsel %vm1355, %v2363, 0
        %2370 = vmatprep.subr.bf16.mxu0 0
        %2371 = vmatpush1.bf16.msra.mxu0 %v2368
        %2372 = vmatprep.subr.bf16.mxu0 0
        %2373 = vmatpush1.bf16.msra.mxu0 0
        %2374 = vmatprep.subr.bf16.mxu0 0
        %2375 = vmatpush1.bf16.msra.mxu0 0
        %2376 = vmatprep.subr.bf16.mxu0 0
        %2377 = vmatpush1.bf16.msra.mxu0 0
        %2378 = vmatprep.subr.bf16.mxu0 0
        %2379 = vmatpush1.bf16.msra.mxu0 0
        %2380 = vmatprep.subr.bf16.mxu0 0
        %2381 = vmatpush1.bf16.msra.mxu0 0
        %2382 = vmatprep.subr.bf16.mxu0 0
        %2383 = vmatpush1.bf16.msra.mxu0 0
        %2384 = vmatprep.subr.bf16.mxu0 0
        %2385 = vmatpush1.bf16.msra.mxu0 0
        %2386 = vmatprep.subr.bf16.mxu0 0
        %2387 = vmatpush1.bf16.msra.mxu0 0
        %2388 = vmatprep.subr.bf16.mxu0 0
        %2389 = vmatpush1.bf16.msra.mxu0 0
        %2390 = vmatprep.subr.bf16.mxu0 0
        %2391 = vmatpush1.bf16.msra.mxu0 0
        %2392 = vmatprep.subr.bf16.mxu0 0
        %2393 = vmatpush1.bf16.msra.mxu0 0
        %2394 = vmatprep.subr.bf16.mxu0 0
        %2395 = vmatpush1.bf16.msra.mxu0 0
        %2396 = vmatprep.subr.bf16.mxu0 0
        %2397 = vmatpush1.bf16.msra.mxu0 0
        %2398 = vmatprep.subr.bf16.mxu0 0
        %2399 = vmatpush1.bf16.msra.mxu0 0
        %2400 = vmatprep.subr.bf16.mxu0 0
        %2401 = vmatpush1.bf16.msra.mxu0 0
        %2402 = vmatprep.mubr.bf16.mxu0 0
        %2403 = vmatmul.mubr.bf16.gmra.mrb[0].mxu0 %v2365
        %v2404 = vpop.f32.mrb[0].mxu0
        %v2405 = vadd.f32 0.0, %v2404
        %v2406 = vpop.f32.mrb[0].mxu0
        %v2407 = vpop.f32.mrb[0].mxu0
        %v2408 = vpop.f32.mrb[0].mxu0
        %2409 = vdwg.mxu0
        %s2410 = scalar_lea.vmem %s775, 12
        %v2411 = vld [vmem:[%s2410] sm:$0xf]
        %v2412 = vpack.c.bf16 %v2405, %v2405
        %v2414 = vsel %vm1292, %v2412, 0
        %v2417 = vsel %vm1355, %v2411, 0
        %2419 = vmatprep.subr.bf16.mxu0 0
        %2420 = vmatpush1.bf16.msra.mxu0 %v2417
        %2421 = vmatprep.subr.bf16.mxu0 0
        %2422 = vmatpush1.bf16.msra.mxu0 0
        %2423 = vmatprep.subr.bf16.mxu0 0
        %2424 = vmatpush1.bf16.msra.mxu0 0
        %2425 = vmatprep.subr.bf16.mxu0 0
        %2426 = vmatpush1.bf16.msra.mxu0 0
        %2427 = vmatprep.subr.bf16.mxu0 0
        %2428 = vmatpush1.bf16.msra.mxu0 0
        %2429 = vmatprep.subr.bf16.mxu0 0
        %2430 = vmatpush1.bf16.msra.mxu0 0
        %2431 = vmatprep.subr.bf16.mxu0 0
        %2432 = vmatpush1.bf16.msra.mxu0 0
        %2433 = vmatprep.subr.bf16.mxu0 0
        %2434 = vmatpush1.bf16.msra.mxu0 0
        %2435 = vmatprep.subr.bf16.mxu0 0
        %2436 = vmatpush1.bf16.msra.mxu0 0
        %2437 = vmatprep.subr.bf16.mxu0 0
        %2438 = vmatpush1.bf16.msra.mxu0 0
        %2439 = vmatprep.subr.bf16.mxu0 0
        %2440 = vmatpush1.bf16.msra.mxu0 0
        %2441 = vmatprep.subr.bf16.mxu0 0
        %2442 = vmatpush1.bf16.msra.mxu0 0
        %2443 = vmatprep.subr.bf16.mxu0 0
        %2444 = vmatpush1.bf16.msra.mxu0 0
        %2445 = vmatprep.subr.bf16.mxu0 0
        %2446 = vmatpush1.bf16.msra.mxu0 0
        %2447 = vmatprep.subr.bf16.mxu0 0
        %2448 = vmatpush1.bf16.msra.mxu0 0
        %2449 = vmatprep.subr.bf16.mxu0 0
        %2450 = vmatpush1.bf16.msra.mxu0 0
        %2451 = vmatprep.mubr.bf16.mxu0 0
        %2452 = vmatmul.mubr.bf16.gmra.mrb[0].mxu0 %v2414
        %v2453 = vpop.f32.mrb[0].mxu0
        %v2454 = vadd.f32 0.0, %v2453
        %v2455 = vpop.f32.mrb[0].mxu0
        %v2456 = vpop.f32.mrb[0].mxu0
        %v2457 = vpop.f32.mrb[0].mxu0
        %2458 = vdwg.mxu0
        %v2459 = vadd.f32 %v2122, %v2454
        %v2460 = vadd.f32 %v1082, %v2459
        %v2461 = vlaneseq
        %v2462 = vshrl.u32 %v2461, 7
        %v2463 = vsub.s32 0, %v2462
        %v2464 = vrot.slane %v822, %v2463
        %v2465 = vadd.f32 %v2460, %v2464
        %v2466 = vsel %vm904, %v2465, 0.0
        %2467 = vadd.xlane.f32.xlu0 %v2466
        %v2468 = vpop.xlane.xlu0 %2467
        %v2469 = vmul.f32 %v2468, %v908
        %v2470 = vsub.f32 %v2465, %v2469
        %v2471 = vmul.f32 %v2470, %v2470
        %v2472 = vsel %vm904, %v2471, 0.0
        %2473 = vadd.xlane.f32.xlu0 %v2472
        %v2474 = vpop.xlane.xlu0 %2473
        %v2475 = vmul.f32 %v2474, %v908
        %v2476 = vadd.f32 %v2475, 1e-05
        %v2477 = vrsqrt.pop %v2476
        %v2478 = vmul.f32 %v2470, %v2477
        %v2479 = vlaneseq
        %v2480 = vshrl.u32 %v2479, 7
        %v2481 = vsub.s32 1, %v2480
        %v2482 = vrot.slane %v822, %v2481
        %v2483 = vmul.f32 %v2478, %v2482
        %v2484 = vlaneseq
        %v2485 = vshrl.u32 %v2484, 7
        %v2486 = vsub.s32 2, %v2485
        %v2487 = vrot.slane %v822, %v2486
        %v2488 = vadd.f32 %v2483, %v2487
        %v2489 = vld [vmem:[%s800] sm:$0xf]
        %v2490 = vld [vmem:[%s800 + $0x4] sm:$0xf]
        %v2491 = vld [vmem:[%s800 + $0x8] sm:$0xf]
        %v2492 = vld [vmem:[%s800 + $0xc] sm:$0xf]
        %v2493 = vpack.c.bf16 %v2488, %v2488
        %v2494 = vlaneseq
        %v2495 = vshrl.u32 %v2494, 7
        %v2496 = vsub.s32 3, %v2495
        %v2497 = vrot.slane %v822, %v2496
        %v2502 = vunpack.c.l.b16 %v2489
        %v2503 = vunpack.c.l.b16 %v2490
        %v2504 = vunpack.c.l.b16 %v2491
        %v2505 = vunpack.c.l.b16 %v2492
        %v2506 = vpack.c.b16 %v2503, %v2502
        %v2507 = vpack.c.b16 %v2505, %v2504
        %v2511 = vsel %vm904, %v2493, 0
        %2513 = vmatprep.subr.bf16.mxu0 0
        %2514 = vmatpush1.bf16.msra.mxu0 %v2506
        %2515 = vmatprep.subr.bf16.mxu0 0
        %2516 = vmatpush1.bf16.msra.mxu0 %v2507
        %2517 = vmatprep.subr.bf16.mxu0 0
        %2518 = vmatpush1.bf16.msra.mxu0 0
        %2519 = vmatprep.subr.bf16.mxu0 0
        %2520 = vmatpush1.bf16.msra.mxu0 0
        %2521 = vmatprep.subr.bf16.mxu0 0
        %2522 = vmatpush1.bf16.msra.mxu0 0
        %2523 = vmatprep.subr.bf16.mxu0 0
        %2524 = vmatpush1.bf16.msra.mxu0 0
        %2525 = vmatprep.subr.bf16.mxu0 0
        %2526 = vmatpush1.bf16.msra.mxu0 0
        %2527 = vmatprep.subr.bf16.mxu0 0
        %2528 = vmatpush1.bf16.msra.mxu0 0
        %2529 = vmatprep.subr.bf16.mxu0 0
        %2530 = vmatpush1.bf16.msra.mxu0 0
        %2531 = vmatprep.subr.bf16.mxu0 0
        %2532 = vmatpush1.bf16.msra.mxu0 0
        %2533 = vmatprep.subr.bf16.mxu0 0
        %2534 = vmatpush1.bf16.msra.mxu0 0
        %2535 = vmatprep.subr.bf16.mxu0 0
        %2536 = vmatpush1.bf16.msra.mxu0 0
        %2537 = vmatprep.subr.bf16.mxu0 0
        %2538 = vmatpush1.bf16.msra.mxu0 0
        %2539 = vmatprep.subr.bf16.mxu0 0
        %2540 = vmatpush1.bf16.msra.mxu0 0
        %2541 = vmatprep.subr.bf16.mxu0 0
        %2542 = vmatpush1.bf16.msra.mxu0 0
        %2543 = vmatprep.subr.bf16.mxu0 0
        %2544 = vmatpush1.bf16.msra.mxu0 0
        %2545 = vmatprep.mubr.bf16.mxu0 0
        %2546 = vmatmul.mubr.bf16.gmra.mrb[0].mxu0 %v2511
        %v2547 = vpop.f32.mrb[0].mxu0
        %v2548 = vadd.f32 %v2497, %v2547
        %v2549 = vpop.f32.mrb[0].mxu0
        %v2550 = vpop.f32.mrb[0].mxu0
        %v2551 = vpop.f32.mrb[0].mxu0
        %2552 = vdwg.mxu0
        %v2553 = vld [vmem:[%s805] sm:$0xf]
        %v2554 = vld [vmem:[%s805 + $0x4] sm:$0xf]
        %v2555 = vld [vmem:[%s805 + $0x8] sm:$0xf]
        %v2556 = vld [vmem:[%s805 + $0xc] sm:$0xf]
        %v2557 = vlaneseq
        %v2558 = vshrl.u32 %v2557, 7
        %v2559 = vsub.s32 4, %v2558
        %v2560 = vrot.slane %v822, %v2559
        %v2565 = vunpack.c.l.b16 %v2553
        %v2566 = vunpack.c.l.b16 %v2554
        %v2567 = vunpack.c.l.b16 %v2555
        %v2568 = vunpack.c.l.b16 %v2556
        %v2569 = vpack.c.b16 %v2566, %v2565
        %v2570 = vpack.c.b16 %v2568, %v2567
        %2573 = vmatprep.subr.bf16.mxu0 0
        %2574 = vmatpush1.bf16.msra.mxu0 %v2569
        %2575 = vmatprep.subr.bf16.mxu0 0
        %2576 = vmatpush1.bf16.msra.mxu0 %v2570
        %2577 = vmatprep.subr.bf16.mxu0 0
        %2578 = vmatpush1.bf16.msra.mxu0 0
        %2579 = vmatprep.subr.bf16.mxu0 0
        %2580 = vmatpush1.bf16.msra.mxu0 0
        %2581 = vmatprep.subr.bf16.mxu0 0
        %2582 = vmatpush1.bf16.msra.mxu0 0
        %2583 = vmatprep.subr.bf16.mxu0 0
        %2584 = vmatpush1.bf16.msra.mxu0 0
        %2585 = vmatprep.subr.bf16.mxu0 0
        %2586 = vmatpush1.bf16.msra.mxu0 0
        %2587 = vmatprep.subr.bf16.mxu0 0
        %2588 = vmatpush1.bf16.msra.mxu0 0
        %2589 = vmatprep.subr.bf16.mxu0 0
        %2590 = vmatpush1.bf16.msra.mxu0 0
        %2591 = vmatprep.subr.bf16.mxu0 0
        %2592 = vmatpush1.bf16.msra.mxu0 0
        %2593 = vmatprep.subr.bf16.mxu0 0
        %2594 = vmatpush1.bf16.msra.mxu0 0
        %2595 = vmatprep.subr.bf16.mxu0 0
        %2596 = vmatpush1.bf16.msra.mxu0 0
        %2597 = vmatprep.subr.bf16.mxu0 0
        %2598 = vmatpush1.bf16.msra.mxu0 0
        %2599 = vmatprep.subr.bf16.mxu0 0
        %2600 = vmatpush1.bf16.msra.mxu0 0
        %2601 = vmatprep.subr.bf16.mxu0 0
        %2602 = vmatpush1.bf16.msra.mxu0 0
        %2603 = vmatprep.subr.bf16.mxu0 0
        %2604 = vmatpush1.bf16.msra.mxu0 0
        %2605 = vmatprep.mubr.bf16.mxu0 0
        %2606 = vmatmul.mubr.bf16.gmra.mrb[0].mxu0 %v2511
        %v2607 = vpop.f32.mrb[0].mxu0
        %v2608 = vadd.f32 %v2560, %v2607
        %v2609 = vpop.f32.mrb[0].mxu0
        %v2610 = vpop.f32.mrb[0].mxu0
        %v2611 = vpop.f32.mrb[0].mxu0
        %2612 = vdwg.mxu0
        %v2613 = vxor.u32 %v2608, 2147483648
        %v2614 = vmul.f32 %v2613, 1.442695
        %v2615 = vpow.pop %v2614
        %v2616 = vadd.f32 %v2615, 1.0
        %v2617 = vrcp.pop %v2616
        %v2618 = vmul.f32 1.0, %v2617
        %v2619 = vmul.f32 %v2548, %v2618
        %v2620 = vlaneseq
        %v2621 = vshrl.u32 %v2620, 7
        %v2622 = vrot.slane %v2619, 5
        %v2623 = vadd.s32 %v2621, 4294967293
        %vm2624 = vcmp.ge.s32.totalorder %v2623, 0
        %vm2625 = vcmp.lt.s32.totalorder %v2623, 8
        %vm2626 = vmand %vm2624, %vm2625
        %v2627 = vsel %vm2626, 1, 0
        %v2628 = vcvt.s32.f32 %v2627
        %v2629 = vmul.f32 %v2622, %v2628
        %v2630 = vlaneseq
        %v2631 = vshrl.u32 %v2630, 7
        %v2632 = vsub.s32 6, %v2631
        %v2633 = vrot.slane %v823, %v2632
        %v2634 = vmul.f32 %v2629, %v2633
        %v2635 = vadd.f32 %v2634, 0.0
        %v2636 = vrot.slane %v2619, 6
        %v2637 = vadd.s32 %v2621, 4294967294
        %vm2638 = vcmp.ge.s32.totalorder %v2637, 0
        %vm2639 = vcmp.lt.s32.totalorder %v2637, 8
        %vm2640 = vmand %vm2638, %vm2639
        %v2641 = vsel %vm2640, 1, 0
        %v2642 = vcvt.s32.f32 %v2641
        %v2643 = vmul.f32 %v2636, %v2642
        %v2644 = vlaneseq
        %v2645 = vshrl.u32 %v2644, 7
        %v2646 = vsub.s32 7, %v2645
        %v2647 = vrot.slane %v823, %v2646
        %v2648 = vmul.f32 %v2643, %v2647
        %v2649 = vadd.f32 %v2635, %v2648
        %v2650 = vrot.slane %v2619, 7
        %v2651 = vadd.s32 %v2621, 4294967295
        %vm2652 = vcmp.ge.s32.totalorder %v2651, 0
        %vm2653 = vcmp.lt.s32.totalorder %v2651, 8
        %vm2654 = vmand %vm2652, %vm2653
        %v2655 = vsel %vm2654, 1, 0
        %v2656 = vcvt.s32.f32 %v2655
        %v2657 = vmul.f32 %v2650, %v2656
        %v2658 = vlaneseq
        %v2659 = vshrl.u32 %v2658, 7
        %v2660 = vsub.s32 0, %v2659
        %v2661 = vrot.slane %v824, %v2660
        %v2662 = vmul.f32 %v2657, %v2661
        %v2663 = vadd.f32 %v2649, %v2662
        %vm2664 = vcmp.ge.s32.totalorder %v2621, 0
        %vm2665 = vcmp.lt.s32.totalorder %v2621, 8
        %vm2666 = vmand %vm2664, %vm2665
        %v2667 = vsel %vm2666, 1, 0
        %v2668 = vcvt.s32.f32 %v2667
        %v2669 = vmul.f32 %v2619, %v2668
        %v2670 = vlaneseq
        %v2671 = vshrl.u32 %v2670, 7
        %v2672 = vsub.s32 1, %v2671
        %v2673 = vrot.slane %v824, %v2672
        %v2674 = vmul.f32 %v2669, %v2673
        %v2675 = vadd.f32 %v2663, %v2674
        %v2676 = vrot.slane %v2619, 1
        %v2677 = vadd.s32 %v2621, 1
        %vm2678 = vcmp.ge.s32.totalorder %v2677, 0
        %vm2679 = vcmp.lt.s32.totalorder %v2677, 8
        %vm2680 = vmand %vm2678, %vm2679
        %v2681 = vsel %vm2680, 1, 0
        %v2682 = vcvt.s32.f32 %v2681
        %v2683 = vmul.f32 %v2676, %v2682
        %v2684 = vlaneseq
        %v2685 = vshrl.u32 %v2684, 7
        %v2686 = vsub.s32 2, %v2685
        %v2687 = vrot.slane %v824, %v2686
        %v2688 = vmul.f32 %v2683, %v2687
        %v2689 = vadd.f32 %v2675, %v2688
        %v2690 = vrot.slane %v2619, 2
        %v2691 = vadd.s32 %v2621, 2
        %vm2692 = vcmp.ge.s32.totalorder %v2691, 0
        %vm2693 = vcmp.lt.s32.totalorder %v2691, 8
        %vm2694 = vmand %vm2692, %vm2693
        %v2695 = vsel %vm2694, 1, 0
        %v2696 = vcvt.s32.f32 %v2695
        %v2697 = vmul.f32 %v2690, %v2696
        %v2698 = vlaneseq
        %v2699 = vshrl.u32 %v2698, 7
        %v2700 = vsub.s32 3, %v2699
        %v2701 = vrot.slane %v824, %v2700
        %v2702 = vmul.f32 %v2697, %v2701
        %v2703 = vadd.f32 %v2689, %v2702
        %v2704 = vrot.slane %v2619, 3
        %v2705 = vadd.s32 %v2621, 3
        %vm2706 = vcmp.ge.s32.totalorder %v2705, 0
        %vm2707 = vcmp.lt.s32.totalorder %v2705, 8
        %vm2708 = vmand %vm2706, %vm2707
        %v2709 = vsel %vm2708, 1, 0
        %v2710 = vcvt.s32.f32 %v2709
        %v2711 = vmul.f32 %v2704, %v2710
        %v2712 = vlaneseq
        %v2713 = vshrl.u32 %v2712, 7
        %v2714 = vsub.s32 4, %v2713
        %v2715 = vrot.slane %v824, %v2714
        %v2716 = vmul.f32 %v2711, %v2715
        %v2717 = vadd.f32 %v2703, %v2716
        %v2718 = vlaneseq
        %v2719 = vshrl.u32 %v2718, 7
        %v2720 = vsub.s32 5, %v2719
        %v2721 = vrot.slane %v822, %v2720
        %v2722 = vadd.f32 %v2717, %v2721
        %v2723 = vlaneseq
        %v2724 = vshrl.u32 %v2723, 7
        %v2725 = vsub.s32 6, %v2724
        %v2726 = vrot.slane %v822, %v2725
        %v2727 = vmul.f32 %v2722, %v2726
        %v2728 = vlaneseq
        %v2729 = vshrl.u32 %v2728, 7
        %v2730 = vsub.s32 7, %v2729
        %v2731 = vrot.slane %v822, %v2730
        %v2732 = vadd.f32 %v2727, %v2731
        %v2733 = vxor.u32 %v2732, 2147483648
        %v2734 = vmul.f32 %v2733, 1.442695
        %v2735 = vpow.pop %v2734
        %v2736 = vadd.f32 %v2735, 1.0
        %v2737 = vrcp.pop %v2736
        %v2738 = vmul.f32 1.0, %v2737
        %v2739 = vmul.f32 %v2732, %v2738
        %v2740 = vld [vmem:[%s810] sm:$0xf]
        %v2741 = vld [vmem:[%s810 + $0x4] sm:$0xf]
        %v2742 = vld [vmem:[%s810 + $0x8] sm:$0xf]
        %v2743 = vld [vmem:[%s810 + $0xc] sm:$0xf]
        %v2744 = vpack.c.bf16 %v2739, %v2739
        %v2745 = vlaneseq
        %v2746 = vshrl.u32 %v2745, 7
        %v2747 = vsub.s32 0, %v2746
        %v2748 = vrot.slane %v823, %v2747
        %v2753 = vunpack.c.l.b16 %v2740
        %v2754 = vunpack.c.l.b16 %v2741
        %v2755 = vunpack.c.l.b16 %v2742
        %v2756 = vunpack.c.l.b16 %v2743
        %v2757 = vpack.c.b16 %v2754, %v2753
        %v2758 = vpack.c.b16 %v2756, %v2755
        %v2762 = vsel %vm904, %v2744, 0
        %2764 = vmatprep.subr.bf16.mxu0 0
        %2765 = vmatpush1.bf16.msra.mxu0 %v2757
        %2766 = vmatprep.subr.bf16.mxu0 0
        %2767 = vmatpush1.bf16.msra.mxu0 %v2758
        %2768 = vmatprep.subr.bf16.mxu0 0
        %2769 = vmatpush1.bf16.msra.mxu0 0
        %2770 = vmatprep.subr.bf16.mxu0 0
        %2771 = vmatpush1.bf16.msra.mxu0 0
        %2772 = vmatprep.subr.bf16.mxu0 0
        %2773 = vmatpush1.bf16.msra.mxu0 0
        %2774 = vmatprep.subr.bf16.mxu0 0
        %2775 = vmatpush1.bf16.msra.mxu0 0
        %2776 = vmatprep.subr.bf16.mxu0 0
        %2777 = vmatpush1.bf16.msra.mxu0 0
        %2778 = vmatprep.subr.bf16.mxu0 0
        %2779 = vmatpush1.bf16.msra.mxu0 0
        %2780 = vmatprep.subr.bf16.mxu0 0
        %2781 = vmatpush1.bf16.msra.mxu0 0
        %2782 = vmatprep.subr.bf16.mxu0 0
        %2783 = vmatpush1.bf16.msra.mxu0 0
        %2784 = vmatprep.subr.bf16.mxu0 0
        %2785 = vmatpush1.bf16.msra.mxu0 0
        %2786 = vmatprep.subr.bf16.mxu0 0
        %2787 = vmatpush1.bf16.msra.mxu0 0
        %2788 = vmatprep.subr.bf16.mxu0 0
        %2789 = vmatpush1.bf16.msra.mxu0 0
        %2790 = vmatprep.subr.bf16.mxu0 0
        %2791 = vmatpush1.bf16.msra.mxu0 0
        %2792 = vmatprep.subr.bf16.mxu0 0
        %2793 = vmatpush1.bf16.msra.mxu0 0
        %2794 = vmatprep.subr.bf16.mxu0 0
        %2795 = vmatpush1.bf16.msra.mxu0 0
        %2796 = vmatprep.mubr.bf16.mxu0 0
        %2797 = vmatmul.mubr.bf16.gmra.mrb[0].mxu0 %v2762
        %v2798 = vpop.f32.mrb[0].mxu0
        %v2799 = vadd.f32 %v2748, %v2798
        %v2800 = vpop.f32.mrb[0].mxu0
        %v2801 = vpop.f32.mrb[0].mxu0
        %v2802 = vpop.f32.mrb[0].mxu0
        %2803 = vdwg.mxu0
        %v2804 = vadd.f32 %v2465, %v2799
        %v2805 = vsel %vm904, %v2804, 0.0
        %2806 = vadd.xlane.f32.xlu0 %v2805
        %v2807 = vpop.xlane.xlu0 %2806
        %v2808 = vmul.f32 %v2807, %v908
        %v2809 = vsub.f32 %v2804, %v2808
        %v2810 = vmul.f32 %v2809, %v2809
        %v2811 = vsel %vm904, %v2810, 0.0
        %2812 = vadd.xlane.f32.xlu0 %v2811
        %v2813 = vpop.xlane.xlu0 %2812
        %v2814 = vmul.f32 %v2813, %v908
        %v2815 = vadd.f32 %v2814, 1e-05
        %v2816 = vrsqrt.pop %v2815
        %v2817 = vmul.f32 %v2809, %v2816
        %v2818 = vlaneseq
        %v2819 = vshrl.u32 %v2818, 7
        %v2820 = vsub.s32 1, %v2819
        %v2821 = vrot.slane %v823, %v2820
        %v2822 = vmul.f32 %v2817, %v2821
        %v2823 = vlaneseq
        %v2824 = vshrl.u32 %v2823, 7
        %v2825 = vsub.s32 2, %v2824
        %v2826 = vrot.slane %v823, %v2825
        %v2827 = vadd.f32 %v2822, %v2826
        %v2828 = vld [vmem:[%s790] sm:$0xf]
        %v2829 = vld [vmem:[%s790 + $0x4] sm:$0xf]
        %v2830 = vld [vmem:[%s790 + $0x8] sm:$0xf]
        %v2831 = vld [vmem:[%s790 + $0xc] sm:$0xf]
        %v2832 = vpack.c.bf16 %v2827, %v2827
        %v2833 = vlaneseq
        %v2834 = vshrl.u32 %v2833, 7
        %v2835 = vsub.s32 1, %v2834
        %v2836 = vrot.slane %v825, %v2835
        %v2841 = vunpack.c.l.b16 %v2828
        %v2842 = vunpack.c.l.b16 %v2829
        %v2843 = vunpack.c.l.b16 %v2830
        %v2844 = vunpack.c.l.b16 %v2831
        %v2845 = vpack.c.b16 %v2842, %v2841
        %v2846 = vpack.c.b16 %v2844, %v2843
        %v2850 = vsel %vm904, %v2832, 0
        %2852 = vmatprep.subr.bf16.mxu0 0
        %2853 = vmatpush1.bf16.msra.mxu0 %v2845
        %2854 = vmatprep.subr.bf16.mxu0 0
        %2855 = vmatpush1.bf16.msra.mxu0 %v2846
        %2856 = vmatprep.subr.bf16.mxu0 0
        %2857 = vmatpush1.bf16.msra.mxu0 0
        %2858 = vmatprep.subr.bf16.mxu0 0
        %2859 = vmatpush1.bf16.msra.mxu0 0
        %2860 = vmatprep.subr.bf16.mxu0 0
        %2861 = vmatpush1.bf16.msra.mxu0 0
        %2862 = vmatprep.subr.bf16.mxu0 0
        %2863 = vmatpush1.bf16.msra.mxu0 0
        %2864 = vmatprep.subr.bf16.mxu0 0
        %2865 = vmatpush1.bf16.msra.mxu0 0
        %2866 = vmatprep.subr.bf16.mxu0 0
        %2867 = vmatpush1.bf16.msra.mxu0 0
        %2868 = vmatprep.subr.bf16.mxu0 0
        %2869 = vmatpush1.bf16.msra.mxu0 0
        %2870 = vmatprep.subr.bf16.mxu0 0
        %2871 = vmatpush1.bf16.msra.mxu0 0
        %2872 = vmatprep.subr.bf16.mxu0 0
        %2873 = vmatpush1.bf16.msra.mxu0 0
        %2874 = vmatprep.subr.bf16.mxu0 0
        %2875 = vmatpush1.bf16.msra.mxu0 0
        %2876 = vmatprep.subr.bf16.mxu0 0
        %2877 = vmatpush1.bf16.msra.mxu0 0
        %2878 = vmatprep.subr.bf16.mxu0 0
        %2879 = vmatpush1.bf16.msra.mxu0 0
        %2880 = vmatprep.subr.bf16.mxu0 0
        %2881 = vmatpush1.bf16.msra.mxu0 0
        %2882 = vmatprep.subr.bf16.mxu0 0
        %2883 = vmatpush1.bf16.msra.mxu0 0
        %2884 = vmatprep.mubr.bf16.mxu0 0
        %2885 = vmatmul.mubr.bf16.gmra.mrb[0].mxu0 %v2850
        %v2886 = vpop.f32.mrb[0].mxu0
        %v2887 = vadd.f32 %v2836, %v2886
        %v2888 = vpop.f32.mrb[0].mxu0
        %v2889 = vpop.f32.mrb[0].mxu0
        %v2890 = vpop.f32.mrb[0].mxu0
        %2891 = vdwg.mxu0
        %v2892 = vxor.u32 %v2887, 2147483648
        %v2893 = vmul.f32 %v2892, 1.442695
        %v2894 = vpow.pop %v2893
        %v2895 = vadd.f32 %v2894, 1.0
        %v2896 = vrcp.pop %v2895
        %v2897 = vmul.f32 1.0, %v2896
        %v2898 = vmul.f32 %v2887, %v2897
        %v2899 = vld [vmem:[%s795] sm:$0xf]
        %v2900 = vld [vmem:[%s795 + $0x4] sm:$0xf]
        %v2901 = vld [vmem:[%s795 + $0x8] sm:$0xf]
        %v2902 = vld [vmem:[%s795 + $0xc] sm:$0xf]
        %v2903 = vld [vmem:[%s795 + $0x10] sm:$0xf]
        %v2904 = vld [vmem:[%s795 + $0x14] sm:$0xf]
        %v2905 = vld [vmem:[%s795 + $0x18] sm:$0xf]
        %v2906 = vld [vmem:[%s795 + $0x1c] sm:$0xf]
        %v2907 = vpack.c.bf16 %v2898, %v2898
        %v2908 = vlaneseq
        %v2909 = vshrl.u32 %v2908, 7
        %v2910 = vsub.s32 3, %v2909
        %v2911 = vrot.slane %v823, %v2910
        %v2920 = vunpack.c.l.b16 %v2899
        %v2921 = vunpack.c.l.b16 %v2900
        %v2922 = vunpack.c.l.b16 %v2901
        %v2923 = vunpack.c.l.b16 %v2902
        %v2924 = vunpack.c.l.b16 %v2903
        %v2925 = vunpack.c.l.b16 %v2904
        %v2926 = vunpack.c.l.b16 %v2905
        %v2927 = vunpack.c.l.b16 %v2906
        %v2928 = vpack.c.b16 %v2921, %v2920
        %v2929 = vpack.c.b16 %v2923, %v2922
        %v2930 = vpack.c.b16 %v2925, %v2924
        %v2931 = vpack.c.b16 %v2927, %v2926
        %v2937 = vsel %vm1037, %v2907, 0
        %2939 = vmatprep.subr.bf16.mxu0 0
        %2940 = vmatpush1.bf16.msra.mxu0 %v2928
        %2941 = vmatprep.subr.bf16.mxu0 0
        %2942 = vmatpush1.bf16.msra.mxu0 %v2929
        %2943 = vmatprep.subr.bf16.mxu0 0
        %2944 = vmatpush1.bf16.msra.mxu0 %v2930
        %2945 = vmatprep.subr.bf16.mxu0 0
        %2946 = vmatpush1.bf16.msra.mxu0 %v2931
        %2947 = vmatprep.subr.bf16.mxu0 0
        %2948 = vmatpush1.bf16.msra.mxu0 0
        %2949 = vmatprep.subr.bf16.mxu0 0
        %2950 = vmatpush1.bf16.msra.mxu0 0
        %2951 = vmatprep.subr.bf16.mxu0 0
        %2952 = vmatpush1.bf16.msra.mxu0 0
        %2953 = vmatprep.subr.bf16.mxu0 0
        %2954 = vmatpush1.bf16.msra.mxu0 0
        %2955 = vmatprep.subr.bf16.mxu0 0
        %2956 = vmatpush1.bf16.msra.mxu0 0
        %2957 = vmatprep.subr.bf16.mxu0 0
        %2958 = vmatpush1.bf16.msra.mxu0 0
        %2959 = vmatprep.subr.bf16.mxu0 0
        %2960 = vmatpush1.bf16.msra.mxu0 0
        %2961 = vmatprep.subr.bf16.mxu0 0
        %2962 = vmatpush1.bf16.msra.mxu0 0
        %2963 = vmatprep.subr.bf16.mxu0 0
        %2964 = vmatpush1.bf16.msra.mxu0 0
        %2965 = vmatprep.subr.bf16.mxu0 0
        %2966 = vmatpush1.bf16.msra.mxu0 0
        %2967 = vmatprep.subr.bf16.mxu0 0
        %2968 = vmatpush1.bf16.msra.mxu0 0
        %2969 = vmatprep.subr.bf16.mxu0 0
        %2970 = vmatpush1.bf16.msra.mxu0 0
        %2971 = vmatprep.mubr.bf16.mxu0 0
        %2972 = vmatmul.mubr.bf16.gmra.mrb[0].mxu0 %v2937
        %v2973 = vpop.f32.mrb[0].mxu0
        %v2974 = vadd.f32 %v2911, %v2973
        %v2975 = vpop.f32.mrb[0].mxu0
        %v2976 = vpop.f32.mrb[0].mxu0
        %v2977 = vpop.f32.mrb[0].mxu0
        %2978 = vdwg.mxu0
        %v2979 = vmul.f32 %v2974, 0.5
        %v2980 = vadd.f32 %v2804, %v2979
        %v2981 = vsel %vm904, %v2980, 0.0
        %2982 = vadd.xlane.f32.xlu0 %v2981
        %v2983 = vpop.xlane.xlu0 %2982
        %v2984 = vmul.f32 %v2983, %v908
        %v2985 = vsub.f32 %v2980, %v2984
        %v2986 = vmul.f32 %v2985, %v2985
        %v2987 = vsel %vm904, %v2986, 0.0
        %2988 = vadd.xlane.f32.xlu0 %v2987
        %v2989 = vpop.xlane.xlu0 %2988
        %v2990 = vmul.f32 %v2989, %v908
        %v2991 = vadd.f32 %v2990, 1e-05
        %v2992 = vrsqrt.pop %v2991
        %v2993 = vmul.f32 %v2985, %v2992
        %v2994 = vlaneseq
        %v2995 = vshrl.u32 %v2994, 7
        %v2996 = vsub.s32 4, %v2995
        %v2997 = vrot.slane %v823, %v2996
        %v2998 = vmul.f32 %v2993, %v2997
        %v2999 = vlaneseq
        %v3000 = vshrl.u32 %v2999, 7
        %v3001 = vsub.s32 5, %v3000
        %v3002 = vrot.slane %v823, %v3001
        %v3003 = vadd.f32 %v2998, %v3002
        %3004 = vst.msk [vmem:[#allocation2] sm:$0xff] %vm904, %v3003
        %p3005 = scmp.eq.s32.totalorder %s43, 1
        // Predicated region
        $region93: #{conformer_encoder_forward.1} parent=87 // pred_check
          %p3006 = pneg %p3005
        $region94: #{conformer_encoder_forward.1} parent=87 // pred_check_branch
          %3008 = sbr.rel (%p3006) target = $region96
        $region95: #{conformer_encoder_forward.1} parent=87 // pred_region
          %v3009 = vld [vmem:[%s3] sm:$0xf]
          %v3010 = vld [vmem:[%s3 + $0x4] sm:$0xf]
          %v3011 = vld [vmem:[%s3 + $0x8] sm:$0xf]
          %v3012 = vld [vmem:[%s3 + $0xc] sm:$0xf]
          %v3013 = vpack.c.bf16 %v3003, %v3003
          %v3014 = vlaneseq
          %v3015 = vshrl.u32 %v3014, 7
          %v3016 = vsub.s32 1, %v3015
          %v3017 = vrot.slane %v826, %v3016
          %v3022 = vunpack.c.l.b16 %v3009
          %v3023 = vunpack.c.l.b16 %v3010
          %v3024 = vunpack.c.l.b16 %v3011
          %v3025 = vunpack.c.l.b16 %v3012
          %v3026 = vpack.c.b16 %v3023, %v3022
          %v3027 = vpack.c.b16 %v3025, %v3024
          %v3031 = vsel %vm904, %v3013, 0
          %3033 = vmatprep.subr.bf16.mxu0 0
          %3034 = vmatpush1.bf16.msra.mxu0 %v3026
          %3035 = vmatprep.subr.bf16.mxu0 0
          %3036 = vmatpush1.bf16.msra.mxu0 %v3027
          %3037 = vmatprep.subr.bf16.mxu0 0
          %3038 = vmatpush1.bf16.msra.mxu0 0
          %3039 = vmatprep.subr.bf16.mxu0 0
          %3040 = vmatpush1.bf16.msra.mxu0 0
          %3041 = vmatprep.subr.bf16.mxu0 0
          %3042 = vmatpush1.bf16.msra.mxu0 0
          %3043 = vmatprep.subr.bf16.mxu0 0
          %3044 = vmatpush1.bf16.msra.mxu0 0
          %3045 = vmatprep.subr.bf16.mxu0 0
          %3046 = vmatpush1.bf16.msra.mxu0 0
          %3047 = vmatprep.subr.bf16.mxu0 0
          %3048 = vmatpush1.bf16.msra.mxu0 0
          %3049 = vmatprep.subr.bf16.mxu0 0
          %3050 = vmatpush1.bf16.msra.mxu0 0
          %3051 = vmatprep.subr.bf16.mxu0 0
          %3052 = vmatpush1.bf16.msra.mxu0 0
          %3053 = vmatprep.subr.bf16.mxu0 0
          %3054 = vmatpush1.bf16.msra.mxu0 0
          %3055 = vmatprep.subr.bf16.mxu0 0
          %3056 = vmatpush1.bf16.msra.mxu0 0
          %3057 = vmatprep.subr.bf16.mxu0 0
          %3058 = vmatpush1.bf16.msra.mxu0 0
          %3059 = vmatprep.subr.bf16.mxu0 0
          %3060 = vmatpush1.bf16.msra.mxu0 0
          %3061 = vmatprep.subr.bf16.mxu0 0
          %3062 = vmatpush1.bf16.msra.mxu0 0
          %3063 = vmatprep.subr.bf16.mxu0 0
          %3064 = vmatpush1.bf16.msra.mxu0 0
          %3065 = vmatprep.mubr.bf16.mxu0 0
          %3066 = vmatmul.mubr.bf16.gmra.mrb[0].mxu0 %v3031
          %v3067 = vpop.f32.mrb[0].mxu0
          %v3068 = vadd.f32 %v3017, %v3067
          %v3069 = vpop.f32.mrb[0].mxu0
          %v3070 = vpop.f32.mrb[0].mxu0
          %v3071 = vpop.f32.mrb[0].mxu0
          %3072 = vdwg.mxu0
          %vm3073 = vcmp.lt.s32.totalorder %v899, 24
          %v3074 = vsel %vm3073, 1, 0
          %v3075 = vcvt.s32.f32 %v3074
          %v3076 = vsel %vm904, %v3068, 0.0
          %3077 = vadd.xlane.f32.xlu0 %v3076
          %v3078 = vpop.xlane.xlu0 %3077
          %v3079 = vrcp.pop 24.0
          %v3080 = vmul.f32 %v3078, %v3079
          %v3081 = vsub.f32 %v3068, %v3080
          %v3082 = vmul.f32 %v3081, %v3075
          %v3083 = vmul.f32 %v3082, %v3082
          %v3084 = vsel %vm904, %v3083, 0.0
          %3085 = vadd.xlane.f32.xlu0 %v3084
          %v3086 = vpop.xlane.xlu0 %3085
          %v3087 = vmul.f32 %v3086, %v3079
          %v3088 = vadd.f32 %v3087, 1e-05
          %v3089 = vrsqrt.pop %v3088
          %v3090 = vmul.f32 %v3082, %v3089
          %v3091 = vlaneseq
          %v3092 = vshrl.u32 %v3091, 7
          %v3093 = vsub.s32 2, %v3092
          %v3094 = vrot.slane %v826, %v3093
          %v3095 = vmul.f32 %v3090, %v3094
          %v3096 = vlaneseq
          %v3097 = vshrl.u32 %v3096, 7
          %v3098 = vsub.s32 3, %v3097
          %v3099 = vrot.slane %v826, %v3098
          %v3100 = vadd.f32 %v3095, %v3099
          %3101 = vst.msk [vmem:[%s751] sm:$0xff] %vm904, %v3100
        $region96: #{conformer_encoder_forward.1} parent=87 // pred_fallthru
          _
        %s3102 = sand.u32 %s485, 1
        %s3103 = scalar_lea.sflag [#allocation6], %s3102
        %s3104 = sand.u32 %s485, 1
        %s3105 = smul.addr %s3104, 8
        %s3106 = scalar_lea.vmem [#allocation5], %s3105
        // Predicated region
        $region97: #{conformer_encoder_forward.1} parent=87 // pred_check
          %p3107 = pneg %p495
        $region98: #{conformer_encoder_forward.1} parent=87 // pred_check_branch
          %3109 = sbr.rel (%p3107) target = $region100
        $region99: #{conformer_encoder_forward.1} parent=87 // pred_region
          %s3111 = ssub.s32 128, 128
          %3112 = vsyncadd %s3103, %s3111
          %s3113 = smul.addr %s42, 128
          %s3114 = scalar_lea.hbm %s18, %s3113
          %s3116 = sshll.u32 %s3106, 4
          %s3117 = int_to_ptr.vmem [resolvable:$true] %s3116
          %3119 = dma.vmem_to_hbm [thread:$0]  %s3117, 128, %s3114, %s3103
        $region100: #{conformer_encoder_forward.1} parent=87 // pred_fallthru
          _
      $region88: #{conformer_encoder_forward.1} parent=5 // pred_fallthru
        _
      %p3120 = scmp.le.s32.totalorder 2, %s33
      // Predicated region
      $region101: #{conformer_encoder_forward.1} parent=5 // pred_check
        %p3121 = pneg %p3120
      $region102: #{conformer_encoder_forward.1} parent=5 // pred_check_branch
        %3123 = sbr.rel (%p3121) target = $region104
      $region103: #{conformer_encoder_forward.1} parent=5 // pred_region
        %s3124 = ssub.s32 %s33, 2
        // Predicated region
        $region105: #{conformer_encoder_forward.1} parent=103 // pred_check
          %p3125 = pneg %p501
        $region106: #{conformer_encoder_forward.1} parent=103 // pred_check_branch
          %3127 = sbr.rel (%p3125) target = $region108
        $region107: #{conformer_encoder_forward.1} parent=103 // pred_region
          %s3128 = sand.u32 %s486, 1
          %s3129 = scalar_lea.sflag [#allocation6], %s3128
          %s3130 = sand.u32 %s486, 1
          %s3131 = smul.addr %s3130, 8
          %s3132 = scalar_lea.vmem [#allocation5], %s3131
          %3133 = dma.done %s3129, 128
        $region108: #{conformer_encoder_forward.1} parent=103 // pred_fallthru
          _
      $region104: #{conformer_encoder_forward.1} parent=5 // pred_fallthru
        _
    $region6: #{conformer_encoder_forward.1} parent=1 // loop_footer
      %s37 = sadd.s32 1, %s33
    $region7: #{conformer_encoder_forward.1} parent=1 // loop_footer_branch
      %32 = sbr.rel target = $region3
    $region8: #{conformer_encoder_forward.1} parent=1 // loop_exit
      _
    %3134 = vsyncpa [#allocation6], 1
    %s3135 = scalar_lea.sflag [#allocation6], 1
    %3136 = vsyncpa %s3135, 1

</llo_original>
